<compile_context>
chip_gen: v6e
topology: v6e:2x2x1
jax: 0.10.0
libtpu: 0.0.40
codegen_flags: <defaults>
</compile_context>

<pallas_src>
import jax
import jax.numpy as jnp
from jax.experimental import pallas as pl
from jax.experimental.pallas import tpu as pltpu


def _bilinear_matrix(out_size, in_size):
    # PyTorch nn.Upsample(mode='bilinear', align_corners=False) 1-D interp matrix.
    i = jnp.arange(out_size, dtype=jnp.float32)
    src = (i + 0.5) * (in_size / out_size) - 0.5
    src = jnp.maximum(src, 0.0)
    i0 = jnp.floor(src).astype(jnp.int32)
    frac = src - i0.astype(jnp.float32)
    i1 = jnp.minimum(i0 + 1, in_size - 1)
    m = jnp.zeros((out_size, in_size), jnp.float32)
    rows = jnp.arange(out_size)
    m = m.at[rows, i0].add(1.0 - frac)
    m = m.at[rows, i1].add(frac)
    return m


def _fold_params(w3, b3, w1, b1, H, W, length):
    """Fold conv_3x3 + bilinear resize + conv_1x1 into static matrices (host side)."""
    f32 = jnp.float32
    w3 = w3.astype(f32)                          # [2, 2, 3, 3]
    b3 = b3.astype(f32)                          # [2]
    w1 = w1.astype(f32)[:, :, 0, 0]              # [2, 2]
    b1 = b1.astype(f32)                          # [2]
    Ho = (H + 2 - 3) // 2 + 1
    Wo = (W + 2 - 3) // 2 + 1
    L = length

    Wh = _bilinear_matrix(L, Ho)                 # [L, Ho]
    Ww = _bilinear_matrix(L, Wo)                 # [L, Wo]

    # 0/1 selector matrices for the stride-2, pad-1 3x3 conv taps
    # (out-of-range taps simply have no matching column -> zero padding).
    oh = jnp.arange(Ho)[:, None]
    hh = jnp.arange(H)[None, :]
    R = jnp.stack([(hh == 2 * oh + kh - 1).astype(f32) for kh in range(3)])     # [3, Ho, H]
    ow = jnp.arange(Wo)[:, None]
    ww = jnp.arange(W)[None, :]
    Csel = jnp.stack([(ww == 2 * ow + kw - 1).astype(f32) for kw in range(3)])  # [3, Wo, W]

    WR = jnp.einsum('lp,kph->klh', Wh, R)        # [3, L, H]   (bilinear-H folded into row selector)
    CW = jnp.einsum('kqw,mq->kwm', Csel, Ww)     # [3, W, L]   (col selector folded into bilinear-W)

    # Fold the 1x1 conv into the 3x3 conv weights: A[oc, ic, kh, kw].
    A = jnp.einsum('op,piyx->oiyx', w1, w3)      # [2, 2, 3, 3]
    # RC[kh]: rows indexed by (ic, w), cols by (oc, m).
    RC = jnp.einsum('oiyx,xwm->yiwom', A, CW).reshape(3, 2 * W, 2 * L)          # [3, 2W, 2L]

    # Bias field: conv_3x3 bias resized, then through the 1x1 conv, plus b1.
    ones_resized = Wh @ jnp.ones((Ho, Wo), f32) @ Ww.T                          # [L, L]
    cols = [b1[oc] + jnp.sum(w1[oc] * b3) * ones_resized for oc in range(2)]
    bias = jnp.concatenate(cols, axis=1)                                        # [L, 2L]
    return WR, RC, bias


def _spatial_attention_kernel(x_ref, wr_ref, rc_ref, bias_ref, o_ref):
    # x_ref:   [B, C, H, 2W]   (x1 and x2 concatenated along W in the wrapper)
    # wr_ref:  [3, L, H]
    # rc_ref:  [3, 2W, 2L]
    # bias_ref:[L, 2L]
    # o_ref:   [B, L, 2L]      (columns 0:L -> out1, L:2L -> out2)
    hi = jax.lax.Precision.HIGHEST
    B = x_ref.shape[0]
    bias = bias_ref[...]
    for b in range(B):
        a = jnp.mean(x_ref[b].astype(jnp.float32), axis=0)                  # [H, 2W]
        acc = bias
        for kh in range(3):
            t = jnp.dot(wr_ref[kh], a,
                        preferred_element_type=jnp.float32, precision=hi)   # [L, 2W]
            acc = acc + jnp.dot(t, rc_ref[kh],
                                preferred_element_type=jnp.float32,
                                precision=hi)                                # [L, 2L]
        o_ref[b] = acc.astype(o_ref.dtype)


def _tensorcores_per_chip():
    try:
        kind = jax.devices()[0].device_kind.lower()
    except Exception:
        return 1
    return 2 if "v7" in kind else 1


def spatial_attention(x1, x2, w3, b3, w1, b1, length, batch_parallel=None):
    N, C, H, W = x1.shape
    L = length

    # Layout plumbing outside the kernel: single input, channel means land
    # side-by-side along W so the kernel needs no concatenation.
    x = jnp.concatenate([x1, x2], axis=3)                                   # [N, C, H, 2W]
    WR, RC, bias = _fold_params(w3, b3, w1, b1, H, W, L)

    if batch_parallel is None:
        # v7x: 2 TensorCores -> one batch element per (parallel) grid step.
        # v5e/v6e: single core -> merge the whole batch into one grid step
        # to avoid per-step pipeline overhead.
        batch_parallel = (_tensorcores_per_chip() >= 2) and (N > 1)
    if batch_parallel:
        steps, bpg = N, 1
    else:
        steps, bpg = 1, N

    out = pl.pallas_call(
        _spatial_attention_kernel,
        out_shape=jax.ShapeDtypeStruct((N, L, 2 * L), x1.dtype),
        grid=(steps,),
        in_specs=[
            pl.BlockSpec((bpg, C, H, 2 * W), lambda b: (b, 0, 0, 0)),
            pl.BlockSpec((3, L, H), lambda b: (0, 0, 0)),
            pl.BlockSpec((3, 2 * W, 2 * L), lambda b: (0, 0, 0)),
            pl.BlockSpec((L, 2 * L), lambda b: (0, 0)),
        ],
        out_specs=pl.BlockSpec((bpg, L, 2 * L), lambda b: (b, 0, 0)),
        compiler_params=pltpu.CompilerParams(dimension_semantics=("parallel",)),
    )(x, WR, RC, bias)

    o1 = out[:, None, :, :L]
    o2 = out[:, None, :, L:]
    return o1, o2


def reference(x1, x2, w3, b3, w1, b1, length):
    hi = jax.lax.Precision.HIGHEST
    a1 = jnp.mean(x1, axis=1, keepdims=True)
    a2 = jnp.mean(x2, axis=1, keepdims=True)
    x = jnp.concatenate([a1, a2], axis=1)
    y = jax.lax.conv_general_dilated(
        x, w3, window_strides=(2, 2), padding=((1, 1), (1, 1)),
        dimension_numbers=('NCHW', 'OIHW', 'NCHW'),
        precision=hi) + b3[None, :, None, None]
    wh = _bilinear_matrix(length, y.shape[2])
    ww = _bilinear_matrix(length, y.shape[3])
    y = jnp.einsum('lp,ncpq,mq->nclm', wh, y, ww, precision=hi)
    z = jax.lax.conv_general_dilated(
        y, w1, window_strides=(1, 1), padding=((0, 0), (0, 0)),
        dimension_numbers=('NCHW', 'OIHW', 'NCHW'),
        precision=hi) + b1[None, :, None, None]
    return z[:, 0:1], z[:, 1:2]


if __name__ == "__main__":
    key = jax.random.PRNGKey(0)
    k = jax.random.split(key, 6)
    N, C, H, W = 2, 4, 16, 16
    length = 16  # Spatial_Attention(channels=4, length=16)

    x1 = jax.random.normal(k[0], (N, C, H, W), jnp.float32)
    x2 = jax.random.normal(k[1], (N, C, H, W), jnp.float32)
    # deterministic synthetic parameters (shapes from nn.Conv2d in __init__)
    w3 = jax.random.normal(k[2], (2, 2, 3, 3), jnp.float32) * 0.1
    b3 = jax.random.normal(k[3], (2,), jnp.float32) * 0.1
    w1 = jax.random.normal(k[4], (2, 2, 1, 1), jnp.float32) * 0.1
    b1 = jax.random.normal(k[5], (2,), jnp.float32) * 0.1

    o1, o2 = spatial_attention(x1, x2, w3, b3, w1, b1, length)
    jax.block_until_ready((o1, o2))

    r1, r2 = reference(x1, x2, w3, b3, w1, b1, length)
    assert o1.shape == (N, 1, length, length) and o2.shape == (N, 1, length, length)
    assert jnp.allclose(o1, r1, atol=1e-4, rtol=1e-4)
    assert jnp.allclose(o2, r2, atol=1e-4, rtol=1e-4)
    print("KERNEL_OK")
</pallas_src>

<mosaic_0001>
module attributes {stable_mosaic.version = 11 : i64} {
  func.func @_spatial_attention_kernel(%arg0: i32, %arg1: memref<2x4x16x32xf32, #tpu.memory_space<vmem>>, %arg2: memref<3x16x16xf32, #tpu.memory_space<vmem>>, %arg3: memref<3x32x32xf32, #tpu.memory_space<vmem>>, %arg4: memref<16x32xf32, #tpu.memory_space<vmem>>, %arg5: memref<2x16x32xf32, #tpu.memory_space<vmem>>) attributes {dimension_semantics = [#tpu.dimension_semantics<parallel>], iteration_bounds = array<i64: 1>, scalar_prefetch = 0 : i64, scratch_operands = 0 : i64, tpu.core_type = #tpu.core_type<tc>, window_params = [{transform_indices = @transform_0, window_bounds = array<i64: 2, 4, 16, 32>}, {pipeline_mode = #tpu.pipeline_mode<synchronous>, transform_indices = @transform_1, window_bounds = array<i64: 3, 16, 16>}, {pipeline_mode = #tpu.pipeline_mode<synchronous>, transform_indices = @transform_2, window_bounds = array<i64: 3, 32, 32>}, {pipeline_mode = #tpu.pipeline_mode<synchronous>, transform_indices = @transform_3, window_bounds = array<i64: 16, 32>}, {transform_indices = @transform_4, window_bounds = array<i64: 2, 16, 32>}]} {
    %c0 = arith.constant 0 : index
    %c0_0 = arith.constant 0 : index
    %0 = vector.load %arg4[%c0, %c0_0] : memref<16x32xf32, #tpu.memory_space<vmem>>, vector<16x32xf32>
    %c0_1 = arith.constant 0 : index
    %c0_2 = arith.constant 0 : index
    %c0_3 = arith.constant 0 : index
    %c0_4 = arith.constant 0 : index
    %1 = vector.load %arg1[%c0_1, %c0_2, %c0_3, %c0_4] : memref<2x4x16x32xf32, #tpu.memory_space<vmem>>, vector<1x4x16x32xf32>
    %2 = vector.shape_cast %1 : vector<1x4x16x32xf32> to vector<4x16x32xf32>
    %cst = arith.constant dense<0.000000e+00> : vector<16x32xf32>
    %3 = vector.multi_reduction <add>, %2, %cst [0] : vector<4x16x32xf32> to vector<16x32xf32>
    %cst_5 = arith.constant 4.000000e+00 : f32
    %4 = vector.broadcast %cst_5 : f32 to vector<16x32xf32>
    %5 = arith.divf %3, %4 : vector<16x32xf32>
    %c0_6 = arith.constant 0 : index
    %c0_7 = arith.constant 0 : index
    %c0_8 = arith.constant 0 : index
    %6 = vector.load %arg2[%c0_6, %c0_7, %c0_8] : memref<3x16x16xf32, #tpu.memory_space<vmem>>, vector<1x16x16xf32>
    %7 = vector.shape_cast %6 : vector<1x16x16xf32> to vector<16x16xf32>
    %cst_9 = arith.constant dense<0.000000e+00> : vector<16x32xf32>
    %8 = tpu.matmul %7, %5, %cst_9 {dimension_numbers = #tpu.dot_dimension_numbers<[1], [0], [0], [1], [0, 0, 1, 1], [], []>, precision = #tpu.contract_precision<fp32>} : vector<16x16xf32>, vector<16x32xf32>, vector<16x32xf32> -> vector<16x32xf32>
    %c0_10 = arith.constant 0 : index
    %c0_11 = arith.constant 0 : index
    %c0_12 = arith.constant 0 : index
    %9 = vector.load %arg3[%c0_10, %c0_11, %c0_12] : memref<3x32x32xf32, #tpu.memory_space<vmem>>, vector<1x32x32xf32>
    %10 = vector.shape_cast %9 : vector<1x32x32xf32> to vector<32x32xf32>
    %cst_13 = arith.constant dense<0.000000e+00> : vector<16x32xf32>
    %11 = tpu.matmul %8, %10, %cst_13 {dimension_numbers = #tpu.dot_dimension_numbers<[1], [0], [0], [1], [0, 0, 1, 1], [], []>, precision = #tpu.contract_precision<fp32>} : vector<16x32xf32>, vector<32x32xf32>, vector<16x32xf32> -> vector<16x32xf32>
    %12 = arith.addf %0, %11 : vector<16x32xf32>
    %c1 = arith.constant 1 : index
    %c0_14 = arith.constant 0 : index
    %c0_15 = arith.constant 0 : index
    %13 = vector.load %arg2[%c1, %c0_14, %c0_15] : memref<3x16x16xf32, #tpu.memory_space<vmem>>, vector<1x16x16xf32>
    %14 = vector.shape_cast %13 : vector<1x16x16xf32> to vector<16x16xf32>
    %cst_16 = arith.constant dense<0.000000e+00> : vector<16x32xf32>
    %15 = tpu.matmul %14, %5, %cst_16 {dimension_numbers = #tpu.dot_dimension_numbers<[1], [0], [0], [1], [0, 0, 1, 1], [], []>, precision = #tpu.contract_precision<fp32>} : vector<16x16xf32>, vector<16x32xf32>, vector<16x32xf32> -> vector<16x32xf32>
    %c1_17 = arith.constant 1 : index
    %c0_18 = arith.constant 0 : index
    %c0_19 = arith.constant 0 : index
    %16 = vector.load %arg3[%c1_17, %c0_18, %c0_19] : memref<3x32x32xf32, #tpu.memory_space<vmem>>, vector<1x32x32xf32>
    %17 = vector.shape_cast %16 : vector<1x32x32xf32> to vector<32x32xf32>
    %cst_20 = arith.constant dense<0.000000e+00> : vector<16x32xf32>
    %18 = tpu.matmul %15, %17, %cst_20 {dimension_numbers = #tpu.dot_dimension_numbers<[1], [0], [0], [1], [0, 0, 1, 1], [], []>, precision = #tpu.contract_precision<fp32>} : vector<16x32xf32>, vector<32x32xf32>, vector<16x32xf32> -> vector<16x32xf32>
    %19 = arith.addf %12, %18 : vector<16x32xf32>
    %c2 = arith.constant 2 : index
    %c0_21 = arith.constant 0 : index
    %c0_22 = arith.constant 0 : index
    %20 = vector.load %arg2[%c2, %c0_21, %c0_22] : memref<3x16x16xf32, #tpu.memory_space<vmem>>, vector<1x16x16xf32>
    %21 = vector.shape_cast %20 : vector<1x16x16xf32> to vector<16x16xf32>
    %cst_23 = arith.constant dense<0.000000e+00> : vector<16x32xf32>
    %22 = tpu.matmul %21, %5, %cst_23 {dimension_numbers = #tpu.dot_dimension_numbers<[1], [0], [0], [1], [0, 0, 1, 1], [], []>, precision = #tpu.contract_precision<fp32>} : vector<16x16xf32>, vector<16x32xf32>, vector<16x32xf32> -> vector<16x32xf32>
    %c2_24 = arith.constant 2 : index
    %c0_25 = arith.constant 0 : index
    %c0_26 = arith.constant 0 : index
    %23 = vector.load %arg3[%c2_24, %c0_25, %c0_26] : memref<3x32x32xf32, #tpu.memory_space<vmem>>, vector<1x32x32xf32>
    %24 = vector.shape_cast %23 : vector<1x32x32xf32> to vector<32x32xf32>
    %cst_27 = arith.constant dense<0.000000e+00> : vector<16x32xf32>
    %25 = tpu.matmul %22, %24, %cst_27 {dimension_numbers = #tpu.dot_dimension_numbers<[1], [0], [0], [1], [0, 0, 1, 1], [], []>, precision = #tpu.contract_precision<fp32>} : vector<16x32xf32>, vector<32x32xf32>, vector<16x32xf32> -> vector<16x32xf32>
    %26 = arith.addf %19, %25 : vector<16x32xf32>
    %c0_28 = arith.constant 0 : index
    %c0_29 = arith.constant 0 : index
    %c0_30 = arith.constant 0 : index
    %27 = vector.load %arg5[%c0_28, %c0_29, %c0_30] : memref<2x16x32xf32, #tpu.memory_space<vmem>>, vector<1x16x32xf32>
    %28 = vector.shape_cast %27 : vector<1x16x32xf32> to vector<16x32xf32>
    %29 = vector.shape_cast %26 : vector<16x32xf32> to vector<1x16x32xf32>
    tpu.vector_store %arg5[%c0_28, %c0_29, %c0_30], %29 {strides = array<i32>} : memref<2x16x32xf32, #tpu.memory_space<vmem>>, vector<1x16x32xf32>,
    %c1_31 = arith.constant 1 : index
    %c0_32 = arith.constant 0 : index
    %c0_33 = arith.constant 0 : index
    %c0_34 = arith.constant 0 : index
    %30 = vector.load %arg1[%c1_31, %c0_32, %c0_33, %c0_34] : memref<2x4x16x32xf32, #tpu.memory_space<vmem>>, vector<1x4x16x32xf32>
    %31 = vector.shape_cast %30 : vector<1x4x16x32xf32> to vector<4x16x32xf32>
    %cst_35 = arith.constant dense<0.000000e+00> : vector<16x32xf32>
    %32 = vector.multi_reduction <add>, %31, %cst_35 [0] : vector<4x16x32xf32> to vector<16x32xf32>
    %cst_36 = arith.constant 4.000000e+00 : f32
    %33 = vector.broadcast %cst_36 : f32 to vector<16x32xf32>
    %34 = arith.divf %32, %33 : vector<16x32xf32>
    %c0_37 = arith.constant 0 : index
    %c0_38 = arith.constant 0 : index
    %c0_39 = arith.constant 0 : index
    %35 = vector.load %arg2[%c0_37, %c0_38, %c0_39] : memref<3x16x16xf32, #tpu.memory_space<vmem>>, vector<1x16x16xf32>
    %36 = vector.shape_cast %35 : vector<1x16x16xf32> to vector<16x16xf32>
    %cst_40 = arith.constant dense<0.000000e+00> : vector<16x32xf32>
    %37 = tpu.matmul %36, %34, %cst_40 {dimension_numbers = #tpu.dot_dimension_numbers<[1], [0], [0], [1], [0, 0, 1, 1], [], []>, precision = #tpu.contract_precision<fp32>} : vector<16x16xf32>, vector<16x32xf32>, vector<16x32xf32> -> vector<16x32xf32>
    %c0_41 = arith.constant 0 : index
    %c0_42 = arith.constant 0 : index
    %c0_43 = arith.constant 0 : index
    %38 = vector.load %arg3[%c0_41, %c0_42, %c0_43] : memref<3x32x32xf32, #tpu.memory_space<vmem>>, vector<1x32x32xf32>
    %39 = vector.shape_cast %38 : vector<1x32x32xf32> to vector<32x32xf32>
    %cst_44 = arith.constant dense<0.000000e+00> : vector<16x32xf32>
    %40 = tpu.matmul %37, %39, %cst_44 {dimension_numbers = #tpu.dot_dimension_numbers<[1], [0], [0], [1], [0, 0, 1, 1], [], []>, precision = #tpu.contract_precision<fp32>} : vector<16x32xf32>, vector<32x32xf32>, vector<16x32xf32> -> vector<16x32xf32>
    %41 = arith.addf %0, %40 : vector<16x32xf32>
    %c1_45 = arith.constant 1 : index
    %c0_46 = arith.constant 0 : index
    %c0_47 = arith.constant 0 : index
    %42 = vector.load %arg2[%c1_45, %c0_46, %c0_47] : memref<3x16x16xf32, #tpu.memory_space<vmem>>, vector<1x16x16xf32>
    %43 = vector.shape_cast %42 : vector<1x16x16xf32> to vector<16x16xf32>
    %cst_48 = arith.constant dense<0.000000e+00> : vector<16x32xf32>
    %44 = tpu.matmul %43, %34, %cst_48 {dimension_numbers = #tpu.dot_dimension_numbers<[1], [0], [0], [1], [0, 0, 1, 1], [], []>, precision = #tpu.contract_precision<fp32>} : vector<16x16xf32>, vector<16x32xf32>, vector<16x32xf32> -> vector<16x32xf32>
    %c1_49 = arith.constant 1 : index
    %c0_50 = arith.constant 0 : index
    %c0_51 = arith.constant 0 : index
    %45 = vector.load %arg3[%c1_49, %c0_50, %c0_51] : memref<3x32x32xf32, #tpu.memory_space<vmem>>, vector<1x32x32xf32>
    %46 = vector.shape_cast %45 : vector<1x32x32xf32> to vector<32x32xf32>
    %cst_52 = arith.constant dense<0.000000e+00> : vector<16x32xf32>
    %47 = tpu.matmul %44, %46, %cst_52 {dimension_numbers = #tpu.dot_dimension_numbers<[1], [0], [0], [1], [0, 0, 1, 1], [], []>, precision = #tpu.contract_precision<fp32>} : vector<16x32xf32>, vector<32x32xf32>, vector<16x32xf32> -> vector<16x32xf32>
    %48 = arith.addf %41, %47 : vector<16x32xf32>
    %c2_53 = arith.constant 2 : index
    %c0_54 = arith.constant 0 : index
    %c0_55 = arith.constant 0 : index
    %49 = vector.load %arg2[%c2_53, %c0_54, %c0_55] : memref<3x16x16xf32, #tpu.memory_space<vmem>>, vector<1x16x16xf32>
    %50 = vector.shape_cast %49 : vector<1x16x16xf32> to vector<16x16xf32>
    %cst_56 = arith.constant dense<0.000000e+00> : vector<16x32xf32>
    %51 = tpu.matmul %50, %34, %cst_56 {dimension_numbers = #tpu.dot_dimension_numbers<[1], [0], [0], [1], [0, 0, 1, 1], [], []>, precision = #tpu.contract_precision<fp32>} : vector<16x16xf32>, vector<16x32xf32>, vector<16x32xf32> -> vector<16x32xf32>
    %c2_57 = arith.constant 2 : index
    %c0_58 = arith.constant 0 : index
    %c0_59 = arith.constant 0 : index
    %52 = vector.load %arg3[%c2_57, %c0_58, %c0_59] : memref<3x32x32xf32, #tpu.memory_space<vmem>>, vector<1x32x32xf32>
    %53 = vector.shape_cast %52 : vector<1x32x32xf32> to vector<32x32xf32>
    %cst_60 = arith.constant dense<0.000000e+00> : vector<16x32xf32>
    %54 = tpu.matmul %51, %53, %cst_60 {dimension_numbers = #tpu.dot_dimension_numbers<[1], [0], [0], [1], [0, 0, 1, 1], [], []>, precision = #tpu.contract_precision<fp32>} : vector<16x32xf32>, vector<32x32xf32>, vector<16x32xf32> -> vector<16x32xf32>
    %55 = arith.addf %48, %54 : vector<16x32xf32>
    %c1_61 = arith.constant 1 : index
    %c0_62 = arith.constant 0 : index
    %c0_63 = arith.constant 0 : index
    %56 = vector.load %arg5[%c1_61, %c0_62, %c0_63] : memref<2x16x32xf32, #tpu.memory_space<vmem>>, vector<1x16x32xf32>
    %57 = vector.shape_cast %56 : vector<1x16x32xf32> to vector<16x32xf32>
    %58 = vector.shape_cast %55 : vector<16x32xf32> to vector<1x16x32xf32>
    tpu.vector_store %arg5[%c1_61, %c0_62, %c0_63], %58 {strides = array<i32>} : memref<2x16x32xf32, #tpu.memory_space<vmem>>, vector<1x16x32xf32>,
    return
  }
  func.func @transform_0(%arg0: i32) -> (i32, i32, i32, i32) {
    %c0_i32 = arith.constant 0 : i32
    %c0_i32_0 = arith.constant 0 : i32
    %c0_i32_1 = arith.constant 0 : i32
    %c0_i32_2 = arith.constant 0 : i32
    return %arg0, %c0_i32, %c0_i32_0, %c0_i32_1 : i32, i32, i32, i32
  }
  func.func @transform_1(%arg0: i32) -> (i32, i32, i32) {
    %c0_i32 = arith.constant 0 : i32
    %c0_i32_0 = arith.constant 0 : i32
    %c0_i32_1 = arith.constant 0 : i32
    %c0_i32_2 = arith.constant 0 : i32
    return %c0_i32, %c0_i32_0, %c0_i32_1 : i32, i32, i32
  }
  func.func @transform_2(%arg0: i32) -> (i32, i32, i32) {
    %c0_i32 = arith.constant 0 : i32
    %c0_i32_0 = arith.constant 0 : i32
    %c0_i32_1 = arith.constant 0 : i32
    %c0_i32_2 = arith.constant 0 : i32
    return %c0_i32, %c0_i32_0, %c0_i32_1 : i32, i32, i32
  }
  func.func @transform_3(%arg0: i32) -> (i32, i32) {
    %c0_i32 = arith.constant 0 : i32
    %c0_i32_0 = arith.constant 0 : i32
    %c0_i32_1 = arith.constant 0 : i32
    return %c0_i32, %c0_i32_0 : i32, i32
  }
  func.func @transform_4(%arg0: i32) -> (i32, i32, i32) {
    %c0_i32 = arith.constant 0 : i32
    %c0_i32_0 = arith.constant 0 : i32
    %c0_i32_1 = arith.constant 0 : i32
    return %arg0, %c0_i32, %c0_i32_0 : i32, i32, i32
  }
}

</mosaic_0001>

<llo_original>
// kernel: tpu_custom_call.1
$region0: #{tpu_custom_call.1}
  #allocation0 [shape = 'u32[]', space=smem, size = 0x4, offset = 0x4, fixed_abs, tag = 'smem constant byte address 0x4 - core index']
  #allocation1 [shape = 'u32[144,128]{1,0:T(1,128)}', space=vmem, size = 0x12000, scoped, tag = 'internal scratch']
  %s0 = inlined_call_operand.hbm [shape: f32[2,4,16,32], index: 0, kind: input, shape index: {}]
  %s1 = inlined_call_operand.hbm [shape: f32[3,16,16], index: 1, kind: input, shape index: {}]
  %s2 = inlined_call_operand.hbm [shape: f32[3,32,32], index: 2, kind: input, shape index: {}]
  %s3 = inlined_call_operand.hbm [shape: f32[16,32], index: 3, kind: input, shape index: {}]
  %s4 = inlined_call_operand.hbm [shape: f32[2,16,32], index: 4, kind: output, shape index: {}]
  %s5 = sld [smem:[#allocation0]]
  $region42: #{tpu_custom_call.1} parent=0
    _
  %s7 = ssub.s32 1, %s5
  %s8 = scalar_select 0, %s7, %s5
  $region1: #{tpu_custom_call.1} parent=0
    #allocation2 [shape = 'u8[65536]{0}', space=vmem, size = 0x10000, scoped, tag = 'input window, operand 0, single buffered']
    #allocation3 [shape = 's32[1]{0}', space=sflag, size = 0x4, scoped, tag = 'scoped memory for tpu_custom_call.1']
    #allocation4 [shape = 's32[1]{0}', space=sflag, size = 0x4, scoped, tag = 'scoped memory for tpu_custom_call.1']
    #allocation5 [shape = 'u8[24576]{0}', space=vmem, size = 0x6000, scoped, tag = 'input window, operand 1, single buffered']
    #allocation6 [shape = 's32[1]{0}', space=sflag, size = 0x4, scoped, tag = 'scoped memory for tpu_custom_call.1']
    #allocation7 [shape = 'u8[49152]{0}', space=vmem, size = 0xc000, scoped, tag = 'input window, operand 2, single buffered']
    #allocation8 [shape = 'u8[8192]{0}', space=vmem, size = 0x2000, scoped, tag = 'input window, operand 3, single buffered']
    #allocation9 [shape = 's32[1]{0}', space=sflag, size = 0x4, scoped, tag = 'scoped memory for tpu_custom_call.1']
    #allocation10 [shape = 'u8[16384]{0}', space=vmem, size = 0x4000, scoped, tag = 'output window, operand 0, single buffered']
    %9 = vsyncpa [#allocation3], 0
    %10 = vsyncpa [#allocation6], 0
    %11 = vsyncpa [#allocation9], 0
    %12 = vsyncpa [#allocation4], 0
    // Predicated region
    $region2: #{tpu_custom_call.1} parent=1 // pred_check
      _
    $region3: #{tpu_custom_call.1} parent=1 // pred_check_branch
      %14 = sbr.rel (0) target = $region5
    $region4: #{tpu_custom_call.1} parent=1 // pred_region
      %s16 = ssub.s32 2048, 2048
      %17 = vsyncadd [#allocation3], %s16
      %s18 = sshll.u32 [#allocation2], 4
      %s19 = int_to_ptr.vmem [resolvable:$true] %s18
      %24 = dma.hbm_to_vmem [thread:$0]  %s0, 2048, %s19, [#allocation3], 128, 128, 8
    $region5: #{tpu_custom_call.1} parent=1 // pred_fallthru
      _
    // Predicated region
    $region6: #{tpu_custom_call.1} parent=1 // pred_check
      _
    $region7: #{tpu_custom_call.1} parent=1 // pred_check_branch
      %26 = sbr.rel (0) target = $region9
    $region8: #{tpu_custom_call.1} parent=1 // pred_region
      %s28 = ssub.s32 768, 768
      %29 = vsyncadd [#allocation6], %s28
      %s30 = sshll.u32 [#allocation5], 4
      %s31 = int_to_ptr.vmem [resolvable:$true] %s30
      %36 = dma.hbm_to_vmem [thread:$0]  %s1, 768, %s31, [#allocation6], 128, 128, 8
    $region9: #{tpu_custom_call.1} parent=1 // pred_fallthru
      _
    // Predicated region
    $region10: #{tpu_custom_call.1} parent=1 // pred_check
      _
    $region11: #{tpu_custom_call.1} parent=1 // pred_check_branch
      %38 = sbr.rel (0) target = $region13
    $region12: #{tpu_custom_call.1} parent=1 // pred_region
      %s40 = ssub.s32 1536, 1536
      %41 = vsyncadd [#allocation6], %s40
      %s42 = sshll.u32 [#allocation7], 4
      %s43 = int_to_ptr.vmem [resolvable:$true] %s42
      %48 = dma.hbm_to_vmem [thread:$0]  %s2, 1536, %s43, [#allocation6], 128, 128, 8
    $region13: #{tpu_custom_call.1} parent=1 // pred_fallthru
      _
    // Predicated region
    $region14: #{tpu_custom_call.1} parent=1 // pred_check
      _
    $region15: #{tpu_custom_call.1} parent=1 // pred_check_branch
      %50 = sbr.rel (0) target = $region17
    $region16: #{tpu_custom_call.1} parent=1 // pred_region
      %s52 = ssub.s32 256, 256
      %53 = vsyncadd [#allocation9], %s52
      %s54 = sshll.u32 [#allocation8], 4
      %s55 = int_to_ptr.vmem [resolvable:$true] %s54
      %60 = dma.hbm_to_vmem [thread:$0]  %s3, 256, %s55, [#allocation9], 128, 128, 8
    $region17: #{tpu_custom_call.1} parent=1 // pred_fallthru
      _
    // Predicated region
    $region18: #{tpu_custom_call.1} parent=1 // pred_check
      _
    $region19: #{tpu_custom_call.1} parent=1 // pred_check_branch
      %62 = sbr.rel (0) target = $region21
    $region20: #{tpu_custom_call.1} parent=1 // pred_region
      %63 = dma.done [#allocation3], 2048
    $region21: #{tpu_custom_call.1} parent=1 // pred_fallthru
      _
    // Predicated region
    $region22: #{tpu_custom_call.1} parent=1 // pred_check
      _
    $region23: #{tpu_custom_call.1} parent=1 // pred_check_branch
      %65 = sbr.rel (0) target = $region25
    $region24: #{tpu_custom_call.1} parent=1 // pred_region
      %66 = dma.done [#allocation6], 768
    $region25: #{tpu_custom_call.1} parent=1 // pred_fallthru
      _
    // Predicated region
    $region26: #{tpu_custom_call.1} parent=1 // pred_check
      _
    $region27: #{tpu_custom_call.1} parent=1 // pred_check_branch
      %68 = sbr.rel (0) target = $region29
    $region28: #{tpu_custom_call.1} parent=1 // pred_region
      %69 = dma.done [#allocation6], 1536
    $region29: #{tpu_custom_call.1} parent=1 // pred_fallthru
      _
    // Predicated region
    $region30: #{tpu_custom_call.1} parent=1 // pred_check
      _
    $region31: #{tpu_custom_call.1} parent=1 // pred_check_branch
      %71 = sbr.rel (0) target = $region33
    $region32: #{tpu_custom_call.1} parent=1 // pred_region
      %72 = dma.done [#allocation9], 256
    $region33: #{tpu_custom_call.1} parent=1 // pred_fallthru
      _
    %v73 = vld [vmem:[#allocation8] sm:$0xff]
    %v74 = vld [vmem:[#allocation8 + $0x8] sm:$0xff]
    %v75 = vld [vmem:[#allocation2] sm:$0xff]
    %v76 = vld [vmem:[#allocation2 + $0x8] sm:$0xff]
    %v77 = vld [vmem:[#allocation2 + $0x10] sm:$0xff]
    %v78 = vld [vmem:[#allocation2 + $0x18] sm:$0xff]
    %v79 = vld [vmem:[#allocation2 + $0x20] sm:$0xff]
    %v80 = vld [vmem:[#allocation2 + $0x28] sm:$0xff]
    %v81 = vld [vmem:[#allocation2 + $0x30] sm:$0xff]
    %v82 = vld [vmem:[#allocation2 + $0x38] sm:$0xff]
    %vm83 = vcmask 261120
    %v84 = vsel %vm83, %v75, 0.0
    %v85 = vsel %vm83, %v77, 0.0
    %v86 = vadd.f32 %v84, %v85
    %v87 = vsel %vm83, %v79, 0.0
    %v88 = vadd.f32 %v86, %v87
    %v89 = vsel %vm83, %v81, 0.0
    %v90 = vadd.f32 %v88, %v89
    %v91 = vsel %vm83, %v76, 0.0
    %v92 = vsel %vm83, %v78, 0.0
    %v93 = vadd.f32 %v91, %v92
    %v94 = vsel %vm83, %v80, 0.0
    %v95 = vadd.f32 %v93, %v94
    %v96 = vsel %vm83, %v82, 0.0
    %v97 = vadd.f32 %v95, %v96
    %v98 = vrcp.pop 4.0
    %v99 = vmul.f32 %v90, %v98
    %v100 = vmul.f32 %v97, %v98
    %v101 = vld [vmem:[#allocation5] sm:$0xff]
    %v102 = vld [vmem:[#allocation5 + $0x8] sm:$0xff]
    %vm103 = vcmask 130048
    %v105 = vsel %vm103, %v101, 0
    %v108 = vsel %vm103, %v102, 0
    %110 = vmatprep.subr.mxu0 0.0
    %111 = vmatpush1.msra.mxu0 0.0
    %112 = vmatprep.subr.mxu0 0.0
    %113 = vmatpush1.msra.mxu0 0.0
    %114 = vmatprep.subr.mxu0 0.0
    %115 = vmatpush1.msra.mxu0 0.0
    %116 = vmatprep.subr.mxu0 0.0
    %117 = vmatpush1.msra.mxu0 0.0
    %118 = vmatprep.subr.mxu0 0.0
    %119 = vmatpush1.msra.mxu0 0.0
    %120 = vmatprep.subr.mxu0 0.0
    %121 = vmatpush1.msra.mxu0 0.0
    %122 = vmatprep.subr.mxu0 0.0
    %123 = vmatpush1.msra.mxu0 0.0
    %124 = vmatprep.subr.mxu0 0.0
    %125 = vmatpush1.msra.mxu0 0.0
    %126 = vmatprep.subr.mxu0 0.0
    %127 = vmatpush1.msra.mxu0 0.0
    %128 = vmatprep.subr.mxu0 0.0
    %129 = vmatpush1.msra.mxu0 0.0
    %130 = vmatprep.subr.mxu0 0.0
    %131 = vmatpush1.msra.mxu0 0.0
    %132 = vmatprep.subr.mxu0 0.0
    %133 = vmatpush1.msra.mxu0 0.0
    %134 = vmatprep.subr.mxu0 0.0
    %135 = vmatpush1.msra.mxu0 0.0
    %136 = vmatprep.subr.mxu0 0.0
    %137 = vmatpush1.msra.mxu0 0.0
    %138 = vmatprep.subr.mxu0 0.0
    %v139 = vand.u32 %v100, 4294901760
    %140 = vmatpush1.msra.mxu0 %v139
    %141 = vmatprep.subr.mxu0 0.0
    %v142 = vand.u32 %v99, 4294901760
    %143 = vmatpush1.msra.mxu0 %v142
    %144 = vmatprep.subr.mxu0 0.0
    %145 = vmatpush2.msra.mxu0 0.0
    %146 = vmatprep.subr.mxu0 0.0
    %147 = vmatpush2.msra.mxu0 0.0
    %148 = vmatprep.subr.mxu0 0.0
    %149 = vmatpush2.msra.mxu0 0.0
    %150 = vmatprep.subr.mxu0 0.0
    %151 = vmatpush2.msra.mxu0 0.0
    %152 = vmatprep.subr.mxu0 0.0
    %153 = vmatpush2.msra.mxu0 0.0
    %154 = vmatprep.subr.mxu0 0.0
    %155 = vmatpush2.msra.mxu0 0.0
    %156 = vmatprep.subr.mxu0 0.0
    %157 = vmatpush2.msra.mxu0 0.0
    %158 = vmatprep.subr.mxu0 0.0
    %159 = vmatpush2.msra.mxu0 0.0
    %160 = vmatprep.subr.mxu0 0.0
    %161 = vmatpush2.msra.mxu0 0.0
    %162 = vmatprep.subr.mxu0 0.0
    %163 = vmatpush2.msra.mxu0 0.0
    %164 = vmatprep.subr.mxu0 0.0
    %165 = vmatpush2.msra.mxu0 0.0
    %166 = vmatprep.subr.mxu0 0.0
    %167 = vmatpush2.msra.mxu0 0.0
    %168 = vmatprep.subr.mxu0 0.0
    %169 = vmatpush2.msra.mxu0 0.0
    %170 = vmatprep.subr.mxu0 0.0
    %171 = vmatpush2.msra.mxu0 0.0
    %172 = vmatprep.subr.mxu0 0.0
    %173 = vmatpush2.msra.mxu0 0.0
    %174 = vmatprep.subr.mxu0 0.0
    %175 = vmatpush2.msra.mxu0 0.0
    %176 = vmatprep.mubr.f32.mxu0 0.0
    %v177 = vand.u32 %v105, 4294901760
    %v178 = vsub.f32 %v105, %v177
    %v179 = vand.u32 %v178, 4294901760
    %v180 = vsub.f32 %v178, %v179
    %v181 = vand.u32 %v180, 4294901760
    %182 = vmatmul.mubr.f32.gmra.mxu0 %v181
    %v183 = vpop.f32.mrf.mxu0
    %v184 = vadd.f32 0.0, %v183
    %v185 = vpop.f32.mrf.mxu0
    %186 = vmatprep.mubr.f32.mxu0 0.0
    %v187 = vand.u32 %v108, 4294901760
    %v188 = vsub.f32 %v108, %v187
    %v189 = vand.u32 %v188, 4294901760
    %v190 = vsub.f32 %v188, %v189
    %v191 = vand.u32 %v190, 4294901760
    %192 = vmatmul.mubr.f32.gmra.mxu0 %v191
    %v193 = vpop.f32.mrf.mxu0
    %v194 = vadd.f32 0.0, %v193
    %v195 = vpop.f32.mrf.mxu0
    %196 = vdwg.mxu0
    %197 = vmatprep.subr.mxu0 0.0
    %198 = vmatpush1.msra.mxu0 0.0
    %199 = vmatprep.subr.mxu0 0.0
    %200 = vmatpush1.msra.mxu0 0.0
    %201 = vmatprep.subr.mxu0 0.0
    %202 = vmatpush1.msra.mxu0 0.0
    %203 = vmatprep.subr.mxu0 0.0
    %204 = vmatpush1.msra.mxu0 0.0
    %205 = vmatprep.subr.mxu0 0.0
    %206 = vmatpush1.msra.mxu0 0.0
    %207 = vmatprep.subr.mxu0 0.0
    %208 = vmatpush1.msra.mxu0 0.0
    %209 = vmatprep.subr.mxu0 0.0
    %210 = vmatpush1.msra.mxu0 0.0
    %211 = vmatprep.subr.mxu0 0.0
    %212 = vmatpush1.msra.mxu0 0.0
    %213 = vmatprep.subr.mxu0 0.0
    %214 = vmatpush1.msra.mxu0 0.0
    %215 = vmatprep.subr.mxu0 0.0
    %216 = vmatpush1.msra.mxu0 0.0
    %217 = vmatprep.subr.mxu0 0.0
    %218 = vmatpush1.msra.mxu0 0.0
    %219 = vmatprep.subr.mxu0 0.0
    %220 = vmatpush1.msra.mxu0 0.0
    %221 = vmatprep.subr.mxu0 0.0
    %222 = vmatpush1.msra.mxu0 0.0
    %223 = vmatprep.subr.mxu0 0.0
    %224 = vmatpush1.msra.mxu0 0.0
    %225 = vmatprep.subr.mxu0 0.0
    %v226 = vand.u32 %v100, 4294901760
    %v227 = vsub.f32 %v100, %v226
    %v228 = vand.u32 %v227, 4294901760
    %v229 = vsub.f32 %v227, %v228
    %v230 = vand.u32 %v229, 4294901760
    %231 = vmatpush1.msra.mxu0 %v230
    %232 = vmatprep.subr.mxu0 0.0
    %v233 = vand.u32 %v99, 4294901760
    %v234 = vsub.f32 %v99, %v233
    %v235 = vand.u32 %v234, 4294901760
    %v236 = vsub.f32 %v234, %v235
    %v237 = vand.u32 %v236, 4294901760
    %238 = vmatpush1.msra.mxu0 %v237
    %239 = vmatprep.subr.mxu0 0.0
    %240 = vmatpush2.msra.mxu0 0.0
    %241 = vmatprep.subr.mxu0 0.0
    %242 = vmatpush2.msra.mxu0 0.0
    %243 = vmatprep.subr.mxu0 0.0
    %244 = vmatpush2.msra.mxu0 0.0
    %245 = vmatprep.subr.mxu0 0.0
    %246 = vmatpush2.msra.mxu0 0.0
    %247 = vmatprep.subr.mxu0 0.0
    %248 = vmatpush2.msra.mxu0 0.0
    %249 = vmatprep.subr.mxu0 0.0
    %250 = vmatpush2.msra.mxu0 0.0
    %251 = vmatprep.subr.mxu0 0.0
    %252 = vmatpush2.msra.mxu0 0.0
    %253 = vmatprep.subr.mxu0 0.0
    %254 = vmatpush2.msra.mxu0 0.0
    %255 = vmatprep.subr.mxu0 0.0
    %256 = vmatpush2.msra.mxu0 0.0
    %257 = vmatprep.subr.mxu0 0.0
    %258 = vmatpush2.msra.mxu0 0.0
    %259 = vmatprep.subr.mxu0 0.0
    %260 = vmatpush2.msra.mxu0 0.0
    %261 = vmatprep.subr.mxu0 0.0
    %262 = vmatpush2.msra.mxu0 0.0
    %263 = vmatprep.subr.mxu0 0.0
    %264 = vmatpush2.msra.mxu0 0.0
    %265 = vmatprep.subr.mxu0 0.0
    %266 = vmatpush2.msra.mxu0 0.0
    %267 = vmatprep.subr.mxu0 0.0
    %268 = vmatpush2.msra.mxu0 0.0
    %269 = vmatprep.subr.mxu0 0.0
    %270 = vmatpush2.msra.mxu0 0.0
    %271 = vmatprep.mubr.f32.mxu0 0.0
    %v272 = vand.u32 %v105, 4294901760
    %273 = vmatmul.mubr.f32.gmra.mxu0 %v272
    %v274 = vpop.f32.mrf.mxu0
    %v275 = vadd.f32 %v184, %v274
    %v276 = vpop.f32.mrf.mxu0
    %277 = vmatprep.mubr.f32.mxu0 0.0
    %v278 = vand.u32 %v108, 4294901760
    %279 = vmatmul.mubr.f32.gmra.mxu0 %v278
    %v280 = vpop.f32.mrf.mxu0
    %v281 = vadd.f32 %v194, %v280
    %v282 = vpop.f32.mrf.mxu0
    %283 = vdwg.mxu0
    %284 = vmatprep.subr.mxu0 0.0
    %285 = vmatpush1.msra.mxu0 0.0
    %286 = vmatprep.subr.mxu0 0.0
    %287 = vmatpush1.msra.mxu0 0.0
    %288 = vmatprep.subr.mxu0 0.0
    %289 = vmatpush1.msra.mxu0 0.0
    %290 = vmatprep.subr.mxu0 0.0
    %291 = vmatpush1.msra.mxu0 0.0
    %292 = vmatprep.subr.mxu0 0.0
    %293 = vmatpush1.msra.mxu0 0.0
    %294 = vmatprep.subr.mxu0 0.0
    %295 = vmatpush1.msra.mxu0 0.0
    %296 = vmatprep.subr.mxu0 0.0
    %297 = vmatpush1.msra.mxu0 0.0
    %298 = vmatprep.subr.mxu0 0.0
    %299 = vmatpush1.msra.mxu0 0.0
    %300 = vmatprep.subr.mxu0 0.0
    %301 = vmatpush1.msra.mxu0 0.0
    %302 = vmatprep.subr.mxu0 0.0
    %303 = vmatpush1.msra.mxu0 0.0
    %304 = vmatprep.subr.mxu0 0.0
    %305 = vmatpush1.msra.mxu0 0.0
    %306 = vmatprep.subr.mxu0 0.0
    %307 = vmatpush1.msra.mxu0 0.0
    %308 = vmatprep.subr.mxu0 0.0
    %309 = vmatpush1.msra.mxu0 0.0
    %310 = vmatprep.subr.mxu0 0.0
    %311 = vmatpush1.msra.mxu0 0.0
    %312 = vmatprep.subr.mxu0 0.0
    %v313 = vand.u32 %v100, 4294901760
    %v314 = vsub.f32 %v100, %v313
    %315 = vmatpush1.msra.mxu0 %v314
    %316 = vmatprep.subr.mxu0 0.0
    %v317 = vand.u32 %v99, 4294901760
    %v318 = vsub.f32 %v99, %v317
    %319 = vmatpush1.msra.mxu0 %v318
    %320 = vmatprep.subr.mxu0 0.0
    %321 = vmatpush2.msra.mxu0 0.0
    %322 = vmatprep.subr.mxu0 0.0
    %323 = vmatpush2.msra.mxu0 0.0
    %324 = vmatprep.subr.mxu0 0.0
    %325 = vmatpush2.msra.mxu0 0.0
    %326 = vmatprep.subr.mxu0 0.0
    %327 = vmatpush2.msra.mxu0 0.0
    %328 = vmatprep.subr.mxu0 0.0
    %329 = vmatpush2.msra.mxu0 0.0
    %330 = vmatprep.subr.mxu0 0.0
    %331 = vmatpush2.msra.mxu0 0.0
    %332 = vmatprep.subr.mxu0 0.0
    %333 = vmatpush2.msra.mxu0 0.0
    %334 = vmatprep.subr.mxu0 0.0
    %335 = vmatpush2.msra.mxu0 0.0
    %336 = vmatprep.subr.mxu0 0.0
    %337 = vmatpush2.msra.mxu0 0.0
    %338 = vmatprep.subr.mxu0 0.0
    %339 = vmatpush2.msra.mxu0 0.0
    %340 = vmatprep.subr.mxu0 0.0
    %341 = vmatpush2.msra.mxu0 0.0
    %342 = vmatprep.subr.mxu0 0.0
    %343 = vmatpush2.msra.mxu0 0.0
    %344 = vmatprep.subr.mxu0 0.0
    %345 = vmatpush2.msra.mxu0 0.0
    %346 = vmatprep.subr.mxu0 0.0
    %347 = vmatpush2.msra.mxu0 0.0
    %348 = vmatprep.subr.mxu0 0.0
    %349 = vmatpush2.msra.mxu0 0.0
    %350 = vmatprep.subr.mxu0 0.0
    %351 = vmatpush2.msra.mxu0 0.0
    %352 = vmatprep.mubr.f32.mxu0 0.0
    %v353 = vand.u32 %v105, 4294901760
    %v354 = vsub.f32 %v105, %v353
    %355 = vmatmul.mubr.f32.gmra.mxu0 %v354
    %v356 = vpop.f32.mrf.mxu0
    %v357 = vadd.f32 %v275, %v356
    %v358 = vpop.f32.mrf.mxu0
    %359 = vmatprep.mubr.f32.mxu0 0.0
    %v360 = vand.u32 %v108, 4294901760
    %v361 = vsub.f32 %v108, %v360
    %362 = vmatmul.mubr.f32.gmra.mxu0 %v361
    %v363 = vpop.f32.mrf.mxu0
    %v364 = vadd.f32 %v281, %v363
    %v365 = vpop.f32.mrf.mxu0
    %366 = vdwg.mxu0
    %367 = vmatprep.subr.mxu0 0.0
    %368 = vmatpush1.msra.mxu0 0.0
    %369 = vmatprep.subr.mxu0 0.0
    %370 = vmatpush1.msra.mxu0 0.0
    %371 = vmatprep.subr.mxu0 0.0
    %372 = vmatpush1.msra.mxu0 0.0
    %373 = vmatprep.subr.mxu0 0.0
    %374 = vmatpush1.msra.mxu0 0.0
    %375 = vmatprep.subr.mxu0 0.0
    %376 = vmatpush1.msra.mxu0 0.0
    %377 = vmatprep.subr.mxu0 0.0
    %378 = vmatpush1.msra.mxu0 0.0
    %379 = vmatprep.subr.mxu0 0.0
    %380 = vmatpush1.msra.mxu0 0.0
    %381 = vmatprep.subr.mxu0 0.0
    %382 = vmatpush1.msra.mxu0 0.0
    %383 = vmatprep.subr.mxu0 0.0
    %384 = vmatpush1.msra.mxu0 0.0
    %385 = vmatprep.subr.mxu0 0.0
    %386 = vmatpush1.msra.mxu0 0.0
    %387 = vmatprep.subr.mxu0 0.0
    %388 = vmatpush1.msra.mxu0 0.0
    %389 = vmatprep.subr.mxu0 0.0
    %390 = vmatpush1.msra.mxu0 0.0
    %391 = vmatprep.subr.mxu0 0.0
    %392 = vmatpush1.msra.mxu0 0.0
    %393 = vmatprep.subr.mxu0 0.0
    %394 = vmatpush1.msra.mxu0 0.0
    %395 = vmatprep.subr.mxu0 0.0
    %v396 = vand.u32 %v100, 4294901760
    %397 = vmatpush1.msra.mxu0 %v396
    %398 = vmatprep.subr.mxu0 0.0
    %v399 = vand.u32 %v99, 4294901760
    %400 = vmatpush1.msra.mxu0 %v399
    %401 = vmatprep.subr.mxu0 0.0
    %402 = vmatpush2.msra.mxu0 0.0
    %403 = vmatprep.subr.mxu0 0.0
    %404 = vmatpush2.msra.mxu0 0.0
    %405 = vmatprep.subr.mxu0 0.0
    %406 = vmatpush2.msra.mxu0 0.0
    %407 = vmatprep.subr.mxu0 0.0
    %408 = vmatpush2.msra.mxu0 0.0
    %409 = vmatprep.subr.mxu0 0.0
    %410 = vmatpush2.msra.mxu0 0.0
    %411 = vmatprep.subr.mxu0 0.0
    %412 = vmatpush2.msra.mxu0 0.0
    %413 = vmatprep.subr.mxu0 0.0
    %414 = vmatpush2.msra.mxu0 0.0
    %415 = vmatprep.subr.mxu0 0.0
    %416 = vmatpush2.msra.mxu0 0.0
    %417 = vmatprep.subr.mxu0 0.0
    %418 = vmatpush2.msra.mxu0 0.0
    %419 = vmatprep.subr.mxu0 0.0
    %420 = vmatpush2.msra.mxu0 0.0
    %421 = vmatprep.subr.mxu0 0.0
    %422 = vmatpush2.msra.mxu0 0.0
    %423 = vmatprep.subr.mxu0 0.0
    %424 = vmatpush2.msra.mxu0 0.0
    %425 = vmatprep.subr.mxu0 0.0
    %426 = vmatpush2.msra.mxu0 0.0
    %427 = vmatprep.subr.mxu0 0.0
    %428 = vmatpush2.msra.mxu0 0.0
    %429 = vmatprep.subr.mxu0 0.0
    %430 = vmatpush2.msra.mxu0 0.0
    %431 = vmatprep.subr.mxu0 0.0
    %432 = vmatpush2.msra.mxu0 0.0
    %433 = vmatprep.mubr.f32.mxu0 0.0
    %v434 = vand.u32 %v105, 4294901760
    %v435 = vsub.f32 %v105, %v434
    %v436 = vand.u32 %v435, 4294901760
    %437 = vmatmul.mubr.f32.gmra.mxu0 %v436
    %v438 = vpop.f32.mrf.mxu0
    %v439 = vadd.f32 %v357, %v438
    %v440 = vpop.f32.mrf.mxu0
    %441 = vmatprep.mubr.f32.mxu0 0.0
    %v442 = vand.u32 %v108, 4294901760
    %v443 = vsub.f32 %v108, %v442
    %v444 = vand.u32 %v443, 4294901760
    %445 = vmatmul.mubr.f32.gmra.mxu0 %v444
    %v446 = vpop.f32.mrf.mxu0
    %v447 = vadd.f32 %v364, %v446
    %v448 = vpop.f32.mrf.mxu0
    %449 = vdwg.mxu0
    %450 = vmatprep.subr.mxu0 0.0
    %451 = vmatpush1.msra.mxu0 0.0
    %452 = vmatprep.subr.mxu0 0.0
    %453 = vmatpush1.msra.mxu0 0.0
    %454 = vmatprep.subr.mxu0 0.0
    %455 = vmatpush1.msra.mxu0 0.0
    %456 = vmatprep.subr.mxu0 0.0
    %457 = vmatpush1.msra.mxu0 0.0
    %458 = vmatprep.subr.mxu0 0.0
    %459 = vmatpush1.msra.mxu0 0.0
    %460 = vmatprep.subr.mxu0 0.0
    %461 = vmatpush1.msra.mxu0 0.0
    %462 = vmatprep.subr.mxu0 0.0
    %463 = vmatpush1.msra.mxu0 0.0
    %464 = vmatprep.subr.mxu0 0.0
    %465 = vmatpush1.msra.mxu0 0.0
    %466 = vmatprep.subr.mxu0 0.0
    %467 = vmatpush1.msra.mxu0 0.0
    %468 = vmatprep.subr.mxu0 0.0
    %469 = vmatpush1.msra.mxu0 0.0
    %470 = vmatprep.subr.mxu0 0.0
    %471 = vmatpush1.msra.mxu0 0.0
    %472 = vmatprep.subr.mxu0 0.0
    %473 = vmatpush1.msra.mxu0 0.0
    %474 = vmatprep.subr.mxu0 0.0
    %475 = vmatpush1.msra.mxu0 0.0
    %476 = vmatprep.subr.mxu0 0.0
    %477 = vmatpush1.msra.mxu0 0.0
    %478 = vmatprep.subr.mxu0 0.0
    %v479 = vand.u32 %v100, 4294901760
    %v480 = vsub.f32 %v100, %v479
    %v481 = vand.u32 %v480, 4294901760
    %482 = vmatpush1.msra.mxu0 %v481
    %483 = vmatprep.subr.mxu0 0.0
    %v484 = vand.u32 %v99, 4294901760
    %v485 = vsub.f32 %v99, %v484
    %v486 = vand.u32 %v485, 4294901760
    %487 = vmatpush1.msra.mxu0 %v486
    %488 = vmatprep.subr.mxu0 0.0
    %489 = vmatpush2.msra.mxu0 0.0
    %490 = vmatprep.subr.mxu0 0.0
    %491 = vmatpush2.msra.mxu0 0.0
    %492 = vmatprep.subr.mxu0 0.0
    %493 = vmatpush2.msra.mxu0 0.0
    %494 = vmatprep.subr.mxu0 0.0
    %495 = vmatpush2.msra.mxu0 0.0
    %496 = vmatprep.subr.mxu0 0.0
    %497 = vmatpush2.msra.mxu0 0.0
    %498 = vmatprep.subr.mxu0 0.0
    %499 = vmatpush2.msra.mxu0 0.0
    %500 = vmatprep.subr.mxu0 0.0
    %501 = vmatpush2.msra.mxu0 0.0
    %502 = vmatprep.subr.mxu0 0.0
    %503 = vmatpush2.msra.mxu0 0.0
    %504 = vmatprep.subr.mxu0 0.0
    %505 = vmatpush2.msra.mxu0 0.0
    %506 = vmatprep.subr.mxu0 0.0
    %507 = vmatpush2.msra.mxu0 0.0
    %508 = vmatprep.subr.mxu0 0.0
    %509 = vmatpush2.msra.mxu0 0.0
    %510 = vmatprep.subr.mxu0 0.0
    %511 = vmatpush2.msra.mxu0 0.0
    %512 = vmatprep.subr.mxu0 0.0
    %513 = vmatpush2.msra.mxu0 0.0
    %514 = vmatprep.subr.mxu0 0.0
    %515 = vmatpush2.msra.mxu0 0.0
    %516 = vmatprep.subr.mxu0 0.0
    %517 = vmatpush2.msra.mxu0 0.0
    %518 = vmatprep.subr.mxu0 0.0
    %519 = vmatpush2.msra.mxu0 0.0
    %520 = vmatprep.mubr.f32.mxu0 0.0
    %v521 = vand.u32 %v105, 4294901760
    %522 = vmatmul.mubr.f32.gmra.mxu0 %v521
    %v523 = vpop.f32.mrf.mxu0
    %v524 = vadd.f32 %v439, %v523
    %v525 = vpop.f32.mrf.mxu0
    %526 = vmatprep.mubr.f32.mxu0 0.0
    %v527 = vand.u32 %v108, 4294901760
    %528 = vmatmul.mubr.f32.gmra.mxu0 %v527
    %v529 = vpop.f32.mrf.mxu0
    %v530 = vadd.f32 %v447, %v529
    %v531 = vpop.f32.mrf.mxu0
    %532 = vdwg.mxu0
    %533 = vmatprep.subr.mxu0 0.0
    %534 = vmatpush1.msra.mxu0 0.0
    %535 = vmatprep.subr.mxu0 0.0
    %536 = vmatpush1.msra.mxu0 0.0
    %537 = vmatprep.subr.mxu0 0.0
    %538 = vmatpush1.msra.mxu0 0.0
    %539 = vmatprep.subr.mxu0 0.0
    %540 = vmatpush1.msra.mxu0 0.0
    %541 = vmatprep.subr.mxu0 0.0
    %542 = vmatpush1.msra.mxu0 0.0
    %543 = vmatprep.subr.mxu0 0.0
    %544 = vmatpush1.msra.mxu0 0.0
    %545 = vmatprep.subr.mxu0 0.0
    %546 = vmatpush1.msra.mxu0 0.0
    %547 = vmatprep.subr.mxu0 0.0
    %548 = vmatpush1.msra.mxu0 0.0
    %549 = vmatprep.subr.mxu0 0.0
    %550 = vmatpush1.msra.mxu0 0.0
    %551 = vmatprep.subr.mxu0 0.0
    %552 = vmatpush1.msra.mxu0 0.0
    %553 = vmatprep.subr.mxu0 0.0
    %554 = vmatpush1.msra.mxu0 0.0
    %555 = vmatprep.subr.mxu0 0.0
    %556 = vmatpush1.msra.mxu0 0.0
    %557 = vmatprep.subr.mxu0 0.0
    %558 = vmatpush1.msra.mxu0 0.0
    %559 = vmatprep.subr.mxu0 0.0
    %560 = vmatpush1.msra.mxu0 0.0
    %561 = vmatprep.subr.mxu0 0.0
    %v562 = vand.u32 %v100, 4294901760
    %563 = vmatpush1.msra.mxu0 %v562
    %564 = vmatprep.subr.mxu0 0.0
    %v565 = vand.u32 %v99, 4294901760
    %566 = vmatpush1.msra.mxu0 %v565
    %567 = vmatprep.subr.mxu0 0.0
    %568 = vmatpush2.msra.mxu0 0.0
    %569 = vmatprep.subr.mxu0 0.0
    %570 = vmatpush2.msra.mxu0 0.0
    %571 = vmatprep.subr.mxu0 0.0
    %572 = vmatpush2.msra.mxu0 0.0
    %573 = vmatprep.subr.mxu0 0.0
    %574 = vmatpush2.msra.mxu0 0.0
    %575 = vmatprep.subr.mxu0 0.0
    %576 = vmatpush2.msra.mxu0 0.0
    %577 = vmatprep.subr.mxu0 0.0
    %578 = vmatpush2.msra.mxu0 0.0
    %579 = vmatprep.subr.mxu0 0.0
    %580 = vmatpush2.msra.mxu0 0.0
    %581 = vmatprep.subr.mxu0 0.0
    %582 = vmatpush2.msra.mxu0 0.0
    %583 = vmatprep.subr.mxu0 0.0
    %584 = vmatpush2.msra.mxu0 0.0
    %585 = vmatprep.subr.mxu0 0.0
    %586 = vmatpush2.msra.mxu0 0.0
    %587 = vmatprep.subr.mxu0 0.0
    %588 = vmatpush2.msra.mxu0 0.0
    %589 = vmatprep.subr.mxu0 0.0
    %590 = vmatpush2.msra.mxu0 0.0
    %591 = vmatprep.subr.mxu0 0.0
    %592 = vmatpush2.msra.mxu0 0.0
    %593 = vmatprep.subr.mxu0 0.0
    %594 = vmatpush2.msra.mxu0 0.0
    %595 = vmatprep.subr.mxu0 0.0
    %596 = vmatpush2.msra.mxu0 0.0
    %597 = vmatprep.subr.mxu0 0.0
    %598 = vmatpush2.msra.mxu0 0.0
    %599 = vmatprep.mubr.f32.mxu0 0.0
    %v600 = vand.u32 %v105, 4294901760
    %601 = vmatmul.mubr.f32.gmra.mxu0 %v600
    %v602 = vpop.f32.mrf.mxu0
    %v603 = vadd.f32 %v524, %v602
    %v604 = vpop.f32.mrf.mxu0
    %605 = vmatprep.mubr.f32.mxu0 0.0
    %v606 = vand.u32 %v108, 4294901760
    %607 = vmatmul.mubr.f32.gmra.mxu0 %v606
    %v608 = vpop.f32.mrf.mxu0
    %v609 = vadd.f32 %v530, %v608
    %v610 = vpop.f32.mrf.mxu0
    %611 = vdwg.mxu0
    %v612 = vld [vmem:[#allocation7] sm:$0xff]
    %v613 = vld [vmem:[#allocation7 + $0x8] sm:$0xff]
    %v614 = vld [vmem:[#allocation7 + $0x10] sm:$0xff]
    %v615 = vld [vmem:[#allocation7 + $0x18] sm:$0xff]
    %v617 = vsel %vm83, %v603, 0
    %v620 = vsel %vm83, %v609, 0
    %622 = vmatprep.subr.mxu0 0.0
    %623 = vmatpush1.msra.mxu0 0.0
    %624 = vmatprep.subr.mxu0 0.0
    %625 = vmatpush1.msra.mxu0 0.0
    %626 = vmatprep.subr.mxu0 0.0
    %627 = vmatpush1.msra.mxu0 0.0
    %628 = vmatprep.subr.mxu0 0.0
    %629 = vmatpush1.msra.mxu0 0.0
    %630 = vmatprep.subr.mxu0 0.0
    %631 = vmatpush1.msra.mxu0 0.0
    %632 = vmatprep.subr.mxu0 0.0
    %633 = vmatpush1.msra.mxu0 0.0
    %634 = vmatprep.subr.mxu0 0.0
    %635 = vmatpush1.msra.mxu0 0.0
    %636 = vmatprep.subr.mxu0 0.0
    %637 = vmatpush1.msra.mxu0 0.0
    %638 = vmatprep.subr.mxu0 0.0
    %639 = vmatpush1.msra.mxu0 0.0
    %640 = vmatprep.subr.mxu0 0.0
    %641 = vmatpush1.msra.mxu0 0.0
    %642 = vmatprep.subr.mxu0 0.0
    %643 = vmatpush1.msra.mxu0 0.0
    %644 = vmatprep.subr.mxu0 0.0
    %645 = vmatpush1.msra.mxu0 0.0
    %646 = vmatprep.subr.mxu0 0.0
    %v647 = vand.u32 %v615, 4294901760
    %648 = vmatpush1.msra.mxu0 %v647
    %649 = vmatprep.subr.mxu0 0.0
    %v650 = vand.u32 %v614, 4294901760
    %651 = vmatpush1.msra.mxu0 %v650
    %652 = vmatprep.subr.mxu0 0.0
    %v653 = vand.u32 %v613, 4294901760
    %654 = vmatpush1.msra.mxu0 %v653
    %655 = vmatprep.subr.mxu0 0.0
    %v656 = vand.u32 %v612, 4294901760
    %657 = vmatpush1.msra.mxu0 %v656
    %658 = vmatprep.subr.mxu0 0.0
    %659 = vmatpush2.msra.mxu0 0.0
    %660 = vmatprep.subr.mxu0 0.0
    %661 = vmatpush2.msra.mxu0 0.0
    %662 = vmatprep.subr.mxu0 0.0
    %663 = vmatpush2.msra.mxu0 0.0
    %664 = vmatprep.subr.mxu0 0.0
    %665 = vmatpush2.msra.mxu0 0.0
    %666 = vmatprep.subr.mxu0 0.0
    %667 = vmatpush2.msra.mxu0 0.0
    %668 = vmatprep.subr.mxu0 0.0
    %669 = vmatpush2.msra.mxu0 0.0
    %670 = vmatprep.subr.mxu0 0.0
    %671 = vmatpush2.msra.mxu0 0.0
    %672 = vmatprep.subr.mxu0 0.0
    %673 = vmatpush2.msra.mxu0 0.0
    %674 = vmatprep.subr.mxu0 0.0
    %675 = vmatpush2.msra.mxu0 0.0
    %676 = vmatprep.subr.mxu0 0.0
    %677 = vmatpush2.msra.mxu0 0.0
    %678 = vmatprep.subr.mxu0 0.0
    %679 = vmatpush2.msra.mxu0 0.0
    %680 = vmatprep.subr.mxu0 0.0
    %681 = vmatpush2.msra.mxu0 0.0
    %682 = vmatprep.subr.mxu0 0.0
    %683 = vmatpush2.msra.mxu0 0.0
    %684 = vmatprep.subr.mxu0 0.0
    %685 = vmatpush2.msra.mxu0 0.0
    %686 = vmatprep.subr.mxu0 0.0
    %687 = vmatpush2.msra.mxu0 0.0
    %688 = vmatprep.subr.mxu0 0.0
    %689 = vmatpush2.msra.mxu0 0.0
    %690 = vmatprep.mubr.f32.mxu0 0.0
    %v691 = vand.u32 %v617, 4294901760
    %v692 = vsub.f32 %v617, %v691
    %v693 = vand.u32 %v692, 4294901760
    %v694 = vsub.f32 %v692, %v693
    %v695 = vand.u32 %v694, 4294901760
    %696 = vmatmul.mubr.f32.gmra.mxu0 %v695
    %v697 = vpop.f32.mrf.mxu0
    %v698 = vadd.f32 0.0, %v697
    %v699 = vpop.f32.mrf.mxu0
    %700 = vmatprep.mubr.f32.mxu0 0.0
    %v701 = vand.u32 %v620, 4294901760
    %v702 = vsub.f32 %v620, %v701
    %v703 = vand.u32 %v702, 4294901760
    %v704 = vsub.f32 %v702, %v703
    %v705 = vand.u32 %v704, 4294901760
    %706 = vmatmul.mubr.f32.gmra.mxu0 %v705
    %v707 = vpop.f32.mrf.mxu0
    %v708 = vadd.f32 0.0, %v707
    %v709 = vpop.f32.mrf.mxu0
    %710 = vdwg.mxu0
    %711 = vmatprep.subr.mxu0 0.0
    %712 = vmatpush1.msra.mxu0 0.0
    %713 = vmatprep.subr.mxu0 0.0
    %714 = vmatpush1.msra.mxu0 0.0
    %715 = vmatprep.subr.mxu0 0.0
    %716 = vmatpush1.msra.mxu0 0.0
    %717 = vmatprep.subr.mxu0 0.0
    %718 = vmatpush1.msra.mxu0 0.0
    %719 = vmatprep.subr.mxu0 0.0
    %720 = vmatpush1.msra.mxu0 0.0
    %721 = vmatprep.subr.mxu0 0.0
    %722 = vmatpush1.msra.mxu0 0.0
    %723 = vmatprep.subr.mxu0 0.0
    %724 = vmatpush1.msra.mxu0 0.0
    %725 = vmatprep.subr.mxu0 0.0
    %726 = vmatpush1.msra.mxu0 0.0
    %727 = vmatprep.subr.mxu0 0.0
    %728 = vmatpush1.msra.mxu0 0.0
    %729 = vmatprep.subr.mxu0 0.0
    %730 = vmatpush1.msra.mxu0 0.0
    %731 = vmatprep.subr.mxu0 0.0
    %732 = vmatpush1.msra.mxu0 0.0
    %733 = vmatprep.subr.mxu0 0.0
    %734 = vmatpush1.msra.mxu0 0.0
    %735 = vmatprep.subr.mxu0 0.0
    %v736 = vand.u32 %v615, 4294901760
    %v737 = vsub.f32 %v615, %v736
    %v738 = vand.u32 %v737, 4294901760
    %v739 = vsub.f32 %v737, %v738
    %v740 = vand.u32 %v739, 4294901760
    %741 = vmatpush1.msra.mxu0 %v740
    %742 = vmatprep.subr.mxu0 0.0
    %v743 = vand.u32 %v614, 4294901760
    %v744 = vsub.f32 %v614, %v743
    %v745 = vand.u32 %v744, 4294901760
    %v746 = vsub.f32 %v744, %v745
    %v747 = vand.u32 %v746, 4294901760
    %748 = vmatpush1.msra.mxu0 %v747
    %749 = vmatprep.subr.mxu0 0.0
    %v750 = vand.u32 %v613, 4294901760
    %v751 = vsub.f32 %v613, %v750
    %v752 = vand.u32 %v751, 4294901760
    %v753 = vsub.f32 %v751, %v752
    %v754 = vand.u32 %v753, 4294901760
    %755 = vmatpush1.msra.mxu0 %v754
    %756 = vmatprep.subr.mxu0 0.0
    %v757 = vand.u32 %v612, 4294901760
    %v758 = vsub.f32 %v612, %v757
    %v759 = vand.u32 %v758, 4294901760
    %v760 = vsub.f32 %v758, %v759
    %v761 = vand.u32 %v760, 4294901760
    %762 = vmatpush1.msra.mxu0 %v761
    %763 = vmatprep.subr.mxu0 0.0
    %764 = vmatpush2.msra.mxu0 0.0
    %765 = vmatprep.subr.mxu0 0.0
    %766 = vmatpush2.msra.mxu0 0.0
    %767 = vmatprep.subr.mxu0 0.0
    %768 = vmatpush2.msra.mxu0 0.0
    %769 = vmatprep.subr.mxu0 0.0
    %770 = vmatpush2.msra.mxu0 0.0
    %771 = vmatprep.subr.mxu0 0.0
    %772 = vmatpush2.msra.mxu0 0.0
    %773 = vmatprep.subr.mxu0 0.0
    %774 = vmatpush2.msra.mxu0 0.0
    %775 = vmatprep.subr.mxu0 0.0
    %776 = vmatpush2.msra.mxu0 0.0
    %777 = vmatprep.subr.mxu0 0.0
    %778 = vmatpush2.msra.mxu0 0.0
    %779 = vmatprep.subr.mxu0 0.0
    %780 = vmatpush2.msra.mxu0 0.0
    %781 = vmatprep.subr.mxu0 0.0
    %782 = vmatpush2.msra.mxu0 0.0
    %783 = vmatprep.subr.mxu0 0.0
    %784 = vmatpush2.msra.mxu0 0.0
    %785 = vmatprep.subr.mxu0 0.0
    %786 = vmatpush2.msra.mxu0 0.0
    %787 = vmatprep.subr.mxu0 0.0
    %788 = vmatpush2.msra.mxu0 0.0
    %789 = vmatprep.subr.mxu0 0.0
    %790 = vmatpush2.msra.mxu0 0.0
    %791 = vmatprep.subr.mxu0 0.0
    %792 = vmatpush2.msra.mxu0 0.0
    %793 = vmatprep.subr.mxu0 0.0
    %794 = vmatpush2.msra.mxu0 0.0
    %795 = vmatprep.mubr.f32.mxu0 0.0
    %v796 = vand.u32 %v617, 4294901760
    %797 = vmatmul.mubr.f32.gmra.mxu0 %v796
    %v798 = vpop.f32.mrf.mxu0
    %v799 = vadd.f32 %v698, %v798
    %v800 = vpop.f32.mrf.mxu0
    %801 = vmatprep.mubr.f32.mxu0 0.0
    %v802 = vand.u32 %v620, 4294901760
    %803 = vmatmul.mubr.f32.gmra.mxu0 %v802
    %v804 = vpop.f32.mrf.mxu0
    %v805 = vadd.f32 %v708, %v804
    %v806 = vpop.f32.mrf.mxu0
    %807 = vdwg.mxu0
    %808 = vmatprep.subr.mxu0 0.0
    %809 = vmatpush1.msra.mxu0 0.0
    %810 = vmatprep.subr.mxu0 0.0
    %811 = vmatpush1.msra.mxu0 0.0
    %812 = vmatprep.subr.mxu0 0.0
    %813 = vmatpush1.msra.mxu0 0.0
    %814 = vmatprep.subr.mxu0 0.0
    %815 = vmatpush1.msra.mxu0 0.0
    %816 = vmatprep.subr.mxu0 0.0
    %817 = vmatpush1.msra.mxu0 0.0
    %818 = vmatprep.subr.mxu0 0.0
    %819 = vmatpush1.msra.mxu0 0.0
    %820 = vmatprep.subr.mxu0 0.0
    %821 = vmatpush1.msra.mxu0 0.0
    %822 = vmatprep.subr.mxu0 0.0
    %823 = vmatpush1.msra.mxu0 0.0
    %824 = vmatprep.subr.mxu0 0.0
    %825 = vmatpush1.msra.mxu0 0.0
    %826 = vmatprep.subr.mxu0 0.0
    %827 = vmatpush1.msra.mxu0 0.0
    %828 = vmatprep.subr.mxu0 0.0
    %829 = vmatpush1.msra.mxu0 0.0
    %830 = vmatprep.subr.mxu0 0.0
    %831 = vmatpush1.msra.mxu0 0.0
    %832 = vmatprep.subr.mxu0 0.0
    %v833 = vand.u32 %v615, 4294901760
    %v834 = vsub.f32 %v615, %v833
    %835 = vmatpush1.msra.mxu0 %v834
    %836 = vmatprep.subr.mxu0 0.0
    %v837 = vand.u32 %v614, 4294901760
    %v838 = vsub.f32 %v614, %v837
    %839 = vmatpush1.msra.mxu0 %v838
    %840 = vmatprep.subr.mxu0 0.0
    %v841 = vand.u32 %v613, 4294901760
    %v842 = vsub.f32 %v613, %v841
    %843 = vmatpush1.msra.mxu0 %v842
    %844 = vmatprep.subr.mxu0 0.0
    %v845 = vand.u32 %v612, 4294901760
    %v846 = vsub.f32 %v612, %v845
    %847 = vmatpush1.msra.mxu0 %v846
    %848 = vmatprep.subr.mxu0 0.0
    %849 = vmatpush2.msra.mxu0 0.0
    %850 = vmatprep.subr.mxu0 0.0
    %851 = vmatpush2.msra.mxu0 0.0
    %852 = vmatprep.subr.mxu0 0.0
    %853 = vmatpush2.msra.mxu0 0.0
    %854 = vmatprep.subr.mxu0 0.0
    %855 = vmatpush2.msra.mxu0 0.0
    %856 = vmatprep.subr.mxu0 0.0
    %857 = vmatpush2.msra.mxu0 0.0
    %858 = vmatprep.subr.mxu0 0.0
    %859 = vmatpush2.msra.mxu0 0.0
    %860 = vmatprep.subr.mxu0 0.0
    %861 = vmatpush2.msra.mxu0 0.0
    %862 = vmatprep.subr.mxu0 0.0
    %863 = vmatpush2.msra.mxu0 0.0
    %864 = vmatprep.subr.mxu0 0.0
    %865 = vmatpush2.msra.mxu0 0.0
    %866 = vmatprep.subr.mxu0 0.0
    %867 = vmatpush2.msra.mxu0 0.0
    %868 = vmatprep.subr.mxu0 0.0
    %869 = vmatpush2.msra.mxu0 0.0
    %870 = vmatprep.subr.mxu0 0.0
    %871 = vmatpush2.msra.mxu0 0.0
    %872 = vmatprep.subr.mxu0 0.0
    %873 = vmatpush2.msra.mxu0 0.0
    %874 = vmatprep.subr.mxu0 0.0
    %875 = vmatpush2.msra.mxu0 0.0
    %876 = vmatprep.subr.mxu0 0.0
    %877 = vmatpush2.msra.mxu0 0.0
    %878 = vmatprep.subr.mxu0 0.0
    %879 = vmatpush2.msra.mxu0 0.0
    %880 = vmatprep.mubr.f32.mxu0 0.0
    %v881 = vand.u32 %v617, 4294901760
    %v882 = vsub.f32 %v617, %v881
    %883 = vmatmul.mubr.f32.gmra.mxu0 %v882
    %v884 = vpop.f32.mrf.mxu0
    %v885 = vadd.f32 %v799, %v884
    %v886 = vpop.f32.mrf.mxu0
    %887 = vmatprep.mubr.f32.mxu0 0.0
    %v888 = vand.u32 %v620, 4294901760
    %v889 = vsub.f32 %v620, %v888
    %890 = vmatmul.mubr.f32.gmra.mxu0 %v889
    %v891 = vpop.f32.mrf.mxu0
    %v892 = vadd.f32 %v805, %v891
    %v893 = vpop.f32.mrf.mxu0
    %894 = vdwg.mxu0
    %895 = vmatprep.subr.mxu0 0.0
    %896 = vmatpush1.msra.mxu0 0.0
    %897 = vmatprep.subr.mxu0 0.0
    %898 = vmatpush1.msra.mxu0 0.0
    %899 = vmatprep.subr.mxu0 0.0
    %900 = vmatpush1.msra.mxu0 0.0
    %901 = vmatprep.subr.mxu0 0.0
    %902 = vmatpush1.msra.mxu0 0.0
    %903 = vmatprep.subr.mxu0 0.0
    %904 = vmatpush1.msra.mxu0 0.0
    %905 = vmatprep.subr.mxu0 0.0
    %906 = vmatpush1.msra.mxu0 0.0
    %907 = vmatprep.subr.mxu0 0.0
    %908 = vmatpush1.msra.mxu0 0.0
    %909 = vmatprep.subr.mxu0 0.0
    %910 = vmatpush1.msra.mxu0 0.0
    %911 = vmatprep.subr.mxu0 0.0
    %912 = vmatpush1.msra.mxu0 0.0
    %913 = vmatprep.subr.mxu0 0.0
    %914 = vmatpush1.msra.mxu0 0.0
    %915 = vmatprep.subr.mxu0 0.0
    %916 = vmatpush1.msra.mxu0 0.0
    %917 = vmatprep.subr.mxu0 0.0
    %918 = vmatpush1.msra.mxu0 0.0
    %919 = vmatprep.subr.mxu0 0.0
    %v920 = vand.u32 %v615, 4294901760
    %921 = vmatpush1.msra.mxu0 %v920
    %922 = vmatprep.subr.mxu0 0.0
    %v923 = vand.u32 %v614, 4294901760
    %924 = vmatpush1.msra.mxu0 %v923
    %925 = vmatprep.subr.mxu0 0.0
    %v926 = vand.u32 %v613, 4294901760
    %927 = vmatpush1.msra.mxu0 %v926
    %928 = vmatprep.subr.mxu0 0.0
    %v929 = vand.u32 %v612, 4294901760
    %930 = vmatpush1.msra.mxu0 %v929
    %931 = vmatprep.subr.mxu0 0.0
    %932 = vmatpush2.msra.mxu0 0.0
    %933 = vmatprep.subr.mxu0 0.0
    %934 = vmatpush2.msra.mxu0 0.0
    %935 = vmatprep.subr.mxu0 0.0
    %936 = vmatpush2.msra.mxu0 0.0
    %937 = vmatprep.subr.mxu0 0.0
    %938 = vmatpush2.msra.mxu0 0.0
    %939 = vmatprep.subr.mxu0 0.0
    %940 = vmatpush2.msra.mxu0 0.0
    %941 = vmatprep.subr.mxu0 0.0
    %942 = vmatpush2.msra.mxu0 0.0
    %943 = vmatprep.subr.mxu0 0.0
    %944 = vmatpush2.msra.mxu0 0.0
    %945 = vmatprep.subr.mxu0 0.0
    %946 = vmatpush2.msra.mxu0 0.0
    %947 = vmatprep.subr.mxu0 0.0
    %948 = vmatpush2.msra.mxu0 0.0
    %949 = vmatprep.subr.mxu0 0.0
    %950 = vmatpush2.msra.mxu0 0.0
    %951 = vmatprep.subr.mxu0 0.0
    %952 = vmatpush2.msra.mxu0 0.0
    %953 = vmatprep.subr.mxu0 0.0
    %954 = vmatpush2.msra.mxu0 0.0
    %955 = vmatprep.subr.mxu0 0.0
    %956 = vmatpush2.msra.mxu0 0.0
    %957 = vmatprep.subr.mxu0 0.0
    %958 = vmatpush2.msra.mxu0 0.0
    %959 = vmatprep.subr.mxu0 0.0
    %960 = vmatpush2.msra.mxu0 0.0
    %961 = vmatprep.subr.mxu0 0.0
    %962 = vmatpush2.msra.mxu0 0.0
    %963 = vmatprep.mubr.f32.mxu0 0.0
    %v964 = vand.u32 %v617, 4294901760
    %v965 = vsub.f32 %v617, %v964
    %v966 = vand.u32 %v965, 4294901760
    %967 = vmatmul.mubr.f32.gmra.mxu0 %v966
    %v968 = vpop.f32.mrf.mxu0
    %v969 = vadd.f32 %v885, %v968
    %v970 = vpop.f32.mrf.mxu0
    %971 = vmatprep.mubr.f32.mxu0 0.0
    %v972 = vand.u32 %v620, 4294901760
    %v973 = vsub.f32 %v620, %v972
    %v974 = vand.u32 %v973, 4294901760
    %975 = vmatmul.mubr.f32.gmra.mxu0 %v974
    %v976 = vpop.f32.mrf.mxu0
    %v977 = vadd.f32 %v892, %v976
    %v978 = vpop.f32.mrf.mxu0
    %979 = vdwg.mxu0
    %980 = vmatprep.subr.mxu0 0.0
    %981 = vmatpush1.msra.mxu0 0.0
    %982 = vmatprep.subr.mxu0 0.0
    %983 = vmatpush1.msra.mxu0 0.0
    %984 = vmatprep.subr.mxu0 0.0
    %985 = vmatpush1.msra.mxu0 0.0
    %986 = vmatprep.subr.mxu0 0.0
    %987 = vmatpush1.msra.mxu0 0.0
    %988 = vmatprep.subr.mxu0 0.0
    %989 = vmatpush1.msra.mxu0 0.0
    %990 = vmatprep.subr.mxu0 0.0
    %991 = vmatpush1.msra.mxu0 0.0
    %992 = vmatprep.subr.mxu0 0.0
    %993 = vmatpush1.msra.mxu0 0.0
    %994 = vmatprep.subr.mxu0 0.0
    %995 = vmatpush1.msra.mxu0 0.0
    %996 = vmatprep.subr.mxu0 0.0
    %997 = vmatpush1.msra.mxu0 0.0
    %998 = vmatprep.subr.mxu0 0.0
    %999 = vmatpush1.msra.mxu0 0.0
    %1000 = vmatprep.subr.mxu0 0.0
    %1001 = vmatpush1.msra.mxu0 0.0
    %1002 = vmatprep.subr.mxu0 0.0
    %1003 = vmatpush1.msra.mxu0 0.0
    %1004 = vmatprep.subr.mxu0 0.0
    %v1005 = vand.u32 %v615, 4294901760
    %v1006 = vsub.f32 %v615, %v1005
    %v1007 = vand.u32 %v1006, 4294901760
    %1008 = vmatpush1.msra.mxu0 %v1007
    %1009 = vmatprep.subr.mxu0 0.0
    %v1010 = vand.u32 %v614, 4294901760
    %v1011 = vsub.f32 %v614, %v1010
    %v1012 = vand.u32 %v1011, 4294901760
    %1013 = vmatpush1.msra.mxu0 %v1012
    %1014 = vmatprep.subr.mxu0 0.0
    %v1015 = vand.u32 %v613, 4294901760
    %v1016 = vsub.f32 %v613, %v1015
    %v1017 = vand.u32 %v1016, 4294901760
    %1018 = vmatpush1.msra.mxu0 %v1017
    %1019 = vmatprep.subr.mxu0 0.0
    %v1020 = vand.u32 %v612, 4294901760
    %v1021 = vsub.f32 %v612, %v1020
    %v1022 = vand.u32 %v1021, 4294901760
    %1023 = vmatpush1.msra.mxu0 %v1022
    %1024 = vmatprep.subr.mxu0 0.0
    %1025 = vmatpush2.msra.mxu0 0.0
    %1026 = vmatprep.subr.mxu0 0.0
    %1027 = vmatpush2.msra.mxu0 0.0
    %1028 = vmatprep.subr.mxu0 0.0
    %1029 = vmatpush2.msra.mxu0 0.0
    %1030 = vmatprep.subr.mxu0 0.0
    %1031 = vmatpush2.msra.mxu0 0.0
    %1032 = vmatprep.subr.mxu0 0.0
    %1033 = vmatpush2.msra.mxu0 0.0
    %1034 = vmatprep.subr.mxu0 0.0
    %1035 = vmatpush2.msra.mxu0 0.0
    %1036 = vmatprep.subr.mxu0 0.0
    %1037 = vmatpush2.msra.mxu0 0.0
    %1038 = vmatprep.subr.mxu0 0.0
    %1039 = vmatpush2.msra.mxu0 0.0
    %1040 = vmatprep.subr.mxu0 0.0
    %1041 = vmatpush2.msra.mxu0 0.0
    %1042 = vmatprep.subr.mxu0 0.0
    %1043 = vmatpush2.msra.mxu0 0.0
    %1044 = vmatprep.subr.mxu0 0.0
    %1045 = vmatpush2.msra.mxu0 0.0
    %1046 = vmatprep.subr.mxu0 0.0
    %1047 = vmatpush2.msra.mxu0 0.0
    %1048 = vmatprep.subr.mxu0 0.0
    %1049 = vmatpush2.msra.mxu0 0.0
    %1050 = vmatprep.subr.mxu0 0.0
    %1051 = vmatpush2.msra.mxu0 0.0
    %1052 = vmatprep.subr.mxu0 0.0
    %1053 = vmatpush2.msra.mxu0 0.0
    %1054 = vmatprep.subr.mxu0 0.0
    %1055 = vmatpush2.msra.mxu0 0.0
    %1056 = vmatprep.mubr.f32.mxu0 0.0
    %v1057 = vand.u32 %v617, 4294901760
    %1058 = vmatmul.mubr.f32.gmra.mxu0 %v1057
    %v1059 = vpop.f32.mrf.mxu0
    %v1060 = vadd.f32 %v969, %v1059
    %v1061 = vpop.f32.mrf.mxu0
    %1062 = vmatprep.mubr.f32.mxu0 0.0
    %v1063 = vand.u32 %v620, 4294901760
    %1064 = vmatmul.mubr.f32.gmra.mxu0 %v1063
    %v1065 = vpop.f32.mrf.mxu0
    %v1066 = vadd.f32 %v977, %v1065
    %v1067 = vpop.f32.mrf.mxu0
    %1068 = vdwg.mxu0
    %1069 = vmatprep.subr.mxu0 0.0
    %1070 = vmatpush1.msra.mxu0 0.0
    %1071 = vmatprep.subr.mxu0 0.0
    %1072 = vmatpush1.msra.mxu0 0.0
    %1073 = vmatprep.subr.mxu0 0.0
    %1074 = vmatpush1.msra.mxu0 0.0
    %1075 = vmatprep.subr.mxu0 0.0
    %1076 = vmatpush1.msra.mxu0 0.0
    %1077 = vmatprep.subr.mxu0 0.0
    %1078 = vmatpush1.msra.mxu0 0.0
    %1079 = vmatprep.subr.mxu0 0.0
    %1080 = vmatpush1.msra.mxu0 0.0
    %1081 = vmatprep.subr.mxu0 0.0
    %1082 = vmatpush1.msra.mxu0 0.0
    %1083 = vmatprep.subr.mxu0 0.0
    %1084 = vmatpush1.msra.mxu0 0.0
    %1085 = vmatprep.subr.mxu0 0.0
    %1086 = vmatpush1.msra.mxu0 0.0
    %1087 = vmatprep.subr.mxu0 0.0
    %1088 = vmatpush1.msra.mxu0 0.0
    %1089 = vmatprep.subr.mxu0 0.0
    %1090 = vmatpush1.msra.mxu0 0.0
    %1091 = vmatprep.subr.mxu0 0.0
    %1092 = vmatpush1.msra.mxu0 0.0
    %1093 = vmatprep.subr.mxu0 0.0
    %v1094 = vand.u32 %v615, 4294901760
    %1095 = vmatpush1.msra.mxu0 %v1094
    %1096 = vmatprep.subr.mxu0 0.0
    %v1097 = vand.u32 %v614, 4294901760
    %1098 = vmatpush1.msra.mxu0 %v1097
    %1099 = vmatprep.subr.mxu0 0.0
    %v1100 = vand.u32 %v613, 4294901760
    %1101 = vmatpush1.msra.mxu0 %v1100
    %1102 = vmatprep.subr.mxu0 0.0
    %v1103 = vand.u32 %v612, 4294901760
    %1104 = vmatpush1.msra.mxu0 %v1103
    %1105 = vmatprep.subr.mxu0 0.0
    %1106 = vmatpush2.msra.mxu0 0.0
    %1107 = vmatprep.subr.mxu0 0.0
    %1108 = vmatpush2.msra.mxu0 0.0
    %1109 = vmatprep.subr.mxu0 0.0
    %1110 = vmatpush2.msra.mxu0 0.0
    %1111 = vmatprep.subr.mxu0 0.0
    %1112 = vmatpush2.msra.mxu0 0.0
    %1113 = vmatprep.subr.mxu0 0.0
    %1114 = vmatpush2.msra.mxu0 0.0
    %1115 = vmatprep.subr.mxu0 0.0
    %1116 = vmatpush2.msra.mxu0 0.0
    %1117 = vmatprep.subr.mxu0 0.0
    %1118 = vmatpush2.msra.mxu0 0.0
    %1119 = vmatprep.subr.mxu0 0.0
    %1120 = vmatpush2.msra.mxu0 0.0
    %1121 = vmatprep.subr.mxu0 0.0
    %1122 = vmatpush2.msra.mxu0 0.0
    %1123 = vmatprep.subr.mxu0 0.0
    %1124 = vmatpush2.msra.mxu0 0.0
    %1125 = vmatprep.subr.mxu0 0.0
    %1126 = vmatpush2.msra.mxu0 0.0
    %1127 = vmatprep.subr.mxu0 0.0
    %1128 = vmatpush2.msra.mxu0 0.0
    %1129 = vmatprep.subr.mxu0 0.0
    %1130 = vmatpush2.msra.mxu0 0.0
    %1131 = vmatprep.subr.mxu0 0.0
    %1132 = vmatpush2.msra.mxu0 0.0
    %1133 = vmatprep.subr.mxu0 0.0
    %1134 = vmatpush2.msra.mxu0 0.0
    %1135 = vmatprep.subr.mxu0 0.0
    %1136 = vmatpush2.msra.mxu0 0.0
    %1137 = vmatprep.mubr.f32.mxu0 0.0
    %v1138 = vand.u32 %v617, 4294901760
    %1139 = vmatmul.mubr.f32.gmra.mxu0 %v1138
    %v1140 = vpop.f32.mrf.mxu0
    %v1141 = vadd.f32 %v1060, %v1140
    %v1142 = vpop.f32.mrf.mxu0
    %1143 = vmatprep.mubr.f32.mxu0 0.0
    %v1144 = vand.u32 %v620, 4294901760
    %1145 = vmatmul.mubr.f32.gmra.mxu0 %v1144
    %v1146 = vpop.f32.mrf.mxu0
    %v1147 = vadd.f32 %v1066, %v1146
    %v1148 = vpop.f32.mrf.mxu0
    %1149 = vdwg.mxu0
    %v1150 = vadd.f32 %v73, %v1141
    %v1151 = vadd.f32 %v74, %v1147
    %s1152 = scalar_lea.vmem [#allocation5], 16
    %v1153 = vld [vmem:[%s1152] sm:$0xff]
    %v1154 = vld [vmem:[%s1152 + $0x8] sm:$0xff]
    %v1156 = vsel %vm103, %v1153, 0
    %v1159 = vsel %vm103, %v1154, 0
    %1161 = vmatprep.subr.mxu0 0.0
    %1162 = vmatpush1.msra.mxu0 0.0
    %1163 = vmatprep.subr.mxu0 0.0
    %1164 = vmatpush1.msra.mxu0 0.0
    %1165 = vmatprep.subr.mxu0 0.0
    %1166 = vmatpush1.msra.mxu0 0.0
    %1167 = vmatprep.subr.mxu0 0.0
    %1168 = vmatpush1.msra.mxu0 0.0
    %1169 = vmatprep.subr.mxu0 0.0
    %1170 = vmatpush1.msra.mxu0 0.0
    %1171 = vmatprep.subr.mxu0 0.0
    %1172 = vmatpush1.msra.mxu0 0.0
    %1173 = vmatprep.subr.mxu0 0.0
    %1174 = vmatpush1.msra.mxu0 0.0
    %1175 = vmatprep.subr.mxu0 0.0
    %1176 = vmatpush1.msra.mxu0 0.0
    %1177 = vmatprep.subr.mxu0 0.0
    %1178 = vmatpush1.msra.mxu0 0.0
    %1179 = vmatprep.subr.mxu0 0.0
    %1180 = vmatpush1.msra.mxu0 0.0
    %1181 = vmatprep.subr.mxu0 0.0
    %1182 = vmatpush1.msra.mxu0 0.0
    %1183 = vmatprep.subr.mxu0 0.0
    %1184 = vmatpush1.msra.mxu0 0.0
    %1185 = vmatprep.subr.mxu0 0.0
    %1186 = vmatpush1.msra.mxu0 0.0
    %1187 = vmatprep.subr.mxu0 0.0
    %1188 = vmatpush1.msra.mxu0 0.0
    %1189 = vmatprep.subr.mxu0 0.0
    %v1190 = vand.u32 %v100, 4294901760
    %1191 = vmatpush1.msra.mxu0 %v1190
    %1192 = vmatprep.subr.mxu0 0.0
    %v1193 = vand.u32 %v99, 4294901760
    %1194 = vmatpush1.msra.mxu0 %v1193
    %1195 = vmatprep.subr.mxu0 0.0
    %1196 = vmatpush2.msra.mxu0 0.0
    %1197 = vmatprep.subr.mxu0 0.0
    %1198 = vmatpush2.msra.mxu0 0.0
    %1199 = vmatprep.subr.mxu0 0.0
    %1200 = vmatpush2.msra.mxu0 0.0
    %1201 = vmatprep.subr.mxu0 0.0
    %1202 = vmatpush2.msra.mxu0 0.0
    %1203 = vmatprep.subr.mxu0 0.0
    %1204 = vmatpush2.msra.mxu0 0.0
    %1205 = vmatprep.subr.mxu0 0.0
    %1206 = vmatpush2.msra.mxu0 0.0
    %1207 = vmatprep.subr.mxu0 0.0
    %1208 = vmatpush2.msra.mxu0 0.0
    %1209 = vmatprep.subr.mxu0 0.0
    %1210 = vmatpush2.msra.mxu0 0.0
    %1211 = vmatprep.subr.mxu0 0.0
    %1212 = vmatpush2.msra.mxu0 0.0
    %1213 = vmatprep.subr.mxu0 0.0
    %1214 = vmatpush2.msra.mxu0 0.0
    %1215 = vmatprep.subr.mxu0 0.0
    %1216 = vmatpush2.msra.mxu0 0.0
    %1217 = vmatprep.subr.mxu0 0.0
    %1218 = vmatpush2.msra.mxu0 0.0
    %1219 = vmatprep.subr.mxu0 0.0
    %1220 = vmatpush2.msra.mxu0 0.0
    %1221 = vmatprep.subr.mxu0 0.0
    %1222 = vmatpush2.msra.mxu0 0.0
    %1223 = vmatprep.subr.mxu0 0.0
    %1224 = vmatpush2.msra.mxu0 0.0
    %1225 = vmatprep.subr.mxu0 0.0
    %1226 = vmatpush2.msra.mxu0 0.0
    %1227 = vmatprep.mubr.f32.mxu0 0.0
    %v1228 = vand.u32 %v1156, 4294901760
    %v1229 = vsub.f32 %v1156, %v1228
    %v1230 = vand.u32 %v1229, 4294901760
    %v1231 = vsub.f32 %v1229, %v1230
    %v1232 = vand.u32 %v1231, 4294901760
    %1233 = vmatmul.mubr.f32.gmra.mxu0 %v1232
    %v1234 = vpop.f32.mrf.mxu0
    %v1235 = vadd.f32 0.0, %v1234
    %v1236 = vpop.f32.mrf.mxu0
    %1237 = vmatprep.mubr.f32.mxu0 0.0
    %v1238 = vand.u32 %v1159, 4294901760
    %v1239 = vsub.f32 %v1159, %v1238
    %v1240 = vand.u32 %v1239, 4294901760
    %v1241 = vsub.f32 %v1239, %v1240
    %v1242 = vand.u32 %v1241, 4294901760
    %1243 = vmatmul.mubr.f32.gmra.mxu0 %v1242
    %v1244 = vpop.f32.mrf.mxu0
    %v1245 = vadd.f32 0.0, %v1244
    %v1246 = vpop.f32.mrf.mxu0
    %1247 = vdwg.mxu0
    %1248 = vmatprep.subr.mxu0 0.0
    %1249 = vmatpush1.msra.mxu0 0.0
    %1250 = vmatprep.subr.mxu0 0.0
    %1251 = vmatpush1.msra.mxu0 0.0
    %1252 = vmatprep.subr.mxu0 0.0
    %1253 = vmatpush1.msra.mxu0 0.0
    %1254 = vmatprep.subr.mxu0 0.0
    %1255 = vmatpush1.msra.mxu0 0.0
    %1256 = vmatprep.subr.mxu0 0.0
    %1257 = vmatpush1.msra.mxu0 0.0
    %1258 = vmatprep.subr.mxu0 0.0
    %1259 = vmatpush1.msra.mxu0 0.0
    %1260 = vmatprep.subr.mxu0 0.0
    %1261 = vmatpush1.msra.mxu0 0.0
    %1262 = vmatprep.subr.mxu0 0.0
    %1263 = vmatpush1.msra.mxu0 0.0
    %1264 = vmatprep.subr.mxu0 0.0
    %1265 = vmatpush1.msra.mxu0 0.0
    %1266 = vmatprep.subr.mxu0 0.0
    %1267 = vmatpush1.msra.mxu0 0.0
    %1268 = vmatprep.subr.mxu0 0.0
    %1269 = vmatpush1.msra.mxu0 0.0
    %1270 = vmatprep.subr.mxu0 0.0
    %1271 = vmatpush1.msra.mxu0 0.0
    %1272 = vmatprep.subr.mxu0 0.0
    %1273 = vmatpush1.msra.mxu0 0.0
    %1274 = vmatprep.subr.mxu0 0.0
    %1275 = vmatpush1.msra.mxu0 0.0
    %1276 = vmatprep.subr.mxu0 0.0
    %v1277 = vand.u32 %v100, 4294901760
    %v1278 = vsub.f32 %v100, %v1277
    %v1279 = vand.u32 %v1278, 4294901760
    %v1280 = vsub.f32 %v1278, %v1279
    %v1281 = vand.u32 %v1280, 4294901760
    %1282 = vmatpush1.msra.mxu0 %v1281
    %1283 = vmatprep.subr.mxu0 0.0
    %v1284 = vand.u32 %v99, 4294901760
    %v1285 = vsub.f32 %v99, %v1284
    %v1286 = vand.u32 %v1285, 4294901760
    %v1287 = vsub.f32 %v1285, %v1286
    %v1288 = vand.u32 %v1287, 4294901760
    %1289 = vmatpush1.msra.mxu0 %v1288
    %1290 = vmatprep.subr.mxu0 0.0
    %1291 = vmatpush2.msra.mxu0 0.0
    %1292 = vmatprep.subr.mxu0 0.0
    %1293 = vmatpush2.msra.mxu0 0.0
    %1294 = vmatprep.subr.mxu0 0.0
    %1295 = vmatpush2.msra.mxu0 0.0
    %1296 = vmatprep.subr.mxu0 0.0
    %1297 = vmatpush2.msra.mxu0 0.0
    %1298 = vmatprep.subr.mxu0 0.0
    %1299 = vmatpush2.msra.mxu0 0.0
    %1300 = vmatprep.subr.mxu0 0.0
    %1301 = vmatpush2.msra.mxu0 0.0
    %1302 = vmatprep.subr.mxu0 0.0
    %1303 = vmatpush2.msra.mxu0 0.0
    %1304 = vmatprep.subr.mxu0 0.0
    %1305 = vmatpush2.msra.mxu0 0.0
    %1306 = vmatprep.subr.mxu0 0.0
    %1307 = vmatpush2.msra.mxu0 0.0
    %1308 = vmatprep.subr.mxu0 0.0
    %1309 = vmatpush2.msra.mxu0 0.0
    %1310 = vmatprep.subr.mxu0 0.0
    %1311 = vmatpush2.msra.mxu0 0.0
    %1312 = vmatprep.subr.mxu0 0.0
    %1313 = vmatpush2.msra.mxu0 0.0
    %1314 = vmatprep.subr.mxu0 0.0
    %1315 = vmatpush2.msra.mxu0 0.0
    %1316 = vmatprep.subr.mxu0 0.0
    %1317 = vmatpush2.msra.mxu0 0.0
    %1318 = vmatprep.subr.mxu0 0.0
    %1319 = vmatpush2.msra.mxu0 0.0
    %1320 = vmatprep.subr.mxu0 0.0
    %1321 = vmatpush2.msra.mxu0 0.0
    %1322 = vmatprep.mubr.f32.mxu0 0.0
    %v1323 = vand.u32 %v1156, 4294901760
    %1324 = vmatmul.mubr.f32.gmra.mxu0 %v1323
    %v1325 = vpop.f32.mrf.mxu0
    %v1326 = vadd.f32 %v1235, %v1325
    %v1327 = vpop.f32.mrf.mxu0
    %1328 = vmatprep.mubr.f32.mxu0 0.0
    %v1329 = vand.u32 %v1159, 4294901760
    %1330 = vmatmul.mubr.f32.gmra.mxu0 %v1329
    %v1331 = vpop.f32.mrf.mxu0
    %v1332 = vadd.f32 %v1245, %v1331
    %v1333 = vpop.f32.mrf.mxu0
    %1334 = vdwg.mxu0
    %1335 = vmatprep.subr.mxu0 0.0
    %1336 = vmatpush1.msra.mxu0 0.0
    %1337 = vmatprep.subr.mxu0 0.0
    %1338 = vmatpush1.msra.mxu0 0.0
    %1339 = vmatprep.subr.mxu0 0.0
    %1340 = vmatpush1.msra.mxu0 0.0
    %1341 = vmatprep.subr.mxu0 0.0
    %1342 = vmatpush1.msra.mxu0 0.0
    %1343 = vmatprep.subr.mxu0 0.0
    %1344 = vmatpush1.msra.mxu0 0.0
    %1345 = vmatprep.subr.mxu0 0.0
    %1346 = vmatpush1.msra.mxu0 0.0
    %1347 = vmatprep.subr.mxu0 0.0
    %1348 = vmatpush1.msra.mxu0 0.0
    %1349 = vmatprep.subr.mxu0 0.0
    %1350 = vmatpush1.msra.mxu0 0.0
    %1351 = vmatprep.subr.mxu0 0.0
    %1352 = vmatpush1.msra.mxu0 0.0
    %1353 = vmatprep.subr.mxu0 0.0
    %1354 = vmatpush1.msra.mxu0 0.0
    %1355 = vmatprep.subr.mxu0 0.0
    %1356 = vmatpush1.msra.mxu0 0.0
    %1357 = vmatprep.subr.mxu0 0.0
    %1358 = vmatpush1.msra.mxu0 0.0
    %1359 = vmatprep.subr.mxu0 0.0
    %1360 = vmatpush1.msra.mxu0 0.0
    %1361 = vmatprep.subr.mxu0 0.0
    %1362 = vmatpush1.msra.mxu0 0.0
    %1363 = vmatprep.subr.mxu0 0.0
    %v1364 = vand.u32 %v100, 4294901760
    %v1365 = vsub.f32 %v100, %v1364
    %1366 = vmatpush1.msra.mxu0 %v1365
    %1367 = vmatprep.subr.mxu0 0.0
    %v1368 = vand.u32 %v99, 4294901760
    %v1369 = vsub.f32 %v99, %v1368
    %1370 = vmatpush1.msra.mxu0 %v1369
    %1371 = vmatprep.subr.mxu0 0.0
    %1372 = vmatpush2.msra.mxu0 0.0
    %1373 = vmatprep.subr.mxu0 0.0
    %1374 = vmatpush2.msra.mxu0 0.0
    %1375 = vmatprep.subr.mxu0 0.0
    %1376 = vmatpush2.msra.mxu0 0.0
    %1377 = vmatprep.subr.mxu0 0.0
    %1378 = vmatpush2.msra.mxu0 0.0
    %1379 = vmatprep.subr.mxu0 0.0
    %1380 = vmatpush2.msra.mxu0 0.0
    %1381 = vmatprep.subr.mxu0 0.0
    %1382 = vmatpush2.msra.mxu0 0.0
    %1383 = vmatprep.subr.mxu0 0.0
    %1384 = vmatpush2.msra.mxu0 0.0
    %1385 = vmatprep.subr.mxu0 0.0
    %1386 = vmatpush2.msra.mxu0 0.0
    %1387 = vmatprep.subr.mxu0 0.0
    %1388 = vmatpush2.msra.mxu0 0.0
    %1389 = vmatprep.subr.mxu0 0.0
    %1390 = vmatpush2.msra.mxu0 0.0
    %1391 = vmatprep.subr.mxu0 0.0
    %1392 = vmatpush2.msra.mxu0 0.0
    %1393 = vmatprep.subr.mxu0 0.0
    %1394 = vmatpush2.msra.mxu0 0.0
    %1395 = vmatprep.subr.mxu0 0.0
    %1396 = vmatpush2.msra.mxu0 0.0
    %1397 = vmatprep.subr.mxu0 0.0
    %1398 = vmatpush2.msra.mxu0 0.0
    %1399 = vmatprep.subr.mxu0 0.0
    %1400 = vmatpush2.msra.mxu0 0.0
    %1401 = vmatprep.subr.mxu0 0.0
    %1402 = vmatpush2.msra.mxu0 0.0
    %1403 = vmatprep.mubr.f32.mxu0 0.0
    %v1404 = vand.u32 %v1156, 4294901760
    %v1405 = vsub.f32 %v1156, %v1404
    %1406 = vmatmul.mubr.f32.gmra.mxu0 %v1405
    %v1407 = vpop.f32.mrf.mxu0
    %v1408 = vadd.f32 %v1326, %v1407
    %v1409 = vpop.f32.mrf.mxu0
    %1410 = vmatprep.mubr.f32.mxu0 0.0
    %v1411 = vand.u32 %v1159, 4294901760
    %v1412 = vsub.f32 %v1159, %v1411
    %1413 = vmatmul.mubr.f32.gmra.mxu0 %v1412
    %v1414 = vpop.f32.mrf.mxu0
    %v1415 = vadd.f32 %v1332, %v1414
    %v1416 = vpop.f32.mrf.mxu0
    %1417 = vdwg.mxu0
    %1418 = vmatprep.subr.mxu0 0.0
    %1419 = vmatpush1.msra.mxu0 0.0
    %1420 = vmatprep.subr.mxu0 0.0
    %1421 = vmatpush1.msra.mxu0 0.0
    %1422 = vmatprep.subr.mxu0 0.0
    %1423 = vmatpush1.msra.mxu0 0.0
    %1424 = vmatprep.subr.mxu0 0.0
    %1425 = vmatpush1.msra.mxu0 0.0
    %1426 = vmatprep.subr.mxu0 0.0
    %1427 = vmatpush1.msra.mxu0 0.0
    %1428 = vmatprep.subr.mxu0 0.0
    %1429 = vmatpush1.msra.mxu0 0.0
    %1430 = vmatprep.subr.mxu0 0.0
    %1431 = vmatpush1.msra.mxu0 0.0
    %1432 = vmatprep.subr.mxu0 0.0
    %1433 = vmatpush1.msra.mxu0 0.0
    %1434 = vmatprep.subr.mxu0 0.0
    %1435 = vmatpush1.msra.mxu0 0.0
    %1436 = vmatprep.subr.mxu0 0.0
    %1437 = vmatpush1.msra.mxu0 0.0
    %1438 = vmatprep.subr.mxu0 0.0
    %1439 = vmatpush1.msra.mxu0 0.0
    %1440 = vmatprep.subr.mxu0 0.0
    %1441 = vmatpush1.msra.mxu0 0.0
    %1442 = vmatprep.subr.mxu0 0.0
    %1443 = vmatpush1.msra.mxu0 0.0
    %1444 = vmatprep.subr.mxu0 0.0
    %1445 = vmatpush1.msra.mxu0 0.0
    %1446 = vmatprep.subr.mxu0 0.0
    %v1447 = vand.u32 %v100, 4294901760
    %1448 = vmatpush1.msra.mxu0 %v1447
    %1449 = vmatprep.subr.mxu0 0.0
    %v1450 = vand.u32 %v99, 4294901760
    %1451 = vmatpush1.msra.mxu0 %v1450
    %1452 = vmatprep.subr.mxu0 0.0
    %1453 = vmatpush2.msra.mxu0 0.0
    %1454 = vmatprep.subr.mxu0 0.0
    %1455 = vmatpush2.msra.mxu0 0.0
    %1456 = vmatprep.subr.mxu0 0.0
    %1457 = vmatpush2.msra.mxu0 0.0
    %1458 = vmatprep.subr.mxu0 0.0
    %1459 = vmatpush2.msra.mxu0 0.0
    %1460 = vmatprep.subr.mxu0 0.0
    %1461 = vmatpush2.msra.mxu0 0.0
    %1462 = vmatprep.subr.mxu0 0.0
    %1463 = vmatpush2.msra.mxu0 0.0
    %1464 = vmatprep.subr.mxu0 0.0
    %1465 = vmatpush2.msra.mxu0 0.0
    %1466 = vmatprep.subr.mxu0 0.0
    %1467 = vmatpush2.msra.mxu0 0.0
    %1468 = vmatprep.subr.mxu0 0.0
    %1469 = vmatpush2.msra.mxu0 0.0
    %1470 = vmatprep.subr.mxu0 0.0
    %1471 = vmatpush2.msra.mxu0 0.0
    %1472 = vmatprep.subr.mxu0 0.0
    %1473 = vmatpush2.msra.mxu0 0.0
    %1474 = vmatprep.subr.mxu0 0.0
    %1475 = vmatpush2.msra.mxu0 0.0
    %1476 = vmatprep.subr.mxu0 0.0
    %1477 = vmatpush2.msra.mxu0 0.0
    %1478 = vmatprep.subr.mxu0 0.0
    %1479 = vmatpush2.msra.mxu0 0.0
    %1480 = vmatprep.subr.mxu0 0.0
    %1481 = vmatpush2.msra.mxu0 0.0
    %1482 = vmatprep.subr.mxu0 0.0
    %1483 = vmatpush2.msra.mxu0 0.0
    %1484 = vmatprep.mubr.f32.mxu0 0.0
    %v1485 = vand.u32 %v1156, 4294901760
    %v1486 = vsub.f32 %v1156, %v1485
    %v1487 = vand.u32 %v1486, 4294901760
    %1488 = vmatmul.mubr.f32.gmra.mxu0 %v1487
    %v1489 = vpop.f32.mrf.mxu0
    %v1490 = vadd.f32 %v1408, %v1489
    %v1491 = vpop.f32.mrf.mxu0
    %1492 = vmatprep.mubr.f32.mxu0 0.0
    %v1493 = vand.u32 %v1159, 4294901760
    %v1494 = vsub.f32 %v1159, %v1493
    %v1495 = vand.u32 %v1494, 4294901760
    %1496 = vmatmul.mubr.f32.gmra.mxu0 %v1495
    %v1497 = vpop.f32.mrf.mxu0
    %v1498 = vadd.f32 %v1415, %v1497
    %v1499 = vpop.f32.mrf.mxu0
    %1500 = vdwg.mxu0
    %1501 = vmatprep.subr.mxu0 0.0
    %1502 = vmatpush1.msra.mxu0 0.0
    %1503 = vmatprep.subr.mxu0 0.0
    %1504 = vmatpush1.msra.mxu0 0.0
    %1505 = vmatprep.subr.mxu0 0.0
    %1506 = vmatpush1.msra.mxu0 0.0
    %1507 = vmatprep.subr.mxu0 0.0
    %1508 = vmatpush1.msra.mxu0 0.0
    %1509 = vmatprep.subr.mxu0 0.0
    %1510 = vmatpush1.msra.mxu0 0.0
    %1511 = vmatprep.subr.mxu0 0.0
    %1512 = vmatpush1.msra.mxu0 0.0
    %1513 = vmatprep.subr.mxu0 0.0
    %1514 = vmatpush1.msra.mxu0 0.0
    %1515 = vmatprep.subr.mxu0 0.0
    %1516 = vmatpush1.msra.mxu0 0.0
    %1517 = vmatprep.subr.mxu0 0.0
    %1518 = vmatpush1.msra.mxu0 0.0
    %1519 = vmatprep.subr.mxu0 0.0
    %1520 = vmatpush1.msra.mxu0 0.0
    %1521 = vmatprep.subr.mxu0 0.0
    %1522 = vmatpush1.msra.mxu0 0.0
    %1523 = vmatprep.subr.mxu0 0.0
    %1524 = vmatpush1.msra.mxu0 0.0
    %1525 = vmatprep.subr.mxu0 0.0
    %1526 = vmatpush1.msra.mxu0 0.0
    %1527 = vmatprep.subr.mxu0 0.0
    %1528 = vmatpush1.msra.mxu0 0.0
    %1529 = vmatprep.subr.mxu0 0.0
    %v1530 = vand.u32 %v100, 4294901760
    %v1531 = vsub.f32 %v100, %v1530
    %v1532 = vand.u32 %v1531, 4294901760
    %1533 = vmatpush1.msra.mxu0 %v1532
    %1534 = vmatprep.subr.mxu0 0.0
    %v1535 = vand.u32 %v99, 4294901760
    %v1536 = vsub.f32 %v99, %v1535
    %v1537 = vand.u32 %v1536, 4294901760
    %1538 = vmatpush1.msra.mxu0 %v1537
    %1539 = vmatprep.subr.mxu0 0.0
    %1540 = vmatpush2.msra.mxu0 0.0
    %1541 = vmatprep.subr.mxu0 0.0
    %1542 = vmatpush2.msra.mxu0 0.0
    %1543 = vmatprep.subr.mxu0 0.0
    %1544 = vmatpush2.msra.mxu0 0.0
    %1545 = vmatprep.subr.mxu0 0.0
    %1546 = vmatpush2.msra.mxu0 0.0
    %1547 = vmatprep.subr.mxu0 0.0
    %1548 = vmatpush2.msra.mxu0 0.0
    %1549 = vmatprep.subr.mxu0 0.0
    %1550 = vmatpush2.msra.mxu0 0.0
    %1551 = vmatprep.subr.mxu0 0.0
    %1552 = vmatpush2.msra.mxu0 0.0
    %1553 = vmatprep.subr.mxu0 0.0
    %1554 = vmatpush2.msra.mxu0 0.0
    %1555 = vmatprep.subr.mxu0 0.0
    %1556 = vmatpush2.msra.mxu0 0.0
    %1557 = vmatprep.subr.mxu0 0.0
    %1558 = vmatpush2.msra.mxu0 0.0
    %1559 = vmatprep.subr.mxu0 0.0
    %1560 = vmatpush2.msra.mxu0 0.0
    %1561 = vmatprep.subr.mxu0 0.0
    %1562 = vmatpush2.msra.mxu0 0.0
    %1563 = vmatprep.subr.mxu0 0.0
    %1564 = vmatpush2.msra.mxu0 0.0
    %1565 = vmatprep.subr.mxu0 0.0
    %1566 = vmatpush2.msra.mxu0 0.0
    %1567 = vmatprep.subr.mxu0 0.0
    %1568 = vmatpush2.msra.mxu0 0.0
    %1569 = vmatprep.subr.mxu0 0.0
    %1570 = vmatpush2.msra.mxu0 0.0
    %1571 = vmatprep.mubr.f32.mxu0 0.0
    %v1572 = vand.u32 %v1156, 4294901760
    %1573 = vmatmul.mubr.f32.gmra.mxu0 %v1572
    %v1574 = vpop.f32.mrf.mxu0
    %v1575 = vadd.f32 %v1490, %v1574
    %v1576 = vpop.f32.mrf.mxu0
    %1577 = vmatprep.mubr.f32.mxu0 0.0
    %v1578 = vand.u32 %v1159, 4294901760
    %1579 = vmatmul.mubr.f32.gmra.mxu0 %v1578
    %v1580 = vpop.f32.mrf.mxu0
    %v1581 = vadd.f32 %v1498, %v1580
    %v1582 = vpop.f32.mrf.mxu0
    %1583 = vdwg.mxu0
    %1584 = vmatprep.subr.mxu0 0.0
    %1585 = vmatpush1.msra.mxu0 0.0
    %1586 = vmatprep.subr.mxu0 0.0
    %1587 = vmatpush1.msra.mxu0 0.0
    %1588 = vmatprep.subr.mxu0 0.0
    %1589 = vmatpush1.msra.mxu0 0.0
    %1590 = vmatprep.subr.mxu0 0.0
    %1591 = vmatpush1.msra.mxu0 0.0
    %1592 = vmatprep.subr.mxu0 0.0
    %1593 = vmatpush1.msra.mxu0 0.0
    %1594 = vmatprep.subr.mxu0 0.0
    %1595 = vmatpush1.msra.mxu0 0.0
    %1596 = vmatprep.subr.mxu0 0.0
    %1597 = vmatpush1.msra.mxu0 0.0
    %1598 = vmatprep.subr.mxu0 0.0
    %1599 = vmatpush1.msra.mxu0 0.0
    %1600 = vmatprep.subr.mxu0 0.0
    %1601 = vmatpush1.msra.mxu0 0.0
    %1602 = vmatprep.subr.mxu0 0.0
    %1603 = vmatpush1.msra.mxu0 0.0
    %1604 = vmatprep.subr.mxu0 0.0
    %1605 = vmatpush1.msra.mxu0 0.0
    %1606 = vmatprep.subr.mxu0 0.0
    %1607 = vmatpush1.msra.mxu0 0.0
    %1608 = vmatprep.subr.mxu0 0.0
    %1609 = vmatpush1.msra.mxu0 0.0
    %1610 = vmatprep.subr.mxu0 0.0
    %1611 = vmatpush1.msra.mxu0 0.0
    %1612 = vmatprep.subr.mxu0 0.0
    %v1613 = vand.u32 %v100, 4294901760
    %1614 = vmatpush1.msra.mxu0 %v1613
    %1615 = vmatprep.subr.mxu0 0.0
    %v1616 = vand.u32 %v99, 4294901760
    %1617 = vmatpush1.msra.mxu0 %v1616
    %1618 = vmatprep.subr.mxu0 0.0
    %1619 = vmatpush2.msra.mxu0 0.0
    %1620 = vmatprep.subr.mxu0 0.0
    %1621 = vmatpush2.msra.mxu0 0.0
    %1622 = vmatprep.subr.mxu0 0.0
    %1623 = vmatpush2.msra.mxu0 0.0
    %1624 = vmatprep.subr.mxu0 0.0
    %1625 = vmatpush2.msra.mxu0 0.0
    %1626 = vmatprep.subr.mxu0 0.0
    %1627 = vmatpush2.msra.mxu0 0.0
    %1628 = vmatprep.subr.mxu0 0.0
    %1629 = vmatpush2.msra.mxu0 0.0
    %1630 = vmatprep.subr.mxu0 0.0
    %1631 = vmatpush2.msra.mxu0 0.0
    %1632 = vmatprep.subr.mxu0 0.0
    %1633 = vmatpush2.msra.mxu0 0.0
    %1634 = vmatprep.subr.mxu0 0.0
    %1635 = vmatpush2.msra.mxu0 0.0
    %1636 = vmatprep.subr.mxu0 0.0
    %1637 = vmatpush2.msra.mxu0 0.0
    %1638 = vmatprep.subr.mxu0 0.0
    %1639 = vmatpush2.msra.mxu0 0.0
    %1640 = vmatprep.subr.mxu0 0.0
    %1641 = vmatpush2.msra.mxu0 0.0
    %1642 = vmatprep.subr.mxu0 0.0
    %1643 = vmatpush2.msra.mxu0 0.0
    %1644 = vmatprep.subr.mxu0 0.0
    %1645 = vmatpush2.msra.mxu0 0.0
    %1646 = vmatprep.subr.mxu0 0.0
    %1647 = vmatpush2.msra.mxu0 0.0
    %1648 = vmatprep.subr.mxu0 0.0
    %1649 = vmatpush2.msra.mxu0 0.0
    %1650 = vmatprep.mubr.f32.mxu0 0.0
    %v1651 = vand.u32 %v1156, 4294901760
    %1652 = vmatmul.mubr.f32.gmra.mxu0 %v1651
    %v1653 = vpop.f32.mrf.mxu0
    %v1654 = vadd.f32 %v1575, %v1653
    %v1655 = vpop.f32.mrf.mxu0
    %1656 = vmatprep.mubr.f32.mxu0 0.0
    %v1657 = vand.u32 %v1159, 4294901760
    %1658 = vmatmul.mubr.f32.gmra.mxu0 %v1657
    %v1659 = vpop.f32.mrf.mxu0
    %v1660 = vadd.f32 %v1581, %v1659
    %v1661 = vpop.f32.mrf.mxu0
    %1662 = vdwg.mxu0
    %s1663 = scalar_lea.vmem [#allocation7], 32
    %v1664 = vld [vmem:[%s1663] sm:$0xff]
    %v1665 = vld [vmem:[%s1663 + $0x8] sm:$0xff]
    %v1666 = vld [vmem:[%s1663 + $0x10] sm:$0xff]
    %v1667 = vld [vmem:[%s1663 + $0x18] sm:$0xff]
    %v1669 = vsel %vm83, %v1654, 0
    %v1672 = vsel %vm83, %v1660, 0
    %1674 = vmatprep.subr.mxu0 0.0
    %1675 = vmatpush1.msra.mxu0 0.0
    %1676 = vmatprep.subr.mxu0 0.0
    %1677 = vmatpush1.msra.mxu0 0.0
    %1678 = vmatprep.subr.mxu0 0.0
    %1679 = vmatpush1.msra.mxu0 0.0
    %1680 = vmatprep.subr.mxu0 0.0
    %1681 = vmatpush1.msra.mxu0 0.0
    %1682 = vmatprep.subr.mxu0 0.0
    %1683 = vmatpush1.msra.mxu0 0.0
    %1684 = vmatprep.subr.mxu0 0.0
    %1685 = vmatpush1.msra.mxu0 0.0
    %1686 = vmatprep.subr.mxu0 0.0
    %1687 = vmatpush1.msra.mxu0 0.0
    %1688 = vmatprep.subr.mxu0 0.0
    %1689 = vmatpush1.msra.mxu0 0.0
    %1690 = vmatprep.subr.mxu0 0.0
    %1691 = vmatpush1.msra.mxu0 0.0
    %1692 = vmatprep.subr.mxu0 0.0
    %1693 = vmatpush1.msra.mxu0 0.0
    %1694 = vmatprep.subr.mxu0 0.0
    %1695 = vmatpush1.msra.mxu0 0.0
    %1696 = vmatprep.subr.mxu0 0.0
    %1697 = vmatpush1.msra.mxu0 0.0
    %1698 = vmatprep.subr.mxu0 0.0
    %v1699 = vand.u32 %v1667, 4294901760
    %1700 = vmatpush1.msra.mxu0 %v1699
    %1701 = vmatprep.subr.mxu0 0.0
    %v1702 = vand.u32 %v1666, 4294901760
    %1703 = vmatpush1.msra.mxu0 %v1702
    %1704 = vmatprep.subr.mxu0 0.0
    %v1705 = vand.u32 %v1665, 4294901760
    %1706 = vmatpush1.msra.mxu0 %v1705
    %1707 = vmatprep.subr.mxu0 0.0
    %v1708 = vand.u32 %v1664, 4294901760
    %1709 = vmatpush1.msra.mxu0 %v1708
    %1710 = vmatprep.subr.mxu0 0.0
    %1711 = vmatpush2.msra.mxu0 0.0
    %1712 = vmatprep.subr.mxu0 0.0
    %1713 = vmatpush2.msra.mxu0 0.0
    %1714 = vmatprep.subr.mxu0 0.0
    %1715 = vmatpush2.msra.mxu0 0.0
    %1716 = vmatprep.subr.mxu0 0.0
    %1717 = vmatpush2.msra.mxu0 0.0
    %1718 = vmatprep.subr.mxu0 0.0
    %1719 = vmatpush2.msra.mxu0 0.0
    %1720 = vmatprep.subr.mxu0 0.0
    %1721 = vmatpush2.msra.mxu0 0.0
    %1722 = vmatprep.subr.mxu0 0.0
    %1723 = vmatpush2.msra.mxu0 0.0
    %1724 = vmatprep.subr.mxu0 0.0
    %1725 = vmatpush2.msra.mxu0 0.0
    %1726 = vmatprep.subr.mxu0 0.0
    %1727 = vmatpush2.msra.mxu0 0.0
    %1728 = vmatprep.subr.mxu0 0.0
    %1729 = vmatpush2.msra.mxu0 0.0
    %1730 = vmatprep.subr.mxu0 0.0
    %1731 = vmatpush2.msra.mxu0 0.0
    %1732 = vmatprep.subr.mxu0 0.0
    %1733 = vmatpush2.msra.mxu0 0.0
    %1734 = vmatprep.subr.mxu0 0.0
    %1735 = vmatpush2.msra.mxu0 0.0
    %1736 = vmatprep.subr.mxu0 0.0
    %1737 = vmatpush2.msra.mxu0 0.0
    %1738 = vmatprep.subr.mxu0 0.0
    %1739 = vmatpush2.msra.mxu0 0.0
    %1740 = vmatprep.subr.mxu0 0.0
    %1741 = vmatpush2.msra.mxu0 0.0
    %1742 = vmatprep.mubr.f32.mxu0 0.0
    %v1743 = vand.u32 %v1669, 4294901760
    %v1744 = vsub.f32 %v1669, %v1743
    %v1745 = vand.u32 %v1744, 4294901760
    %v1746 = vsub.f32 %v1744, %v1745
    %v1747 = vand.u32 %v1746, 4294901760
    %1748 = vmatmul.mubr.f32.gmra.mxu0 %v1747
    %v1749 = vpop.f32.mrf.mxu0
    %v1750 = vadd.f32 0.0, %v1749
    %v1751 = vpop.f32.mrf.mxu0
    %1752 = vmatprep.mubr.f32.mxu0 0.0
    %v1753 = vand.u32 %v1672, 4294901760
    %v1754 = vsub.f32 %v1672, %v1753
    %v1755 = vand.u32 %v1754, 4294901760
    %v1756 = vsub.f32 %v1754, %v1755
    %v1757 = vand.u32 %v1756, 4294901760
    %1758 = vmatmul.mubr.f32.gmra.mxu0 %v1757
    %v1759 = vpop.f32.mrf.mxu0
    %v1760 = vadd.f32 0.0, %v1759
    %v1761 = vpop.f32.mrf.mxu0
    %1762 = vdwg.mxu0
    %1763 = vmatprep.subr.mxu0 0.0
    %1764 = vmatpush1.msra.mxu0 0.0
    %1765 = vmatprep.subr.mxu0 0.0
    %1766 = vmatpush1.msra.mxu0 0.0
    %1767 = vmatprep.subr.mxu0 0.0
    %1768 = vmatpush1.msra.mxu0 0.0
    %1769 = vmatprep.subr.mxu0 0.0
    %1770 = vmatpush1.msra.mxu0 0.0
    %1771 = vmatprep.subr.mxu0 0.0
    %1772 = vmatpush1.msra.mxu0 0.0
    %1773 = vmatprep.subr.mxu0 0.0
    %1774 = vmatpush1.msra.mxu0 0.0
    %1775 = vmatprep.subr.mxu0 0.0
    %1776 = vmatpush1.msra.mxu0 0.0
    %1777 = vmatprep.subr.mxu0 0.0
    %1778 = vmatpush1.msra.mxu0 0.0
    %1779 = vmatprep.subr.mxu0 0.0
    %1780 = vmatpush1.msra.mxu0 0.0
    %1781 = vmatprep.subr.mxu0 0.0
    %1782 = vmatpush1.msra.mxu0 0.0
    %1783 = vmatprep.subr.mxu0 0.0
    %1784 = vmatpush1.msra.mxu0 0.0
    %1785 = vmatprep.subr.mxu0 0.0
    %1786 = vmatpush1.msra.mxu0 0.0
    %1787 = vmatprep.subr.mxu0 0.0
    %v1788 = vand.u32 %v1667, 4294901760
    %v1789 = vsub.f32 %v1667, %v1788
    %v1790 = vand.u32 %v1789, 4294901760
    %v1791 = vsub.f32 %v1789, %v1790
    %v1792 = vand.u32 %v1791, 4294901760
    %1793 = vmatpush1.msra.mxu0 %v1792
    %1794 = vmatprep.subr.mxu0 0.0
    %v1795 = vand.u32 %v1666, 4294901760
    %v1796 = vsub.f32 %v1666, %v1795
    %v1797 = vand.u32 %v1796, 4294901760
    %v1798 = vsub.f32 %v1796, %v1797
    %v1799 = vand.u32 %v1798, 4294901760
    %1800 = vmatpush1.msra.mxu0 %v1799
    %1801 = vmatprep.subr.mxu0 0.0
    %v1802 = vand.u32 %v1665, 4294901760
    %v1803 = vsub.f32 %v1665, %v1802
    %v1804 = vand.u32 %v1803, 4294901760
    %v1805 = vsub.f32 %v1803, %v1804
    %v1806 = vand.u32 %v1805, 4294901760
    %1807 = vmatpush1.msra.mxu0 %v1806
    %1808 = vmatprep.subr.mxu0 0.0
    %v1809 = vand.u32 %v1664, 4294901760
    %v1810 = vsub.f32 %v1664, %v1809
    %v1811 = vand.u32 %v1810, 4294901760
    %v1812 = vsub.f32 %v1810, %v1811
    %v1813 = vand.u32 %v1812, 4294901760
    %1814 = vmatpush1.msra.mxu0 %v1813
    %1815 = vmatprep.subr.mxu0 0.0
    %1816 = vmatpush2.msra.mxu0 0.0
    %1817 = vmatprep.subr.mxu0 0.0
    %1818 = vmatpush2.msra.mxu0 0.0
    %1819 = vmatprep.subr.mxu0 0.0
    %1820 = vmatpush2.msra.mxu0 0.0
    %1821 = vmatprep.subr.mxu0 0.0
    %1822 = vmatpush2.msra.mxu0 0.0
    %1823 = vmatprep.subr.mxu0 0.0
    %1824 = vmatpush2.msra.mxu0 0.0
    %1825 = vmatprep.subr.mxu0 0.0
    %1826 = vmatpush2.msra.mxu0 0.0
    %1827 = vmatprep.subr.mxu0 0.0
    %1828 = vmatpush2.msra.mxu0 0.0
    %1829 = vmatprep.subr.mxu0 0.0
    %1830 = vmatpush2.msra.mxu0 0.0
    %1831 = vmatprep.subr.mxu0 0.0
    %1832 = vmatpush2.msra.mxu0 0.0
    %1833 = vmatprep.subr.mxu0 0.0
    %1834 = vmatpush2.msra.mxu0 0.0
    %1835 = vmatprep.subr.mxu0 0.0
    %1836 = vmatpush2.msra.mxu0 0.0
    %1837 = vmatprep.subr.mxu0 0.0
    %1838 = vmatpush2.msra.mxu0 0.0
    %1839 = vmatprep.subr.mxu0 0.0
    %1840 = vmatpush2.msra.mxu0 0.0
    %1841 = vmatprep.subr.mxu0 0.0
    %1842 = vmatpush2.msra.mxu0 0.0
    %1843 = vmatprep.subr.mxu0 0.0
    %1844 = vmatpush2.msra.mxu0 0.0
    %1845 = vmatprep.subr.mxu0 0.0
    %1846 = vmatpush2.msra.mxu0 0.0
    %1847 = vmatprep.mubr.f32.mxu0 0.0
    %v1848 = vand.u32 %v1669, 4294901760
    %1849 = vmatmul.mubr.f32.gmra.mxu0 %v1848
    %v1850 = vpop.f32.mrf.mxu0
    %v1851 = vadd.f32 %v1750, %v1850
    %v1852 = vpop.f32.mrf.mxu0
    %1853 = vmatprep.mubr.f32.mxu0 0.0
    %v1854 = vand.u32 %v1672, 4294901760
    %1855 = vmatmul.mubr.f32.gmra.mxu0 %v1854
    %v1856 = vpop.f32.mrf.mxu0
    %v1857 = vadd.f32 %v1760, %v1856
    %v1858 = vpop.f32.mrf.mxu0
    %1859 = vdwg.mxu0
    %1860 = vmatprep.subr.mxu0 0.0
    %1861 = vmatpush1.msra.mxu0 0.0
    %1862 = vmatprep.subr.mxu0 0.0
    %1863 = vmatpush1.msra.mxu0 0.0
    %1864 = vmatprep.subr.mxu0 0.0
    %1865 = vmatpush1.msra.mxu0 0.0
    %1866 = vmatprep.subr.mxu0 0.0
    %1867 = vmatpush1.msra.mxu0 0.0
    %1868 = vmatprep.subr.mxu0 0.0
    %1869 = vmatpush1.msra.mxu0 0.0
    %1870 = vmatprep.subr.mxu0 0.0
    %1871 = vmatpush1.msra.mxu0 0.0
    %1872 = vmatprep.subr.mxu0 0.0
    %1873 = vmatpush1.msra.mxu0 0.0
    %1874 = vmatprep.subr.mxu0 0.0
    %1875 = vmatpush1.msra.mxu0 0.0
    %1876 = vmatprep.subr.mxu0 0.0
    %1877 = vmatpush1.msra.mxu0 0.0
    %1878 = vmatprep.subr.mxu0 0.0
    %1879 = vmatpush1.msra.mxu0 0.0
    %1880 = vmatprep.subr.mxu0 0.0
    %1881 = vmatpush1.msra.mxu0 0.0
    %1882 = vmatprep.subr.mxu0 0.0
    %1883 = vmatpush1.msra.mxu0 0.0
    %1884 = vmatprep.subr.mxu0 0.0
    %v1885 = vand.u32 %v1667, 4294901760
    %v1886 = vsub.f32 %v1667, %v1885
    %1887 = vmatpush1.msra.mxu0 %v1886
    %1888 = vmatprep.subr.mxu0 0.0
    %v1889 = vand.u32 %v1666, 4294901760
    %v1890 = vsub.f32 %v1666, %v1889
    %1891 = vmatpush1.msra.mxu0 %v1890
    %1892 = vmatprep.subr.mxu0 0.0
    %v1893 = vand.u32 %v1665, 4294901760
    %v1894 = vsub.f32 %v1665, %v1893
    %1895 = vmatpush1.msra.mxu0 %v1894
    %1896 = vmatprep.subr.mxu0 0.0
    %v1897 = vand.u32 %v1664, 4294901760
    %v1898 = vsub.f32 %v1664, %v1897
    %1899 = vmatpush1.msra.mxu0 %v1898
    %1900 = vmatprep.subr.mxu0 0.0
    %1901 = vmatpush2.msra.mxu0 0.0
    %1902 = vmatprep.subr.mxu0 0.0
    %1903 = vmatpush2.msra.mxu0 0.0
    %1904 = vmatprep.subr.mxu0 0.0
    %1905 = vmatpush2.msra.mxu0 0.0
    %1906 = vmatprep.subr.mxu0 0.0
    %1907 = vmatpush2.msra.mxu0 0.0
    %1908 = vmatprep.subr.mxu0 0.0
    %1909 = vmatpush2.msra.mxu0 0.0
    %1910 = vmatprep.subr.mxu0 0.0
    %1911 = vmatpush2.msra.mxu0 0.0
    %1912 = vmatprep.subr.mxu0 0.0
    %1913 = vmatpush2.msra.mxu0 0.0
    %1914 = vmatprep.subr.mxu0 0.0
    %1915 = vmatpush2.msra.mxu0 0.0
    %1916 = vmatprep.subr.mxu0 0.0
    %1917 = vmatpush2.msra.mxu0 0.0
    %1918 = vmatprep.subr.mxu0 0.0
    %1919 = vmatpush2.msra.mxu0 0.0
    %1920 = vmatprep.subr.mxu0 0.0
    %1921 = vmatpush2.msra.mxu0 0.0
    %1922 = vmatprep.subr.mxu0 0.0
    %1923 = vmatpush2.msra.mxu0 0.0
    %1924 = vmatprep.subr.mxu0 0.0
    %1925 = vmatpush2.msra.mxu0 0.0
    %1926 = vmatprep.subr.mxu0 0.0
    %1927 = vmatpush2.msra.mxu0 0.0
    %1928 = vmatprep.subr.mxu0 0.0
    %1929 = vmatpush2.msra.mxu0 0.0
    %1930 = vmatprep.subr.mxu0 0.0
    %1931 = vmatpush2.msra.mxu0 0.0
    %1932 = vmatprep.mubr.f32.mxu0 0.0
    %v1933 = vand.u32 %v1669, 4294901760
    %v1934 = vsub.f32 %v1669, %v1933
    %1935 = vmatmul.mubr.f32.gmra.mxu0 %v1934
    %v1936 = vpop.f32.mrf.mxu0
    %v1937 = vadd.f32 %v1851, %v1936
    %v1938 = vpop.f32.mrf.mxu0
    %1939 = vmatprep.mubr.f32.mxu0 0.0
    %v1940 = vand.u32 %v1672, 4294901760
    %v1941 = vsub.f32 %v1672, %v1940
    %1942 = vmatmul.mubr.f32.gmra.mxu0 %v1941
    %v1943 = vpop.f32.mrf.mxu0
    %v1944 = vadd.f32 %v1857, %v1943
    %v1945 = vpop.f32.mrf.mxu0
    %1946 = vdwg.mxu0
    %1947 = vmatprep.subr.mxu0 0.0
    %1948 = vmatpush1.msra.mxu0 0.0
    %1949 = vmatprep.subr.mxu0 0.0
    %1950 = vmatpush1.msra.mxu0 0.0
    %1951 = vmatprep.subr.mxu0 0.0
    %1952 = vmatpush1.msra.mxu0 0.0
    %1953 = vmatprep.subr.mxu0 0.0
    %1954 = vmatpush1.msra.mxu0 0.0
    %1955 = vmatprep.subr.mxu0 0.0
    %1956 = vmatpush1.msra.mxu0 0.0
    %1957 = vmatprep.subr.mxu0 0.0
    %1958 = vmatpush1.msra.mxu0 0.0
    %1959 = vmatprep.subr.mxu0 0.0
    %1960 = vmatpush1.msra.mxu0 0.0
    %1961 = vmatprep.subr.mxu0 0.0
    %1962 = vmatpush1.msra.mxu0 0.0
    %1963 = vmatprep.subr.mxu0 0.0
    %1964 = vmatpush1.msra.mxu0 0.0
    %1965 = vmatprep.subr.mxu0 0.0
    %1966 = vmatpush1.msra.mxu0 0.0
    %1967 = vmatprep.subr.mxu0 0.0
    %1968 = vmatpush1.msra.mxu0 0.0
    %1969 = vmatprep.subr.mxu0 0.0
    %1970 = vmatpush1.msra.mxu0 0.0
    %1971 = vmatprep.subr.mxu0 0.0
    %v1972 = vand.u32 %v1667, 4294901760
    %1973 = vmatpush1.msra.mxu0 %v1972
    %1974 = vmatprep.subr.mxu0 0.0
    %v1975 = vand.u32 %v1666, 4294901760
    %1976 = vmatpush1.msra.mxu0 %v1975
    %1977 = vmatprep.subr.mxu0 0.0
    %v1978 = vand.u32 %v1665, 4294901760
    %1979 = vmatpush1.msra.mxu0 %v1978
    %1980 = vmatprep.subr.mxu0 0.0
    %v1981 = vand.u32 %v1664, 4294901760
    %1982 = vmatpush1.msra.mxu0 %v1981
    %1983 = vmatprep.subr.mxu0 0.0
    %1984 = vmatpush2.msra.mxu0 0.0
    %1985 = vmatprep.subr.mxu0 0.0
    %1986 = vmatpush2.msra.mxu0 0.0
    %1987 = vmatprep.subr.mxu0 0.0
    %1988 = vmatpush2.msra.mxu0 0.0
    %1989 = vmatprep.subr.mxu0 0.0
    %1990 = vmatpush2.msra.mxu0 0.0
    %1991 = vmatprep.subr.mxu0 0.0
    %1992 = vmatpush2.msra.mxu0 0.0
    %1993 = vmatprep.subr.mxu0 0.0
    %1994 = vmatpush2.msra.mxu0 0.0
    %1995 = vmatprep.subr.mxu0 0.0
    %1996 = vmatpush2.msra.mxu0 0.0
    %1997 = vmatprep.subr.mxu0 0.0
    %1998 = vmatpush2.msra.mxu0 0.0
    %1999 = vmatprep.subr.mxu0 0.0
    %2000 = vmatpush2.msra.mxu0 0.0
    %2001 = vmatprep.subr.mxu0 0.0
    %2002 = vmatpush2.msra.mxu0 0.0
    %2003 = vmatprep.subr.mxu0 0.0
    %2004 = vmatpush2.msra.mxu0 0.0
    %2005 = vmatprep.subr.mxu0 0.0
    %2006 = vmatpush2.msra.mxu0 0.0
    %2007 = vmatprep.subr.mxu0 0.0
    %2008 = vmatpush2.msra.mxu0 0.0
    %2009 = vmatprep.subr.mxu0 0.0
    %2010 = vmatpush2.msra.mxu0 0.0
    %2011 = vmatprep.subr.mxu0 0.0
    %2012 = vmatpush2.msra.mxu0 0.0
    %2013 = vmatprep.subr.mxu0 0.0
    %2014 = vmatpush2.msra.mxu0 0.0
    %2015 = vmatprep.mubr.f32.mxu0 0.0
    %v2016 = vand.u32 %v1669, 4294901760
    %v2017 = vsub.f32 %v1669, %v2016
    %v2018 = vand.u32 %v2017, 4294901760
    %2019 = vmatmul.mubr.f32.gmra.mxu0 %v2018
    %v2020 = vpop.f32.mrf.mxu0
    %v2021 = vadd.f32 %v1937, %v2020
    %v2022 = vpop.f32.mrf.mxu0
    %2023 = vmatprep.mubr.f32.mxu0 0.0
    %v2024 = vand.u32 %v1672, 4294901760
    %v2025 = vsub.f32 %v1672, %v2024
    %v2026 = vand.u32 %v2025, 4294901760
    %2027 = vmatmul.mubr.f32.gmra.mxu0 %v2026
    %v2028 = vpop.f32.mrf.mxu0
    %v2029 = vadd.f32 %v1944, %v2028
    %v2030 = vpop.f32.mrf.mxu0
    %2031 = vdwg.mxu0
    %2032 = vmatprep.subr.mxu0 0.0
    %2033 = vmatpush1.msra.mxu0 0.0
    %2034 = vmatprep.subr.mxu0 0.0
    %2035 = vmatpush1.msra.mxu0 0.0
    %2036 = vmatprep.subr.mxu0 0.0
    %2037 = vmatpush1.msra.mxu0 0.0
    %2038 = vmatprep.subr.mxu0 0.0
    %2039 = vmatpush1.msra.mxu0 0.0
    %2040 = vmatprep.subr.mxu0 0.0
    %2041 = vmatpush1.msra.mxu0 0.0
    %2042 = vmatprep.subr.mxu0 0.0
    %2043 = vmatpush1.msra.mxu0 0.0
    %2044 = vmatprep.subr.mxu0 0.0
    %2045 = vmatpush1.msra.mxu0 0.0
    %2046 = vmatprep.subr.mxu0 0.0
    %2047 = vmatpush1.msra.mxu0 0.0
    %2048 = vmatprep.subr.mxu0 0.0
    %2049 = vmatpush1.msra.mxu0 0.0
    %2050 = vmatprep.subr.mxu0 0.0
    %2051 = vmatpush1.msra.mxu0 0.0
    %2052 = vmatprep.subr.mxu0 0.0
    %2053 = vmatpush1.msra.mxu0 0.0
    %2054 = vmatprep.subr.mxu0 0.0
    %2055 = vmatpush1.msra.mxu0 0.0
    %2056 = vmatprep.subr.mxu0 0.0
    %v2057 = vand.u32 %v1667, 4294901760
    %v2058 = vsub.f32 %v1667, %v2057
    %v2059 = vand.u32 %v2058, 4294901760
    %2060 = vmatpush1.msra.mxu0 %v2059
    %2061 = vmatprep.subr.mxu0 0.0
    %v2062 = vand.u32 %v1666, 4294901760
    %v2063 = vsub.f32 %v1666, %v2062
    %v2064 = vand.u32 %v2063, 4294901760
    %2065 = vmatpush1.msra.mxu0 %v2064
    %2066 = vmatprep.subr.mxu0 0.0
    %v2067 = vand.u32 %v1665, 4294901760
    %v2068 = vsub.f32 %v1665, %v2067
    %v2069 = vand.u32 %v2068, 4294901760
    %2070 = vmatpush1.msra.mxu0 %v2069
    %2071 = vmatprep.subr.mxu0 0.0
    %v2072 = vand.u32 %v1664, 4294901760
    %v2073 = vsub.f32 %v1664, %v2072
    %v2074 = vand.u32 %v2073, 4294901760
    %2075 = vmatpush1.msra.mxu0 %v2074
    %2076 = vmatprep.subr.mxu0 0.0
    %2077 = vmatpush2.msra.mxu0 0.0
    %2078 = vmatprep.subr.mxu0 0.0
    %2079 = vmatpush2.msra.mxu0 0.0
    %2080 = vmatprep.subr.mxu0 0.0
    %2081 = vmatpush2.msra.mxu0 0.0
    %2082 = vmatprep.subr.mxu0 0.0
    %2083 = vmatpush2.msra.mxu0 0.0
    %2084 = vmatprep.subr.mxu0 0.0
    %2085 = vmatpush2.msra.mxu0 0.0
    %2086 = vmatprep.subr.mxu0 0.0
    %2087 = vmatpush2.msra.mxu0 0.0
    %2088 = vmatprep.subr.mxu0 0.0
    %2089 = vmatpush2.msra.mxu0 0.0
    %2090 = vmatprep.subr.mxu0 0.0
    %2091 = vmatpush2.msra.mxu0 0.0
    %2092 = vmatprep.subr.mxu0 0.0
    %2093 = vmatpush2.msra.mxu0 0.0
    %2094 = vmatprep.subr.mxu0 0.0
    %2095 = vmatpush2.msra.mxu0 0.0
    %2096 = vmatprep.subr.mxu0 0.0
    %2097 = vmatpush2.msra.mxu0 0.0
    %2098 = vmatprep.subr.mxu0 0.0
    %2099 = vmatpush2.msra.mxu0 0.0
    %2100 = vmatprep.subr.mxu0 0.0
    %2101 = vmatpush2.msra.mxu0 0.0
    %2102 = vmatprep.subr.mxu0 0.0
    %2103 = vmatpush2.msra.mxu0 0.0
    %2104 = vmatprep.subr.mxu0 0.0
    %2105 = vmatpush2.msra.mxu0 0.0
    %2106 = vmatprep.subr.mxu0 0.0
    %2107 = vmatpush2.msra.mxu0 0.0
    %2108 = vmatprep.mubr.f32.mxu0 0.0
    %v2109 = vand.u32 %v1669, 4294901760
    %2110 = vmatmul.mubr.f32.gmra.mxu0 %v2109
    %v2111 = vpop.f32.mrf.mxu0
    %v2112 = vadd.f32 %v2021, %v2111
    %v2113 = vpop.f32.mrf.mxu0
    %2114 = vmatprep.mubr.f32.mxu0 0.0
    %v2115 = vand.u32 %v1672, 4294901760
    %2116 = vmatmul.mubr.f32.gmra.mxu0 %v2115
    %v2117 = vpop.f32.mrf.mxu0
    %v2118 = vadd.f32 %v2029, %v2117
    %v2119 = vpop.f32.mrf.mxu0
    %2120 = vdwg.mxu0
    %2121 = vmatprep.subr.mxu0 0.0
    %2122 = vmatpush1.msra.mxu0 0.0
    %2123 = vmatprep.subr.mxu0 0.0
    %2124 = vmatpush1.msra.mxu0 0.0
    %2125 = vmatprep.subr.mxu0 0.0
    %2126 = vmatpush1.msra.mxu0 0.0
    %2127 = vmatprep.subr.mxu0 0.0
    %2128 = vmatpush1.msra.mxu0 0.0
    %2129 = vmatprep.subr.mxu0 0.0
    %2130 = vmatpush1.msra.mxu0 0.0
    %2131 = vmatprep.subr.mxu0 0.0
    %2132 = vmatpush1.msra.mxu0 0.0
    %2133 = vmatprep.subr.mxu0 0.0
    %2134 = vmatpush1.msra.mxu0 0.0
    %2135 = vmatprep.subr.mxu0 0.0
    %2136 = vmatpush1.msra.mxu0 0.0
    %2137 = vmatprep.subr.mxu0 0.0
    %2138 = vmatpush1.msra.mxu0 0.0
    %2139 = vmatprep.subr.mxu0 0.0
    %2140 = vmatpush1.msra.mxu0 0.0
    %2141 = vmatprep.subr.mxu0 0.0
    %2142 = vmatpush1.msra.mxu0 0.0
    %2143 = vmatprep.subr.mxu0 0.0
    %2144 = vmatpush1.msra.mxu0 0.0
    %2145 = vmatprep.subr.mxu0 0.0
    %v2146 = vand.u32 %v1667, 4294901760
    %2147 = vmatpush1.msra.mxu0 %v2146
    %2148 = vmatprep.subr.mxu0 0.0
    %v2149 = vand.u32 %v1666, 4294901760
    %2150 = vmatpush1.msra.mxu0 %v2149
    %2151 = vmatprep.subr.mxu0 0.0
    %v2152 = vand.u32 %v1665, 4294901760
    %2153 = vmatpush1.msra.mxu0 %v2152
    %2154 = vmatprep.subr.mxu0 0.0
    %v2155 = vand.u32 %v1664, 4294901760
    %2156 = vmatpush1.msra.mxu0 %v2155
    %2157 = vmatprep.subr.mxu0 0.0
    %2158 = vmatpush2.msra.mxu0 0.0
    %2159 = vmatprep.subr.mxu0 0.0
    %2160 = vmatpush2.msra.mxu0 0.0
    %2161 = vmatprep.subr.mxu0 0.0
    %2162 = vmatpush2.msra.mxu0 0.0
    %2163 = vmatprep.subr.mxu0 0.0
    %2164 = vmatpush2.msra.mxu0 0.0
    %2165 = vmatprep.subr.mxu0 0.0
    %2166 = vmatpush2.msra.mxu0 0.0
    %2167 = vmatprep.subr.mxu0 0.0
    %2168 = vmatpush2.msra.mxu0 0.0
    %2169 = vmatprep.subr.mxu0 0.0
    %2170 = vmatpush2.msra.mxu0 0.0
    %2171 = vmatprep.subr.mxu0 0.0
    %2172 = vmatpush2.msra.mxu0 0.0
    %2173 = vmatprep.subr.mxu0 0.0
    %2174 = vmatpush2.msra.mxu0 0.0
    %2175 = vmatprep.subr.mxu0 0.0
    %2176 = vmatpush2.msra.mxu0 0.0
    %2177 = vmatprep.subr.mxu0 0.0
    %2178 = vmatpush2.msra.mxu0 0.0
    %2179 = vmatprep.subr.mxu0 0.0
    %2180 = vmatpush2.msra.mxu0 0.0
    %2181 = vmatprep.subr.mxu0 0.0
    %2182 = vmatpush2.msra.mxu0 0.0
    %2183 = vmatprep.subr.mxu0 0.0
    %2184 = vmatpush2.msra.mxu0 0.0
    %2185 = vmatprep.subr.mxu0 0.0
    %2186 = vmatpush2.msra.mxu0 0.0
    %2187 = vmatprep.subr.mxu0 0.0
    %2188 = vmatpush2.msra.mxu0 0.0
    %2189 = vmatprep.mubr.f32.mxu0 0.0
    %v2190 = vand.u32 %v1669, 4294901760
    %2191 = vmatmul.mubr.f32.gmra.mxu0 %v2190
    %v2192 = vpop.f32.mrf.mxu0
    %v2193 = vadd.f32 %v2112, %v2192
    %v2194 = vpop.f32.mrf.mxu0
    %2195 = vmatprep.mubr.f32.mxu0 0.0
    %v2196 = vand.u32 %v1672, 4294901760
    %2197 = vmatmul.mubr.f32.gmra.mxu0 %v2196
    %v2198 = vpop.f32.mrf.mxu0
    %v2199 = vadd.f32 %v2118, %v2198
    %v2200 = vpop.f32.mrf.mxu0
    %2201 = vdwg.mxu0
    %v2202 = vadd.f32 %v1150, %v2193
    %v2203 = vadd.f32 %v1151, %v2199
    %s2204 = scalar_lea.vmem [#allocation5], 32
    %v2205 = vld [vmem:[%s2204] sm:$0xff]
    %v2206 = vld [vmem:[%s2204 + $0x8] sm:$0xff]
    %v2208 = vsel %vm103, %v2205, 0
    %v2211 = vsel %vm103, %v2206, 0
    %2213 = vmatprep.subr.mxu0 0.0
    %2214 = vmatpush1.msra.mxu0 0.0
    %2215 = vmatprep.subr.mxu0 0.0
    %2216 = vmatpush1.msra.mxu0 0.0
    %2217 = vmatprep.subr.mxu0 0.0
    %2218 = vmatpush1.msra.mxu0 0.0
    %2219 = vmatprep.subr.mxu0 0.0
    %2220 = vmatpush1.msra.mxu0 0.0
    %2221 = vmatprep.subr.mxu0 0.0
    %2222 = vmatpush1.msra.mxu0 0.0
    %2223 = vmatprep.subr.mxu0 0.0
    %2224 = vmatpush1.msra.mxu0 0.0
    %2225 = vmatprep.subr.mxu0 0.0
    %2226 = vmatpush1.msra.mxu0 0.0
    %2227 = vmatprep.subr.mxu0 0.0
    %2228 = vmatpush1.msra.mxu0 0.0
    %2229 = vmatprep.subr.mxu0 0.0
    %2230 = vmatpush1.msra.mxu0 0.0
    %2231 = vmatprep.subr.mxu0 0.0
    %2232 = vmatpush1.msra.mxu0 0.0
    %2233 = vmatprep.subr.mxu0 0.0
    %2234 = vmatpush1.msra.mxu0 0.0
    %2235 = vmatprep.subr.mxu0 0.0
    %2236 = vmatpush1.msra.mxu0 0.0
    %2237 = vmatprep.subr.mxu0 0.0
    %2238 = vmatpush1.msra.mxu0 0.0
    %2239 = vmatprep.subr.mxu0 0.0
    %2240 = vmatpush1.msra.mxu0 0.0
    %2241 = vmatprep.subr.mxu0 0.0
    %v2242 = vand.u32 %v100, 4294901760
    %2243 = vmatpush1.msra.mxu0 %v2242
    %2244 = vmatprep.subr.mxu0 0.0
    %v2245 = vand.u32 %v99, 4294901760
    %2246 = vmatpush1.msra.mxu0 %v2245
    %2247 = vmatprep.subr.mxu0 0.0
    %2248 = vmatpush2.msra.mxu0 0.0
    %2249 = vmatprep.subr.mxu0 0.0
    %2250 = vmatpush2.msra.mxu0 0.0
    %2251 = vmatprep.subr.mxu0 0.0
    %2252 = vmatpush2.msra.mxu0 0.0
    %2253 = vmatprep.subr.mxu0 0.0
    %2254 = vmatpush2.msra.mxu0 0.0
    %2255 = vmatprep.subr.mxu0 0.0
    %2256 = vmatpush2.msra.mxu0 0.0
    %2257 = vmatprep.subr.mxu0 0.0
    %2258 = vmatpush2.msra.mxu0 0.0
    %2259 = vmatprep.subr.mxu0 0.0
    %2260 = vmatpush2.msra.mxu0 0.0
    %2261 = vmatprep.subr.mxu0 0.0
    %2262 = vmatpush2.msra.mxu0 0.0
    %2263 = vmatprep.subr.mxu0 0.0
    %2264 = vmatpush2.msra.mxu0 0.0
    %2265 = vmatprep.subr.mxu0 0.0
    %2266 = vmatpush2.msra.mxu0 0.0
    %2267 = vmatprep.subr.mxu0 0.0
    %2268 = vmatpush2.msra.mxu0 0.0
    %2269 = vmatprep.subr.mxu0 0.0
    %2270 = vmatpush2.msra.mxu0 0.0
    %2271 = vmatprep.subr.mxu0 0.0
    %2272 = vmatpush2.msra.mxu0 0.0
    %2273 = vmatprep.subr.mxu0 0.0
    %2274 = vmatpush2.msra.mxu0 0.0
    %2275 = vmatprep.subr.mxu0 0.0
    %2276 = vmatpush2.msra.mxu0 0.0
    %2277 = vmatprep.subr.mxu0 0.0
    %2278 = vmatpush2.msra.mxu0 0.0
    %2279 = vmatprep.mubr.f32.mxu0 0.0
    %v2280 = vand.u32 %v2208, 4294901760
    %v2281 = vsub.f32 %v2208, %v2280
    %v2282 = vand.u32 %v2281, 4294901760
    %v2283 = vsub.f32 %v2281, %v2282
    %v2284 = vand.u32 %v2283, 4294901760
    %2285 = vmatmul.mubr.f32.gmra.mxu0 %v2284
    %v2286 = vpop.f32.mrf.mxu0
    %v2287 = vadd.f32 0.0, %v2286
    %v2288 = vpop.f32.mrf.mxu0
    %2289 = vmatprep.mubr.f32.mxu0 0.0
    %v2290 = vand.u32 %v2211, 4294901760
    %v2291 = vsub.f32 %v2211, %v2290
    %v2292 = vand.u32 %v2291, 4294901760
    %v2293 = vsub.f32 %v2291, %v2292
    %v2294 = vand.u32 %v2293, 4294901760
    %2295 = vmatmul.mubr.f32.gmra.mxu0 %v2294
    %v2296 = vpop.f32.mrf.mxu0
    %v2297 = vadd.f32 0.0, %v2296
    %v2298 = vpop.f32.mrf.mxu0
    %2299 = vdwg.mxu0
    %2300 = vmatprep.subr.mxu0 0.0
    %2301 = vmatpush1.msra.mxu0 0.0
    %2302 = vmatprep.subr.mxu0 0.0
    %2303 = vmatpush1.msra.mxu0 0.0
    %2304 = vmatprep.subr.mxu0 0.0
    %2305 = vmatpush1.msra.mxu0 0.0
    %2306 = vmatprep.subr.mxu0 0.0
    %2307 = vmatpush1.msra.mxu0 0.0
    %2308 = vmatprep.subr.mxu0 0.0
    %2309 = vmatpush1.msra.mxu0 0.0
    %2310 = vmatprep.subr.mxu0 0.0
    %2311 = vmatpush1.msra.mxu0 0.0
    %2312 = vmatprep.subr.mxu0 0.0
    %2313 = vmatpush1.msra.mxu0 0.0
    %2314 = vmatprep.subr.mxu0 0.0
    %2315 = vmatpush1.msra.mxu0 0.0
    %2316 = vmatprep.subr.mxu0 0.0
    %2317 = vmatpush1.msra.mxu0 0.0
    %2318 = vmatprep.subr.mxu0 0.0
    %2319 = vmatpush1.msra.mxu0 0.0
    %2320 = vmatprep.subr.mxu0 0.0
    %2321 = vmatpush1.msra.mxu0 0.0
    %2322 = vmatprep.subr.mxu0 0.0
    %2323 = vmatpush1.msra.mxu0 0.0
    %2324 = vmatprep.subr.mxu0 0.0
    %2325 = vmatpush1.msra.mxu0 0.0
    %2326 = vmatprep.subr.mxu0 0.0
    %2327 = vmatpush1.msra.mxu0 0.0
    %2328 = vmatprep.subr.mxu0 0.0
    %v2329 = vand.u32 %v100, 4294901760
    %v2330 = vsub.f32 %v100, %v2329
    %v2331 = vand.u32 %v2330, 4294901760
    %v2332 = vsub.f32 %v2330, %v2331
    %v2333 = vand.u32 %v2332, 4294901760
    %2334 = vmatpush1.msra.mxu0 %v2333
    %2335 = vmatprep.subr.mxu0 0.0
    %v2336 = vand.u32 %v99, 4294901760
    %v2337 = vsub.f32 %v99, %v2336
    %v2338 = vand.u32 %v2337, 4294901760
    %v2339 = vsub.f32 %v2337, %v2338
    %v2340 = vand.u32 %v2339, 4294901760
    %2341 = vmatpush1.msra.mxu0 %v2340
    %2342 = vmatprep.subr.mxu0 0.0
    %2343 = vmatpush2.msra.mxu0 0.0
    %2344 = vmatprep.subr.mxu0 0.0
    %2345 = vmatpush2.msra.mxu0 0.0
    %2346 = vmatprep.subr.mxu0 0.0
    %2347 = vmatpush2.msra.mxu0 0.0
    %2348 = vmatprep.subr.mxu0 0.0
    %2349 = vmatpush2.msra.mxu0 0.0
    %2350 = vmatprep.subr.mxu0 0.0
    %2351 = vmatpush2.msra.mxu0 0.0
    %2352 = vmatprep.subr.mxu0 0.0
    %2353 = vmatpush2.msra.mxu0 0.0
    %2354 = vmatprep.subr.mxu0 0.0
    %2355 = vmatpush2.msra.mxu0 0.0
    %2356 = vmatprep.subr.mxu0 0.0
    %2357 = vmatpush2.msra.mxu0 0.0
    %2358 = vmatprep.subr.mxu0 0.0
    %2359 = vmatpush2.msra.mxu0 0.0
    %2360 = vmatprep.subr.mxu0 0.0
    %2361 = vmatpush2.msra.mxu0 0.0
    %2362 = vmatprep.subr.mxu0 0.0
    %2363 = vmatpush2.msra.mxu0 0.0
    %2364 = vmatprep.subr.mxu0 0.0
    %2365 = vmatpush2.msra.mxu0 0.0
    %2366 = vmatprep.subr.mxu0 0.0
    %2367 = vmatpush2.msra.mxu0 0.0
    %2368 = vmatprep.subr.mxu0 0.0
    %2369 = vmatpush2.msra.mxu0 0.0
    %2370 = vmatprep.subr.mxu0 0.0
    %2371 = vmatpush2.msra.mxu0 0.0
    %2372 = vmatprep.subr.mxu0 0.0
    %2373 = vmatpush2.msra.mxu0 0.0
    %2374 = vmatprep.mubr.f32.mxu0 0.0
    %v2375 = vand.u32 %v2208, 4294901760
    %2376 = vmatmul.mubr.f32.gmra.mxu0 %v2375
    %v2377 = vpop.f32.mrf.mxu0
    %v2378 = vadd.f32 %v2287, %v2377
    %v2379 = vpop.f32.mrf.mxu0
    %2380 = vmatprep.mubr.f32.mxu0 0.0
    %v2381 = vand.u32 %v2211, 4294901760
    %2382 = vmatmul.mubr.f32.gmra.mxu0 %v2381
    %v2383 = vpop.f32.mrf.mxu0
    %v2384 = vadd.f32 %v2297, %v2383
    %v2385 = vpop.f32.mrf.mxu0
    %2386 = vdwg.mxu0
    %2387 = vmatprep.subr.mxu0 0.0
    %2388 = vmatpush1.msra.mxu0 0.0
    %2389 = vmatprep.subr.mxu0 0.0
    %2390 = vmatpush1.msra.mxu0 0.0
    %2391 = vmatprep.subr.mxu0 0.0
    %2392 = vmatpush1.msra.mxu0 0.0
    %2393 = vmatprep.subr.mxu0 0.0
    %2394 = vmatpush1.msra.mxu0 0.0
    %2395 = vmatprep.subr.mxu0 0.0
    %2396 = vmatpush1.msra.mxu0 0.0
    %2397 = vmatprep.subr.mxu0 0.0
    %2398 = vmatpush1.msra.mxu0 0.0
    %2399 = vmatprep.subr.mxu0 0.0
    %2400 = vmatpush1.msra.mxu0 0.0
    %2401 = vmatprep.subr.mxu0 0.0
    %2402 = vmatpush1.msra.mxu0 0.0
    %2403 = vmatprep.subr.mxu0 0.0
    %2404 = vmatpush1.msra.mxu0 0.0
    %2405 = vmatprep.subr.mxu0 0.0
    %2406 = vmatpush1.msra.mxu0 0.0
    %2407 = vmatprep.subr.mxu0 0.0
    %2408 = vmatpush1.msra.mxu0 0.0
    %2409 = vmatprep.subr.mxu0 0.0
    %2410 = vmatpush1.msra.mxu0 0.0
    %2411 = vmatprep.subr.mxu0 0.0
    %2412 = vmatpush1.msra.mxu0 0.0
    %2413 = vmatprep.subr.mxu0 0.0
    %2414 = vmatpush1.msra.mxu0 0.0
    %2415 = vmatprep.subr.mxu0 0.0
    %v2416 = vand.u32 %v100, 4294901760
    %v2417 = vsub.f32 %v100, %v2416
    %2418 = vmatpush1.msra.mxu0 %v2417
    %2419 = vmatprep.subr.mxu0 0.0
    %v2420 = vand.u32 %v99, 4294901760
    %v2421 = vsub.f32 %v99, %v2420
    %2422 = vmatpush1.msra.mxu0 %v2421
    %2423 = vmatprep.subr.mxu0 0.0
    %2424 = vmatpush2.msra.mxu0 0.0
    %2425 = vmatprep.subr.mxu0 0.0
    %2426 = vmatpush2.msra.mxu0 0.0
    %2427 = vmatprep.subr.mxu0 0.0
    %2428 = vmatpush2.msra.mxu0 0.0
    %2429 = vmatprep.subr.mxu0 0.0
    %2430 = vmatpush2.msra.mxu0 0.0
    %2431 = vmatprep.subr.mxu0 0.0
    %2432 = vmatpush2.msra.mxu0 0.0
    %2433 = vmatprep.subr.mxu0 0.0
    %2434 = vmatpush2.msra.mxu0 0.0
    %2435 = vmatprep.subr.mxu0 0.0
    %2436 = vmatpush2.msra.mxu0 0.0
    %2437 = vmatprep.subr.mxu0 0.0
    %2438 = vmatpush2.msra.mxu0 0.0
    %2439 = vmatprep.subr.mxu0 0.0
    %2440 = vmatpush2.msra.mxu0 0.0
    %2441 = vmatprep.subr.mxu0 0.0
    %2442 = vmatpush2.msra.mxu0 0.0
    %2443 = vmatprep.subr.mxu0 0.0
    %2444 = vmatpush2.msra.mxu0 0.0
    %2445 = vmatprep.subr.mxu0 0.0
    %2446 = vmatpush2.msra.mxu0 0.0
    %2447 = vmatprep.subr.mxu0 0.0
    %2448 = vmatpush2.msra.mxu0 0.0
    %2449 = vmatprep.subr.mxu0 0.0
    %2450 = vmatpush2.msra.mxu0 0.0
    %2451 = vmatprep.subr.mxu0 0.0
    %2452 = vmatpush2.msra.mxu0 0.0
    %2453 = vmatprep.subr.mxu0 0.0
    %2454 = vmatpush2.msra.mxu0 0.0
    %2455 = vmatprep.mubr.f32.mxu0 0.0
    %v2456 = vand.u32 %v2208, 4294901760
    %v2457 = vsub.f32 %v2208, %v2456
    %2458 = vmatmul.mubr.f32.gmra.mxu0 %v2457
    %v2459 = vpop.f32.mrf.mxu0
    %v2460 = vadd.f32 %v2378, %v2459
    %v2461 = vpop.f32.mrf.mxu0
    %2462 = vmatprep.mubr.f32.mxu0 0.0
    %v2463 = vand.u32 %v2211, 4294901760
    %v2464 = vsub.f32 %v2211, %v2463
    %2465 = vmatmul.mubr.f32.gmra.mxu0 %v2464
    %v2466 = vpop.f32.mrf.mxu0
    %v2467 = vadd.f32 %v2384, %v2466
    %v2468 = vpop.f32.mrf.mxu0
    %2469 = vdwg.mxu0
    %2470 = vmatprep.subr.mxu0 0.0
    %2471 = vmatpush1.msra.mxu0 0.0
    %2472 = vmatprep.subr.mxu0 0.0
    %2473 = vmatpush1.msra.mxu0 0.0
    %2474 = vmatprep.subr.mxu0 0.0
    %2475 = vmatpush1.msra.mxu0 0.0
    %2476 = vmatprep.subr.mxu0 0.0
    %2477 = vmatpush1.msra.mxu0 0.0
    %2478 = vmatprep.subr.mxu0 0.0
    %2479 = vmatpush1.msra.mxu0 0.0
    %2480 = vmatprep.subr.mxu0 0.0
    %2481 = vmatpush1.msra.mxu0 0.0
    %2482 = vmatprep.subr.mxu0 0.0
    %2483 = vmatpush1.msra.mxu0 0.0
    %2484 = vmatprep.subr.mxu0 0.0
    %2485 = vmatpush1.msra.mxu0 0.0
    %2486 = vmatprep.subr.mxu0 0.0
    %2487 = vmatpush1.msra.mxu0 0.0
    %2488 = vmatprep.subr.mxu0 0.0
    %2489 = vmatpush1.msra.mxu0 0.0
    %2490 = vmatprep.subr.mxu0 0.0
    %2491 = vmatpush1.msra.mxu0 0.0
    %2492 = vmatprep.subr.mxu0 0.0
    %2493 = vmatpush1.msra.mxu0 0.0
    %2494 = vmatprep.subr.mxu0 0.0
    %2495 = vmatpush1.msra.mxu0 0.0
    %2496 = vmatprep.subr.mxu0 0.0
    %2497 = vmatpush1.msra.mxu0 0.0
    %2498 = vmatprep.subr.mxu0 0.0
    %v2499 = vand.u32 %v100, 4294901760
    %2500 = vmatpush1.msra.mxu0 %v2499
    %2501 = vmatprep.subr.mxu0 0.0
    %v2502 = vand.u32 %v99, 4294901760
    %2503 = vmatpush1.msra.mxu0 %v2502
    %2504 = vmatprep.subr.mxu0 0.0
    %2505 = vmatpush2.msra.mxu0 0.0
    %2506 = vmatprep.subr.mxu0 0.0
    %2507 = vmatpush2.msra.mxu0 0.0
    %2508 = vmatprep.subr.mxu0 0.0
    %2509 = vmatpush2.msra.mxu0 0.0
    %2510 = vmatprep.subr.mxu0 0.0
    %2511 = vmatpush2.msra.mxu0 0.0
    %2512 = vmatprep.subr.mxu0 0.0
    %2513 = vmatpush2.msra.mxu0 0.0
    %2514 = vmatprep.subr.mxu0 0.0
    %2515 = vmatpush2.msra.mxu0 0.0
    %2516 = vmatprep.subr.mxu0 0.0
    %2517 = vmatpush2.msra.mxu0 0.0
    %2518 = vmatprep.subr.mxu0 0.0
    %2519 = vmatpush2.msra.mxu0 0.0
    %2520 = vmatprep.subr.mxu0 0.0
    %2521 = vmatpush2.msra.mxu0 0.0
    %2522 = vmatprep.subr.mxu0 0.0
    %2523 = vmatpush2.msra.mxu0 0.0
    %2524 = vmatprep.subr.mxu0 0.0
    %2525 = vmatpush2.msra.mxu0 0.0
    %2526 = vmatprep.subr.mxu0 0.0
    %2527 = vmatpush2.msra.mxu0 0.0
    %2528 = vmatprep.subr.mxu0 0.0
    %2529 = vmatpush2.msra.mxu0 0.0
    %2530 = vmatprep.subr.mxu0 0.0
    %2531 = vmatpush2.msra.mxu0 0.0
    %2532 = vmatprep.subr.mxu0 0.0
    %2533 = vmatpush2.msra.mxu0 0.0
    %2534 = vmatprep.subr.mxu0 0.0
    %2535 = vmatpush2.msra.mxu0 0.0
    %2536 = vmatprep.mubr.f32.mxu0 0.0
    %v2537 = vand.u32 %v2208, 4294901760
    %v2538 = vsub.f32 %v2208, %v2537
    %v2539 = vand.u32 %v2538, 4294901760
    %2540 = vmatmul.mubr.f32.gmra.mxu0 %v2539
    %v2541 = vpop.f32.mrf.mxu0
    %v2542 = vadd.f32 %v2460, %v2541
    %v2543 = vpop.f32.mrf.mxu0
    %2544 = vmatprep.mubr.f32.mxu0 0.0
    %v2545 = vand.u32 %v2211, 4294901760
    %v2546 = vsub.f32 %v2211, %v2545
    %v2547 = vand.u32 %v2546, 4294901760
    %2548 = vmatmul.mubr.f32.gmra.mxu0 %v2547
    %v2549 = vpop.f32.mrf.mxu0
    %v2550 = vadd.f32 %v2467, %v2549
    %v2551 = vpop.f32.mrf.mxu0
    %2552 = vdwg.mxu0
    %2553 = vmatprep.subr.mxu0 0.0
    %2554 = vmatpush1.msra.mxu0 0.0
    %2555 = vmatprep.subr.mxu0 0.0
    %2556 = vmatpush1.msra.mxu0 0.0
    %2557 = vmatprep.subr.mxu0 0.0
    %2558 = vmatpush1.msra.mxu0 0.0
    %2559 = vmatprep.subr.mxu0 0.0
    %2560 = vmatpush1.msra.mxu0 0.0
    %2561 = vmatprep.subr.mxu0 0.0
    %2562 = vmatpush1.msra.mxu0 0.0
    %2563 = vmatprep.subr.mxu0 0.0
    %2564 = vmatpush1.msra.mxu0 0.0
    %2565 = vmatprep.subr.mxu0 0.0
    %2566 = vmatpush1.msra.mxu0 0.0
    %2567 = vmatprep.subr.mxu0 0.0
    %2568 = vmatpush1.msra.mxu0 0.0
    %2569 = vmatprep.subr.mxu0 0.0
    %2570 = vmatpush1.msra.mxu0 0.0
    %2571 = vmatprep.subr.mxu0 0.0
    %2572 = vmatpush1.msra.mxu0 0.0
    %2573 = vmatprep.subr.mxu0 0.0
    %2574 = vmatpush1.msra.mxu0 0.0
    %2575 = vmatprep.subr.mxu0 0.0
    %2576 = vmatpush1.msra.mxu0 0.0
    %2577 = vmatprep.subr.mxu0 0.0
    %2578 = vmatpush1.msra.mxu0 0.0
    %2579 = vmatprep.subr.mxu0 0.0
    %2580 = vmatpush1.msra.mxu0 0.0
    %2581 = vmatprep.subr.mxu0 0.0
    %v2582 = vand.u32 %v100, 4294901760
    %v2583 = vsub.f32 %v100, %v2582
    %v2584 = vand.u32 %v2583, 4294901760
    %2585 = vmatpush1.msra.mxu0 %v2584
    %2586 = vmatprep.subr.mxu0 0.0
    %v2587 = vand.u32 %v99, 4294901760
    %v2588 = vsub.f32 %v99, %v2587
    %v2589 = vand.u32 %v2588, 4294901760
    %2590 = vmatpush1.msra.mxu0 %v2589
    %2591 = vmatprep.subr.mxu0 0.0
    %2592 = vmatpush2.msra.mxu0 0.0
    %2593 = vmatprep.subr.mxu0 0.0
    %2594 = vmatpush2.msra.mxu0 0.0
    %2595 = vmatprep.subr.mxu0 0.0
    %2596 = vmatpush2.msra.mxu0 0.0
    %2597 = vmatprep.subr.mxu0 0.0
    %2598 = vmatpush2.msra.mxu0 0.0
    %2599 = vmatprep.subr.mxu0 0.0
    %2600 = vmatpush2.msra.mxu0 0.0
    %2601 = vmatprep.subr.mxu0 0.0
    %2602 = vmatpush2.msra.mxu0 0.0
    %2603 = vmatprep.subr.mxu0 0.0
    %2604 = vmatpush2.msra.mxu0 0.0
    %2605 = vmatprep.subr.mxu0 0.0
    %2606 = vmatpush2.msra.mxu0 0.0
    %2607 = vmatprep.subr.mxu0 0.0
    %2608 = vmatpush2.msra.mxu0 0.0
    %2609 = vmatprep.subr.mxu0 0.0
    %2610 = vmatpush2.msra.mxu0 0.0
    %2611 = vmatprep.subr.mxu0 0.0
    %2612 = vmatpush2.msra.mxu0 0.0
    %2613 = vmatprep.subr.mxu0 0.0
    %2614 = vmatpush2.msra.mxu0 0.0
    %2615 = vmatprep.subr.mxu0 0.0
    %2616 = vmatpush2.msra.mxu0 0.0
    %2617 = vmatprep.subr.mxu0 0.0
    %2618 = vmatpush2.msra.mxu0 0.0
    %2619 = vmatprep.subr.mxu0 0.0
    %2620 = vmatpush2.msra.mxu0 0.0
    %2621 = vmatprep.subr.mxu0 0.0
    %2622 = vmatpush2.msra.mxu0 0.0
    %2623 = vmatprep.mubr.f32.mxu0 0.0
    %v2624 = vand.u32 %v2208, 4294901760
    %2625 = vmatmul.mubr.f32.gmra.mxu0 %v2624
    %v2626 = vpop.f32.mrf.mxu0
    %v2627 = vadd.f32 %v2542, %v2626
    %v2628 = vpop.f32.mrf.mxu0
    %2629 = vmatprep.mubr.f32.mxu0 0.0
    %v2630 = vand.u32 %v2211, 4294901760
    %2631 = vmatmul.mubr.f32.gmra.mxu0 %v2630
    %v2632 = vpop.f32.mrf.mxu0
    %v2633 = vadd.f32 %v2550, %v2632
    %v2634 = vpop.f32.mrf.mxu0
    %2635 = vdwg.mxu0
    %2636 = vmatprep.subr.mxu0 0.0
    %2637 = vmatpush1.msra.mxu0 0.0
    %2638 = vmatprep.subr.mxu0 0.0
    %2639 = vmatpush1.msra.mxu0 0.0
    %2640 = vmatprep.subr.mxu0 0.0
    %2641 = vmatpush1.msra.mxu0 0.0
    %2642 = vmatprep.subr.mxu0 0.0
    %2643 = vmatpush1.msra.mxu0 0.0
    %2644 = vmatprep.subr.mxu0 0.0
    %2645 = vmatpush1.msra.mxu0 0.0
    %2646 = vmatprep.subr.mxu0 0.0
    %2647 = vmatpush1.msra.mxu0 0.0
    %2648 = vmatprep.subr.mxu0 0.0
    %2649 = vmatpush1.msra.mxu0 0.0
    %2650 = vmatprep.subr.mxu0 0.0
    %2651 = vmatpush1.msra.mxu0 0.0
    %2652 = vmatprep.subr.mxu0 0.0
    %2653 = vmatpush1.msra.mxu0 0.0
    %2654 = vmatprep.subr.mxu0 0.0
    %2655 = vmatpush1.msra.mxu0 0.0
    %2656 = vmatprep.subr.mxu0 0.0
    %2657 = vmatpush1.msra.mxu0 0.0
    %2658 = vmatprep.subr.mxu0 0.0
    %2659 = vmatpush1.msra.mxu0 0.0
    %2660 = vmatprep.subr.mxu0 0.0
    %2661 = vmatpush1.msra.mxu0 0.0
    %2662 = vmatprep.subr.mxu0 0.0
    %2663 = vmatpush1.msra.mxu0 0.0
    %2664 = vmatprep.subr.mxu0 0.0
    %v2665 = vand.u32 %v100, 4294901760
    %2666 = vmatpush1.msra.mxu0 %v2665
    %2667 = vmatprep.subr.mxu0 0.0
    %v2668 = vand.u32 %v99, 4294901760
    %2669 = vmatpush1.msra.mxu0 %v2668
    %2670 = vmatprep.subr.mxu0 0.0
    %2671 = vmatpush2.msra.mxu0 0.0
    %2672 = vmatprep.subr.mxu0 0.0
    %2673 = vmatpush2.msra.mxu0 0.0
    %2674 = vmatprep.subr.mxu0 0.0
    %2675 = vmatpush2.msra.mxu0 0.0
    %2676 = vmatprep.subr.mxu0 0.0
    %2677 = vmatpush2.msra.mxu0 0.0
    %2678 = vmatprep.subr.mxu0 0.0
    %2679 = vmatpush2.msra.mxu0 0.0
    %2680 = vmatprep.subr.mxu0 0.0
    %2681 = vmatpush2.msra.mxu0 0.0
    %2682 = vmatprep.subr.mxu0 0.0
    %2683 = vmatpush2.msra.mxu0 0.0
    %2684 = vmatprep.subr.mxu0 0.0
    %2685 = vmatpush2.msra.mxu0 0.0
    %2686 = vmatprep.subr.mxu0 0.0
    %2687 = vmatpush2.msra.mxu0 0.0
    %2688 = vmatprep.subr.mxu0 0.0
    %2689 = vmatpush2.msra.mxu0 0.0
    %2690 = vmatprep.subr.mxu0 0.0
    %2691 = vmatpush2.msra.mxu0 0.0
    %2692 = vmatprep.subr.mxu0 0.0
    %2693 = vmatpush2.msra.mxu0 0.0
    %2694 = vmatprep.subr.mxu0 0.0
    %2695 = vmatpush2.msra.mxu0 0.0
    %2696 = vmatprep.subr.mxu0 0.0
    %2697 = vmatpush2.msra.mxu0 0.0
    %2698 = vmatprep.subr.mxu0 0.0
    %2699 = vmatpush2.msra.mxu0 0.0
    %2700 = vmatprep.subr.mxu0 0.0
    %2701 = vmatpush2.msra.mxu0 0.0
    %2702 = vmatprep.mubr.f32.mxu0 0.0
    %v2703 = vand.u32 %v2208, 4294901760
    %2704 = vmatmul.mubr.f32.gmra.mxu0 %v2703
    %v2705 = vpop.f32.mrf.mxu0
    %v2706 = vadd.f32 %v2627, %v2705
    %v2707 = vpop.f32.mrf.mxu0
    %2708 = vmatprep.mubr.f32.mxu0 0.0
    %v2709 = vand.u32 %v2211, 4294901760
    %2710 = vmatmul.mubr.f32.gmra.mxu0 %v2709
    %v2711 = vpop.f32.mrf.mxu0
    %v2712 = vadd.f32 %v2633, %v2711
    %v2713 = vpop.f32.mrf.mxu0
    %2714 = vdwg.mxu0
    %s2715 = scalar_lea.vmem [#allocation7], 64
    %v2716 = vld [vmem:[%s2715] sm:$0xff]
    %v2717 = vld [vmem:[%s2715 + $0x8] sm:$0xff]
    %v2718 = vld [vmem:[%s2715 + $0x10] sm:$0xff]
    %v2719 = vld [vmem:[%s2715 + $0x18] sm:$0xff]
    %v2721 = vsel %vm83, %v2706, 0
    %v2724 = vsel %vm83, %v2712, 0
    %2726 = vmatprep.subr.mxu0 0.0
    %2727 = vmatpush1.msra.mxu0 0.0
    %2728 = vmatprep.subr.mxu0 0.0
    %2729 = vmatpush1.msra.mxu0 0.0
    %2730 = vmatprep.subr.mxu0 0.0
    %2731 = vmatpush1.msra.mxu0 0.0
    %2732 = vmatprep.subr.mxu0 0.0
    %2733 = vmatpush1.msra.mxu0 0.0
    %2734 = vmatprep.subr.mxu0 0.0
    %2735 = vmatpush1.msra.mxu0 0.0
    %2736 = vmatprep.subr.mxu0 0.0
    %2737 = vmatpush1.msra.mxu0 0.0
    %2738 = vmatprep.subr.mxu0 0.0
    %2739 = vmatpush1.msra.mxu0 0.0
    %2740 = vmatprep.subr.mxu0 0.0
    %2741 = vmatpush1.msra.mxu0 0.0
    %2742 = vmatprep.subr.mxu0 0.0
    %2743 = vmatpush1.msra.mxu0 0.0
    %2744 = vmatprep.subr.mxu0 0.0
    %2745 = vmatpush1.msra.mxu0 0.0
    %2746 = vmatprep.subr.mxu0 0.0
    %2747 = vmatpush1.msra.mxu0 0.0
    %2748 = vmatprep.subr.mxu0 0.0
    %2749 = vmatpush1.msra.mxu0 0.0
    %2750 = vmatprep.subr.mxu0 0.0
    %v2751 = vand.u32 %v2719, 4294901760
    %2752 = vmatpush1.msra.mxu0 %v2751
    %2753 = vmatprep.subr.mxu0 0.0
    %v2754 = vand.u32 %v2718, 4294901760
    %2755 = vmatpush1.msra.mxu0 %v2754
    %2756 = vmatprep.subr.mxu0 0.0
    %v2757 = vand.u32 %v2717, 4294901760
    %2758 = vmatpush1.msra.mxu0 %v2757
    %2759 = vmatprep.subr.mxu0 0.0
    %v2760 = vand.u32 %v2716, 4294901760
    %2761 = vmatpush1.msra.mxu0 %v2760
    %2762 = vmatprep.subr.mxu0 0.0
    %2763 = vmatpush2.msra.mxu0 0.0
    %2764 = vmatprep.subr.mxu0 0.0
    %2765 = vmatpush2.msra.mxu0 0.0
    %2766 = vmatprep.subr.mxu0 0.0
    %2767 = vmatpush2.msra.mxu0 0.0
    %2768 = vmatprep.subr.mxu0 0.0
    %2769 = vmatpush2.msra.mxu0 0.0
    %2770 = vmatprep.subr.mxu0 0.0
    %2771 = vmatpush2.msra.mxu0 0.0
    %2772 = vmatprep.subr.mxu0 0.0
    %2773 = vmatpush2.msra.mxu0 0.0
    %2774 = vmatprep.subr.mxu0 0.0
    %2775 = vmatpush2.msra.mxu0 0.0
    %2776 = vmatprep.subr.mxu0 0.0
    %2777 = vmatpush2.msra.mxu0 0.0
    %2778 = vmatprep.subr.mxu0 0.0
    %2779 = vmatpush2.msra.mxu0 0.0
    %2780 = vmatprep.subr.mxu0 0.0
    %2781 = vmatpush2.msra.mxu0 0.0
    %2782 = vmatprep.subr.mxu0 0.0
    %2783 = vmatpush2.msra.mxu0 0.0
    %2784 = vmatprep.subr.mxu0 0.0
    %2785 = vmatpush2.msra.mxu0 0.0
    %2786 = vmatprep.subr.mxu0 0.0
    %2787 = vmatpush2.msra.mxu0 0.0
    %2788 = vmatprep.subr.mxu0 0.0
    %2789 = vmatpush2.msra.mxu0 0.0
    %2790 = vmatprep.subr.mxu0 0.0
    %2791 = vmatpush2.msra.mxu0 0.0
    %2792 = vmatprep.subr.mxu0 0.0
    %2793 = vmatpush2.msra.mxu0 0.0
    %2794 = vmatprep.mubr.f32.mxu0 0.0
    %v2795 = vand.u32 %v2721, 4294901760
    %v2796 = vsub.f32 %v2721, %v2795
    %v2797 = vand.u32 %v2796, 4294901760
    %v2798 = vsub.f32 %v2796, %v2797
    %v2799 = vand.u32 %v2798, 4294901760
    %2800 = vmatmul.mubr.f32.gmra.mxu0 %v2799
    %v2801 = vpop.f32.mrf.mxu0
    %v2802 = vadd.f32 0.0, %v2801
    %v2803 = vpop.f32.mrf.mxu0
    %2804 = vmatprep.mubr.f32.mxu0 0.0
    %v2805 = vand.u32 %v2724, 4294901760
    %v2806 = vsub.f32 %v2724, %v2805
    %v2807 = vand.u32 %v2806, 4294901760
    %v2808 = vsub.f32 %v2806, %v2807
    %v2809 = vand.u32 %v2808, 4294901760
    %2810 = vmatmul.mubr.f32.gmra.mxu0 %v2809
    %v2811 = vpop.f32.mrf.mxu0
    %v2812 = vadd.f32 0.0, %v2811
    %v2813 = vpop.f32.mrf.mxu0
    %2814 = vdwg.mxu0
    %2815 = vmatprep.subr.mxu0 0.0
    %2816 = vmatpush1.msra.mxu0 0.0
    %2817 = vmatprep.subr.mxu0 0.0
    %2818 = vmatpush1.msra.mxu0 0.0
    %2819 = vmatprep.subr.mxu0 0.0
    %2820 = vmatpush1.msra.mxu0 0.0
    %2821 = vmatprep.subr.mxu0 0.0
    %2822 = vmatpush1.msra.mxu0 0.0
    %2823 = vmatprep.subr.mxu0 0.0
    %2824 = vmatpush1.msra.mxu0 0.0
    %2825 = vmatprep.subr.mxu0 0.0
    %2826 = vmatpush1.msra.mxu0 0.0
    %2827 = vmatprep.subr.mxu0 0.0
    %2828 = vmatpush1.msra.mxu0 0.0
    %2829 = vmatprep.subr.mxu0 0.0
    %2830 = vmatpush1.msra.mxu0 0.0
    %2831 = vmatprep.subr.mxu0 0.0
    %2832 = vmatpush1.msra.mxu0 0.0
    %2833 = vmatprep.subr.mxu0 0.0
    %2834 = vmatpush1.msra.mxu0 0.0
    %2835 = vmatprep.subr.mxu0 0.0
    %2836 = vmatpush1.msra.mxu0 0.0
    %2837 = vmatprep.subr.mxu0 0.0
    %2838 = vmatpush1.msra.mxu0 0.0
    %2839 = vmatprep.subr.mxu0 0.0
    %v2840 = vand.u32 %v2719, 4294901760
    %v2841 = vsub.f32 %v2719, %v2840
    %v2842 = vand.u32 %v2841, 4294901760
    %v2843 = vsub.f32 %v2841, %v2842
    %v2844 = vand.u32 %v2843, 4294901760
    %2845 = vmatpush1.msra.mxu0 %v2844
    %2846 = vmatprep.subr.mxu0 0.0
    %v2847 = vand.u32 %v2718, 4294901760
    %v2848 = vsub.f32 %v2718, %v2847
    %v2849 = vand.u32 %v2848, 4294901760
    %v2850 = vsub.f32 %v2848, %v2849
    %v2851 = vand.u32 %v2850, 4294901760
    %2852 = vmatpush1.msra.mxu0 %v2851
    %2853 = vmatprep.subr.mxu0 0.0
    %v2854 = vand.u32 %v2717, 4294901760
    %v2855 = vsub.f32 %v2717, %v2854
    %v2856 = vand.u32 %v2855, 4294901760
    %v2857 = vsub.f32 %v2855, %v2856
    %v2858 = vand.u32 %v2857, 4294901760
    %2859 = vmatpush1.msra.mxu0 %v2858
    %2860 = vmatprep.subr.mxu0 0.0
    %v2861 = vand.u32 %v2716, 4294901760
    %v2862 = vsub.f32 %v2716, %v2861
    %v2863 = vand.u32 %v2862, 4294901760
    %v2864 = vsub.f32 %v2862, %v2863
    %v2865 = vand.u32 %v2864, 4294901760
    %2866 = vmatpush1.msra.mxu0 %v2865
    %2867 = vmatprep.subr.mxu0 0.0
    %2868 = vmatpush2.msra.mxu0 0.0
    %2869 = vmatprep.subr.mxu0 0.0
    %2870 = vmatpush2.msra.mxu0 0.0
    %2871 = vmatprep.subr.mxu0 0.0
    %2872 = vmatpush2.msra.mxu0 0.0
    %2873 = vmatprep.subr.mxu0 0.0
    %2874 = vmatpush2.msra.mxu0 0.0
    %2875 = vmatprep.subr.mxu0 0.0
    %2876 = vmatpush2.msra.mxu0 0.0
    %2877 = vmatprep.subr.mxu0 0.0
    %2878 = vmatpush2.msra.mxu0 0.0
    %2879 = vmatprep.subr.mxu0 0.0
    %2880 = vmatpush2.msra.mxu0 0.0
    %2881 = vmatprep.subr.mxu0 0.0
    %2882 = vmatpush2.msra.mxu0 0.0
    %2883 = vmatprep.subr.mxu0 0.0
    %2884 = vmatpush2.msra.mxu0 0.0
    %2885 = vmatprep.subr.mxu0 0.0
    %2886 = vmatpush2.msra.mxu0 0.0
    %2887 = vmatprep.subr.mxu0 0.0
    %2888 = vmatpush2.msra.mxu0 0.0
    %2889 = vmatprep.subr.mxu0 0.0
    %2890 = vmatpush2.msra.mxu0 0.0
    %2891 = vmatprep.subr.mxu0 0.0
    %2892 = vmatpush2.msra.mxu0 0.0
    %2893 = vmatprep.subr.mxu0 0.0
    %2894 = vmatpush2.msra.mxu0 0.0
    %2895 = vmatprep.subr.mxu0 0.0
    %2896 = vmatpush2.msra.mxu0 0.0
    %2897 = vmatprep.subr.mxu0 0.0
    %2898 = vmatpush2.msra.mxu0 0.0
    %2899 = vmatprep.mubr.f32.mxu0 0.0
    %v2900 = vand.u32 %v2721, 4294901760
    %2901 = vmatmul.mubr.f32.gmra.mxu0 %v2900
    %v2902 = vpop.f32.mrf.mxu0
    %v2903 = vadd.f32 %v2802, %v2902
    %v2904 = vpop.f32.mrf.mxu0
    %2905 = vmatprep.mubr.f32.mxu0 0.0
    %v2906 = vand.u32 %v2724, 4294901760
    %2907 = vmatmul.mubr.f32.gmra.mxu0 %v2906
    %v2908 = vpop.f32.mrf.mxu0
    %v2909 = vadd.f32 %v2812, %v2908
    %v2910 = vpop.f32.mrf.mxu0
    %2911 = vdwg.mxu0
    %2912 = vmatprep.subr.mxu0 0.0
    %2913 = vmatpush1.msra.mxu0 0.0
    %2914 = vmatprep.subr.mxu0 0.0
    %2915 = vmatpush1.msra.mxu0 0.0
    %2916 = vmatprep.subr.mxu0 0.0
    %2917 = vmatpush1.msra.mxu0 0.0
    %2918 = vmatprep.subr.mxu0 0.0
    %2919 = vmatpush1.msra.mxu0 0.0
    %2920 = vmatprep.subr.mxu0 0.0
    %2921 = vmatpush1.msra.mxu0 0.0
    %2922 = vmatprep.subr.mxu0 0.0
    %2923 = vmatpush1.msra.mxu0 0.0
    %2924 = vmatprep.subr.mxu0 0.0
    %2925 = vmatpush1.msra.mxu0 0.0
    %2926 = vmatprep.subr.mxu0 0.0
    %2927 = vmatpush1.msra.mxu0 0.0
    %2928 = vmatprep.subr.mxu0 0.0
    %2929 = vmatpush1.msra.mxu0 0.0
    %2930 = vmatprep.subr.mxu0 0.0
    %2931 = vmatpush1.msra.mxu0 0.0
    %2932 = vmatprep.subr.mxu0 0.0
    %2933 = vmatpush1.msra.mxu0 0.0
    %2934 = vmatprep.subr.mxu0 0.0
    %2935 = vmatpush1.msra.mxu0 0.0
    %2936 = vmatprep.subr.mxu0 0.0
    %v2937 = vand.u32 %v2719, 4294901760
    %v2938 = vsub.f32 %v2719, %v2937
    %2939 = vmatpush1.msra.mxu0 %v2938
    %2940 = vmatprep.subr.mxu0 0.0
    %v2941 = vand.u32 %v2718, 4294901760
    %v2942 = vsub.f32 %v2718, %v2941
    %2943 = vmatpush1.msra.mxu0 %v2942
    %2944 = vmatprep.subr.mxu0 0.0
    %v2945 = vand.u32 %v2717, 4294901760
    %v2946 = vsub.f32 %v2717, %v2945
    %2947 = vmatpush1.msra.mxu0 %v2946
    %2948 = vmatprep.subr.mxu0 0.0
    %v2949 = vand.u32 %v2716, 4294901760
    %v2950 = vsub.f32 %v2716, %v2949
    %2951 = vmatpush1.msra.mxu0 %v2950
    %2952 = vmatprep.subr.mxu0 0.0
    %2953 = vmatpush2.msra.mxu0 0.0
    %2954 = vmatprep.subr.mxu0 0.0
    %2955 = vmatpush2.msra.mxu0 0.0
    %2956 = vmatprep.subr.mxu0 0.0
    %2957 = vmatpush2.msra.mxu0 0.0
    %2958 = vmatprep.subr.mxu0 0.0
    %2959 = vmatpush2.msra.mxu0 0.0
    %2960 = vmatprep.subr.mxu0 0.0
    %2961 = vmatpush2.msra.mxu0 0.0
    %2962 = vmatprep.subr.mxu0 0.0
    %2963 = vmatpush2.msra.mxu0 0.0
    %2964 = vmatprep.subr.mxu0 0.0
    %2965 = vmatpush2.msra.mxu0 0.0
    %2966 = vmatprep.subr.mxu0 0.0
    %2967 = vmatpush2.msra.mxu0 0.0
    %2968 = vmatprep.subr.mxu0 0.0
    %2969 = vmatpush2.msra.mxu0 0.0
    %2970 = vmatprep.subr.mxu0 0.0
    %2971 = vmatpush2.msra.mxu0 0.0
    %2972 = vmatprep.subr.mxu0 0.0
    %2973 = vmatpush2.msra.mxu0 0.0
    %2974 = vmatprep.subr.mxu0 0.0
    %2975 = vmatpush2.msra.mxu0 0.0
    %2976 = vmatprep.subr.mxu0 0.0
    %2977 = vmatpush2.msra.mxu0 0.0
    %2978 = vmatprep.subr.mxu0 0.0
    %2979 = vmatpush2.msra.mxu0 0.0
    %2980 = vmatprep.subr.mxu0 0.0
    %2981 = vmatpush2.msra.mxu0 0.0
    %2982 = vmatprep.subr.mxu0 0.0
    %2983 = vmatpush2.msra.mxu0 0.0
    %2984 = vmatprep.mubr.f32.mxu0 0.0
    %v2985 = vand.u32 %v2721, 4294901760
    %v2986 = vsub.f32 %v2721, %v2985
    %2987 = vmatmul.mubr.f32.gmra.mxu0 %v2986
    %v2988 = vpop.f32.mrf.mxu0
    %v2989 = vadd.f32 %v2903, %v2988
    %v2990 = vpop.f32.mrf.mxu0
    %2991 = vmatprep.mubr.f32.mxu0 0.0
    %v2992 = vand.u32 %v2724, 4294901760
    %v2993 = vsub.f32 %v2724, %v2992
    %2994 = vmatmul.mubr.f32.gmra.mxu0 %v2993
    %v2995 = vpop.f32.mrf.mxu0
    %v2996 = vadd.f32 %v2909, %v2995
    %v2997 = vpop.f32.mrf.mxu0
    %2998 = vdwg.mxu0
    %2999 = vmatprep.subr.mxu0 0.0
    %3000 = vmatpush1.msra.mxu0 0.0
    %3001 = vmatprep.subr.mxu0 0.0
    %3002 = vmatpush1.msra.mxu0 0.0
    %3003 = vmatprep.subr.mxu0 0.0
    %3004 = vmatpush1.msra.mxu0 0.0
    %3005 = vmatprep.subr.mxu0 0.0
    %3006 = vmatpush1.msra.mxu0 0.0
    %3007 = vmatprep.subr.mxu0 0.0
    %3008 = vmatpush1.msra.mxu0 0.0
    %3009 = vmatprep.subr.mxu0 0.0
    %3010 = vmatpush1.msra.mxu0 0.0
    %3011 = vmatprep.subr.mxu0 0.0
    %3012 = vmatpush1.msra.mxu0 0.0
    %3013 = vmatprep.subr.mxu0 0.0
    %3014 = vmatpush1.msra.mxu0 0.0
    %3015 = vmatprep.subr.mxu0 0.0
    %3016 = vmatpush1.msra.mxu0 0.0
    %3017 = vmatprep.subr.mxu0 0.0
    %3018 = vmatpush1.msra.mxu0 0.0
    %3019 = vmatprep.subr.mxu0 0.0
    %3020 = vmatpush1.msra.mxu0 0.0
    %3021 = vmatprep.subr.mxu0 0.0
    %3022 = vmatpush1.msra.mxu0 0.0
    %3023 = vmatprep.subr.mxu0 0.0
    %v3024 = vand.u32 %v2719, 4294901760
    %3025 = vmatpush1.msra.mxu0 %v3024
    %3026 = vmatprep.subr.mxu0 0.0
    %v3027 = vand.u32 %v2718, 4294901760
    %3028 = vmatpush1.msra.mxu0 %v3027
    %3029 = vmatprep.subr.mxu0 0.0
    %v3030 = vand.u32 %v2717, 4294901760
    %3031 = vmatpush1.msra.mxu0 %v3030
    %3032 = vmatprep.subr.mxu0 0.0
    %v3033 = vand.u32 %v2716, 4294901760
    %3034 = vmatpush1.msra.mxu0 %v3033
    %3035 = vmatprep.subr.mxu0 0.0
    %3036 = vmatpush2.msra.mxu0 0.0
    %3037 = vmatprep.subr.mxu0 0.0
    %3038 = vmatpush2.msra.mxu0 0.0
    %3039 = vmatprep.subr.mxu0 0.0
    %3040 = vmatpush2.msra.mxu0 0.0
    %3041 = vmatprep.subr.mxu0 0.0
    %3042 = vmatpush2.msra.mxu0 0.0
    %3043 = vmatprep.subr.mxu0 0.0
    %3044 = vmatpush2.msra.mxu0 0.0
    %3045 = vmatprep.subr.mxu0 0.0
    %3046 = vmatpush2.msra.mxu0 0.0
    %3047 = vmatprep.subr.mxu0 0.0
    %3048 = vmatpush2.msra.mxu0 0.0
    %3049 = vmatprep.subr.mxu0 0.0
    %3050 = vmatpush2.msra.mxu0 0.0
    %3051 = vmatprep.subr.mxu0 0.0
    %3052 = vmatpush2.msra.mxu0 0.0
    %3053 = vmatprep.subr.mxu0 0.0
    %3054 = vmatpush2.msra.mxu0 0.0
    %3055 = vmatprep.subr.mxu0 0.0
    %3056 = vmatpush2.msra.mxu0 0.0
    %3057 = vmatprep.subr.mxu0 0.0
    %3058 = vmatpush2.msra.mxu0 0.0
    %3059 = vmatprep.subr.mxu0 0.0
    %3060 = vmatpush2.msra.mxu0 0.0
    %3061 = vmatprep.subr.mxu0 0.0
    %3062 = vmatpush2.msra.mxu0 0.0
    %3063 = vmatprep.subr.mxu0 0.0
    %3064 = vmatpush2.msra.mxu0 0.0
    %3065 = vmatprep.subr.mxu0 0.0
    %3066 = vmatpush2.msra.mxu0 0.0
    %3067 = vmatprep.mubr.f32.mxu0 0.0
    %v3068 = vand.u32 %v2721, 4294901760
    %v3069 = vsub.f32 %v2721, %v3068
    %v3070 = vand.u32 %v3069, 4294901760
    %3071 = vmatmul.mubr.f32.gmra.mxu0 %v3070
    %v3072 = vpop.f32.mrf.mxu0
    %v3073 = vadd.f32 %v2989, %v3072
    %v3074 = vpop.f32.mrf.mxu0
    %3075 = vmatprep.mubr.f32.mxu0 0.0
    %v3076 = vand.u32 %v2724, 4294901760
    %v3077 = vsub.f32 %v2724, %v3076
    %v3078 = vand.u32 %v3077, 4294901760
    %3079 = vmatmul.mubr.f32.gmra.mxu0 %v3078
    %v3080 = vpop.f32.mrf.mxu0
    %v3081 = vadd.f32 %v2996, %v3080
    %v3082 = vpop.f32.mrf.mxu0
    %3083 = vdwg.mxu0
    %3084 = vmatprep.subr.mxu0 0.0
    %3085 = vmatpush1.msra.mxu0 0.0
    %3086 = vmatprep.subr.mxu0 0.0
    %3087 = vmatpush1.msra.mxu0 0.0
    %3088 = vmatprep.subr.mxu0 0.0
    %3089 = vmatpush1.msra.mxu0 0.0
    %3090 = vmatprep.subr.mxu0 0.0
    %3091 = vmatpush1.msra.mxu0 0.0
    %3092 = vmatprep.subr.mxu0 0.0
    %3093 = vmatpush1.msra.mxu0 0.0
    %3094 = vmatprep.subr.mxu0 0.0
    %3095 = vmatpush1.msra.mxu0 0.0
    %3096 = vmatprep.subr.mxu0 0.0
    %3097 = vmatpush1.msra.mxu0 0.0
    %3098 = vmatprep.subr.mxu0 0.0
    %3099 = vmatpush1.msra.mxu0 0.0
    %3100 = vmatprep.subr.mxu0 0.0
    %3101 = vmatpush1.msra.mxu0 0.0
    %3102 = vmatprep.subr.mxu0 0.0
    %3103 = vmatpush1.msra.mxu0 0.0
    %3104 = vmatprep.subr.mxu0 0.0
    %3105 = vmatpush1.msra.mxu0 0.0
    %3106 = vmatprep.subr.mxu0 0.0
    %3107 = vmatpush1.msra.mxu0 0.0
    %3108 = vmatprep.subr.mxu0 0.0
    %v3109 = vand.u32 %v2719, 4294901760
    %v3110 = vsub.f32 %v2719, %v3109
    %v3111 = vand.u32 %v3110, 4294901760
    %3112 = vmatpush1.msra.mxu0 %v3111
    %3113 = vmatprep.subr.mxu0 0.0
    %v3114 = vand.u32 %v2718, 4294901760
    %v3115 = vsub.f32 %v2718, %v3114
    %v3116 = vand.u32 %v3115, 4294901760
    %3117 = vmatpush1.msra.mxu0 %v3116
    %3118 = vmatprep.subr.mxu0 0.0
    %v3119 = vand.u32 %v2717, 4294901760
    %v3120 = vsub.f32 %v2717, %v3119
    %v3121 = vand.u32 %v3120, 4294901760
    %3122 = vmatpush1.msra.mxu0 %v3121
    %3123 = vmatprep.subr.mxu0 0.0
    %v3124 = vand.u32 %v2716, 4294901760
    %v3125 = vsub.f32 %v2716, %v3124
    %v3126 = vand.u32 %v3125, 4294901760
    %3127 = vmatpush1.msra.mxu0 %v3126
    %3128 = vmatprep.subr.mxu0 0.0
    %3129 = vmatpush2.msra.mxu0 0.0
    %3130 = vmatprep.subr.mxu0 0.0
    %3131 = vmatpush2.msra.mxu0 0.0
    %3132 = vmatprep.subr.mxu0 0.0
    %3133 = vmatpush2.msra.mxu0 0.0
    %3134 = vmatprep.subr.mxu0 0.0
    %3135 = vmatpush2.msra.mxu0 0.0
    %3136 = vmatprep.subr.mxu0 0.0
    %3137 = vmatpush2.msra.mxu0 0.0
    %3138 = vmatprep.subr.mxu0 0.0
    %3139 = vmatpush2.msra.mxu0 0.0
    %3140 = vmatprep.subr.mxu0 0.0
    %3141 = vmatpush2.msra.mxu0 0.0
    %3142 = vmatprep.subr.mxu0 0.0
    %3143 = vmatpush2.msra.mxu0 0.0
    %3144 = vmatprep.subr.mxu0 0.0
    %3145 = vmatpush2.msra.mxu0 0.0
    %3146 = vmatprep.subr.mxu0 0.0
    %3147 = vmatpush2.msra.mxu0 0.0
    %3148 = vmatprep.subr.mxu0 0.0
    %3149 = vmatpush2.msra.mxu0 0.0
    %3150 = vmatprep.subr.mxu0 0.0
    %3151 = vmatpush2.msra.mxu0 0.0
    %3152 = vmatprep.subr.mxu0 0.0
    %3153 = vmatpush2.msra.mxu0 0.0
    %3154 = vmatprep.subr.mxu0 0.0
    %3155 = vmatpush2.msra.mxu0 0.0
    %3156 = vmatprep.subr.mxu0 0.0
    %3157 = vmatpush2.msra.mxu0 0.0
    %3158 = vmatprep.subr.mxu0 0.0
    %3159 = vmatpush2.msra.mxu0 0.0
    %3160 = vmatprep.mubr.f32.mxu0 0.0
    %v3161 = vand.u32 %v2721, 4294901760
    %3162 = vmatmul.mubr.f32.gmra.mxu0 %v3161
    %v3163 = vpop.f32.mrf.mxu0
    %v3164 = vadd.f32 %v3073, %v3163
    %v3165 = vpop.f32.mrf.mxu0
    %3166 = vmatprep.mubr.f32.mxu0 0.0
    %v3167 = vand.u32 %v2724, 4294901760
    %3168 = vmatmul.mubr.f32.gmra.mxu0 %v3167
    %v3169 = vpop.f32.mrf.mxu0
    %v3170 = vadd.f32 %v3081, %v3169
    %v3171 = vpop.f32.mrf.mxu0
    %3172 = vdwg.mxu0
    %3173 = vmatprep.subr.mxu0 0.0
    %3174 = vmatpush1.msra.mxu0 0.0
    %3175 = vmatprep.subr.mxu0 0.0
    %3176 = vmatpush1.msra.mxu0 0.0
    %3177 = vmatprep.subr.mxu0 0.0
    %3178 = vmatpush1.msra.mxu0 0.0
    %3179 = vmatprep.subr.mxu0 0.0
    %3180 = vmatpush1.msra.mxu0 0.0
    %3181 = vmatprep.subr.mxu0 0.0
    %3182 = vmatpush1.msra.mxu0 0.0
    %3183 = vmatprep.subr.mxu0 0.0
    %3184 = vmatpush1.msra.mxu0 0.0
    %3185 = vmatprep.subr.mxu0 0.0
    %3186 = vmatpush1.msra.mxu0 0.0
    %3187 = vmatprep.subr.mxu0 0.0
    %3188 = vmatpush1.msra.mxu0 0.0
    %3189 = vmatprep.subr.mxu0 0.0
    %3190 = vmatpush1.msra.mxu0 0.0
    %3191 = vmatprep.subr.mxu0 0.0
    %3192 = vmatpush1.msra.mxu0 0.0
    %3193 = vmatprep.subr.mxu0 0.0
    %3194 = vmatpush1.msra.mxu0 0.0
    %3195 = vmatprep.subr.mxu0 0.0
    %3196 = vmatpush1.msra.mxu0 0.0
    %3197 = vmatprep.subr.mxu0 0.0
    %v3198 = vand.u32 %v2719, 4294901760
    %3199 = vmatpush1.msra.mxu0 %v3198
    %3200 = vmatprep.subr.mxu0 0.0
    %v3201 = vand.u32 %v2718, 4294901760
    %3202 = vmatpush1.msra.mxu0 %v3201
    %3203 = vmatprep.subr.mxu0 0.0
    %v3204 = vand.u32 %v2717, 4294901760
    %3205 = vmatpush1.msra.mxu0 %v3204
    %3206 = vmatprep.subr.mxu0 0.0
    %v3207 = vand.u32 %v2716, 4294901760
    %3208 = vmatpush1.msra.mxu0 %v3207
    %3209 = vmatprep.subr.mxu0 0.0
    %3210 = vmatpush2.msra.mxu0 0.0
    %3211 = vmatprep.subr.mxu0 0.0
    %3212 = vmatpush2.msra.mxu0 0.0
    %3213 = vmatprep.subr.mxu0 0.0
    %3214 = vmatpush2.msra.mxu0 0.0
    %3215 = vmatprep.subr.mxu0 0.0
    %3216 = vmatpush2.msra.mxu0 0.0
    %3217 = vmatprep.subr.mxu0 0.0
    %3218 = vmatpush2.msra.mxu0 0.0
    %3219 = vmatprep.subr.mxu0 0.0
    %3220 = vmatpush2.msra.mxu0 0.0
    %3221 = vmatprep.subr.mxu0 0.0
    %3222 = vmatpush2.msra.mxu0 0.0
    %3223 = vmatprep.subr.mxu0 0.0
    %3224 = vmatpush2.msra.mxu0 0.0
    %3225 = vmatprep.subr.mxu0 0.0
    %3226 = vmatpush2.msra.mxu0 0.0
    %3227 = vmatprep.subr.mxu0 0.0
    %3228 = vmatpush2.msra.mxu0 0.0
    %3229 = vmatprep.subr.mxu0 0.0
    %3230 = vmatpush2.msra.mxu0 0.0
    %3231 = vmatprep.subr.mxu0 0.0
    %3232 = vmatpush2.msra.mxu0 0.0
    %3233 = vmatprep.subr.mxu0 0.0
    %3234 = vmatpush2.msra.mxu0 0.0
    %3235 = vmatprep.subr.mxu0 0.0
    %3236 = vmatpush2.msra.mxu0 0.0
    %3237 = vmatprep.subr.mxu0 0.0
    %3238 = vmatpush2.msra.mxu0 0.0
    %3239 = vmatprep.subr.mxu0 0.0
    %3240 = vmatpush2.msra.mxu0 0.0
    %3241 = vmatprep.mubr.f32.mxu0 0.0
    %v3242 = vand.u32 %v2721, 4294901760
    %3243 = vmatmul.mubr.f32.gmra.mxu0 %v3242
    %v3244 = vpop.f32.mrf.mxu0
    %v3245 = vadd.f32 %v3164, %v3244
    %v3246 = vpop.f32.mrf.mxu0
    %3247 = vmatprep.mubr.f32.mxu0 0.0
    %v3248 = vand.u32 %v2724, 4294901760
    %3249 = vmatmul.mubr.f32.gmra.mxu0 %v3248
    %v3250 = vpop.f32.mrf.mxu0
    %v3251 = vadd.f32 %v3170, %v3250
    %v3252 = vpop.f32.mrf.mxu0
    %3253 = vdwg.mxu0
    %v3254 = vadd.f32 %v2202, %v3245
    %v3255 = vadd.f32 %v2203, %v3251
    %3256 = vst.msk [vmem:[#allocation10] sm:$0xff] %vm83, %v3254
    %3257 = vst.msk [vmem:[#allocation10 + $0x8] sm:$0xff] %vm83, %v3255
    %s3258 = scalar_lea.vmem [#allocation2], 64
    %v3259 = vld [vmem:[%s3258] sm:$0xff]
    %v3260 = vld [vmem:[%s3258 + $0x8] sm:$0xff]
    %v3261 = vld [vmem:[%s3258 + $0x10] sm:$0xff]
    %v3262 = vld [vmem:[%s3258 + $0x18] sm:$0xff]
    %v3263 = vld [vmem:[%s3258 + $0x20] sm:$0xff]
    %v3264 = vld [vmem:[%s3258 + $0x28] sm:$0xff]
    %v3265 = vld [vmem:[%s3258 + $0x30] sm:$0xff]
    %v3266 = vld [vmem:[%s3258 + $0x38] sm:$0xff]
    %v3267 = vsel %vm83, %v3259, 0.0
    %v3268 = vsel %vm83, %v3261, 0.0
    %v3269 = vadd.f32 %v3267, %v3268
    %v3270 = vsel %vm83, %v3263, 0.0
    %v3271 = vadd.f32 %v3269, %v3270
    %v3272 = vsel %vm83, %v3265, 0.0
    %v3273 = vadd.f32 %v3271, %v3272
    %v3274 = vsel %vm83, %v3260, 0.0
    %v3275 = vsel %vm83, %v3262, 0.0
    %v3276 = vadd.f32 %v3274, %v3275
    %v3277 = vsel %vm83, %v3264, 0.0
    %v3278 = vadd.f32 %v3276, %v3277
    %v3279 = vsel %vm83, %v3266, 0.0
    %v3280 = vadd.f32 %v3278, %v3279
    %v3281 = vmul.f32 %v3273, %v98
    %v3282 = vmul.f32 %v3280, %v98
    %v3283 = vld [vmem:[#allocation5] sm:$0xff]
    %v3284 = vld [vmem:[#allocation5 + $0x8] sm:$0xff]
    %v3286 = vsel %vm103, %v3283, 0
    %v3289 = vsel %vm103, %v3284, 0
    %3291 = vmatprep.subr.mxu0 0.0
    %3292 = vmatpush1.msra.mxu0 0.0
    %3293 = vmatprep.subr.mxu0 0.0
    %3294 = vmatpush1.msra.mxu0 0.0
    %3295 = vmatprep.subr.mxu0 0.0
    %3296 = vmatpush1.msra.mxu0 0.0
    %3297 = vmatprep.subr.mxu0 0.0
    %3298 = vmatpush1.msra.mxu0 0.0
    %3299 = vmatprep.subr.mxu0 0.0
    %3300 = vmatpush1.msra.mxu0 0.0
    %3301 = vmatprep.subr.mxu0 0.0
    %3302 = vmatpush1.msra.mxu0 0.0
    %3303 = vmatprep.subr.mxu0 0.0
    %3304 = vmatpush1.msra.mxu0 0.0
    %3305 = vmatprep.subr.mxu0 0.0
    %3306 = vmatpush1.msra.mxu0 0.0
    %3307 = vmatprep.subr.mxu0 0.0
    %3308 = vmatpush1.msra.mxu0 0.0
    %3309 = vmatprep.subr.mxu0 0.0
    %3310 = vmatpush1.msra.mxu0 0.0
    %3311 = vmatprep.subr.mxu0 0.0
    %3312 = vmatpush1.msra.mxu0 0.0
    %3313 = vmatprep.subr.mxu0 0.0
    %3314 = vmatpush1.msra.mxu0 0.0
    %3315 = vmatprep.subr.mxu0 0.0
    %3316 = vmatpush1.msra.mxu0 0.0
    %3317 = vmatprep.subr.mxu0 0.0
    %3318 = vmatpush1.msra.mxu0 0.0
    %3319 = vmatprep.subr.mxu0 0.0
    %v3320 = vand.u32 %v3282, 4294901760
    %3321 = vmatpush1.msra.mxu0 %v3320
    %3322 = vmatprep.subr.mxu0 0.0
    %v3323 = vand.u32 %v3281, 4294901760
    %3324 = vmatpush1.msra.mxu0 %v3323
    %3325 = vmatprep.subr.mxu0 0.0
    %3326 = vmatpush2.msra.mxu0 0.0
    %3327 = vmatprep.subr.mxu0 0.0
    %3328 = vmatpush2.msra.mxu0 0.0
    %3329 = vmatprep.subr.mxu0 0.0
    %3330 = vmatpush2.msra.mxu0 0.0
    %3331 = vmatprep.subr.mxu0 0.0
    %3332 = vmatpush2.msra.mxu0 0.0
    %3333 = vmatprep.subr.mxu0 0.0
    %3334 = vmatpush2.msra.mxu0 0.0
    %3335 = vmatprep.subr.mxu0 0.0
    %3336 = vmatpush2.msra.mxu0 0.0
    %3337 = vmatprep.subr.mxu0 0.0
    %3338 = vmatpush2.msra.mxu0 0.0
    %3339 = vmatprep.subr.mxu0 0.0
    %3340 = vmatpush2.msra.mxu0 0.0
    %3341 = vmatprep.subr.mxu0 0.0
    %3342 = vmatpush2.msra.mxu0 0.0
    %3343 = vmatprep.subr.mxu0 0.0
    %3344 = vmatpush2.msra.mxu0 0.0
    %3345 = vmatprep.subr.mxu0 0.0
    %3346 = vmatpush2.msra.mxu0 0.0
    %3347 = vmatprep.subr.mxu0 0.0
    %3348 = vmatpush2.msra.mxu0 0.0
    %3349 = vmatprep.subr.mxu0 0.0
    %3350 = vmatpush2.msra.mxu0 0.0
    %3351 = vmatprep.subr.mxu0 0.0
    %3352 = vmatpush2.msra.mxu0 0.0
    %3353 = vmatprep.subr.mxu0 0.0
    %3354 = vmatpush2.msra.mxu0 0.0
    %3355 = vmatprep.subr.mxu0 0.0
    %3356 = vmatpush2.msra.mxu0 0.0
    %3357 = vmatprep.mubr.f32.mxu0 0.0
    %v3358 = vand.u32 %v3286, 4294901760
    %v3359 = vsub.f32 %v3286, %v3358
    %v3360 = vand.u32 %v3359, 4294901760
    %v3361 = vsub.f32 %v3359, %v3360
    %v3362 = vand.u32 %v3361, 4294901760
    %3363 = vmatmul.mubr.f32.gmra.mxu0 %v3362
    %v3364 = vpop.f32.mrf.mxu0
    %v3365 = vadd.f32 0.0, %v3364
    %v3366 = vpop.f32.mrf.mxu0
    %3367 = vmatprep.mubr.f32.mxu0 0.0
    %v3368 = vand.u32 %v3289, 4294901760
    %v3369 = vsub.f32 %v3289, %v3368
    %v3370 = vand.u32 %v3369, 4294901760
    %v3371 = vsub.f32 %v3369, %v3370
    %v3372 = vand.u32 %v3371, 4294901760
    %3373 = vmatmul.mubr.f32.gmra.mxu0 %v3372
    %v3374 = vpop.f32.mrf.mxu0
    %v3375 = vadd.f32 0.0, %v3374
    %v3376 = vpop.f32.mrf.mxu0
    %3377 = vdwg.mxu0
    %3378 = vmatprep.subr.mxu0 0.0
    %3379 = vmatpush1.msra.mxu0 0.0
    %3380 = vmatprep.subr.mxu0 0.0
    %3381 = vmatpush1.msra.mxu0 0.0
    %3382 = vmatprep.subr.mxu0 0.0
    %3383 = vmatpush1.msra.mxu0 0.0
    %3384 = vmatprep.subr.mxu0 0.0
    %3385 = vmatpush1.msra.mxu0 0.0
    %3386 = vmatprep.subr.mxu0 0.0
    %3387 = vmatpush1.msra.mxu0 0.0
    %3388 = vmatprep.subr.mxu0 0.0
    %3389 = vmatpush1.msra.mxu0 0.0
    %3390 = vmatprep.subr.mxu0 0.0
    %3391 = vmatpush1.msra.mxu0 0.0
    %3392 = vmatprep.subr.mxu0 0.0
    %3393 = vmatpush1.msra.mxu0 0.0
    %3394 = vmatprep.subr.mxu0 0.0
    %3395 = vmatpush1.msra.mxu0 0.0
    %3396 = vmatprep.subr.mxu0 0.0
    %3397 = vmatpush1.msra.mxu0 0.0
    %3398 = vmatprep.subr.mxu0 0.0
    %3399 = vmatpush1.msra.mxu0 0.0
    %3400 = vmatprep.subr.mxu0 0.0
    %3401 = vmatpush1.msra.mxu0 0.0
    %3402 = vmatprep.subr.mxu0 0.0
    %3403 = vmatpush1.msra.mxu0 0.0
    %3404 = vmatprep.subr.mxu0 0.0
    %3405 = vmatpush1.msra.mxu0 0.0
    %3406 = vmatprep.subr.mxu0 0.0
    %v3407 = vand.u32 %v3282, 4294901760
    %v3408 = vsub.f32 %v3282, %v3407
    %v3409 = vand.u32 %v3408, 4294901760
    %v3410 = vsub.f32 %v3408, %v3409
    %v3411 = vand.u32 %v3410, 4294901760
    %3412 = vmatpush1.msra.mxu0 %v3411
    %3413 = vmatprep.subr.mxu0 0.0
    %v3414 = vand.u32 %v3281, 4294901760
    %v3415 = vsub.f32 %v3281, %v3414
    %v3416 = vand.u32 %v3415, 4294901760
    %v3417 = vsub.f32 %v3415, %v3416
    %v3418 = vand.u32 %v3417, 4294901760
    %3419 = vmatpush1.msra.mxu0 %v3418
    %3420 = vmatprep.subr.mxu0 0.0
    %3421 = vmatpush2.msra.mxu0 0.0
    %3422 = vmatprep.subr.mxu0 0.0
    %3423 = vmatpush2.msra.mxu0 0.0
    %3424 = vmatprep.subr.mxu0 0.0
    %3425 = vmatpush2.msra.mxu0 0.0
    %3426 = vmatprep.subr.mxu0 0.0
    %3427 = vmatpush2.msra.mxu0 0.0
    %3428 = vmatprep.subr.mxu0 0.0
    %3429 = vmatpush2.msra.mxu0 0.0
    %3430 = vmatprep.subr.mxu0 0.0
    %3431 = vmatpush2.msra.mxu0 0.0
    %3432 = vmatprep.subr.mxu0 0.0
    %3433 = vmatpush2.msra.mxu0 0.0
    %3434 = vmatprep.subr.mxu0 0.0
    %3435 = vmatpush2.msra.mxu0 0.0
    %3436 = vmatprep.subr.mxu0 0.0
    %3437 = vmatpush2.msra.mxu0 0.0
    %3438 = vmatprep.subr.mxu0 0.0
    %3439 = vmatpush2.msra.mxu0 0.0
    %3440 = vmatprep.subr.mxu0 0.0
    %3441 = vmatpush2.msra.mxu0 0.0
    %3442 = vmatprep.subr.mxu0 0.0
    %3443 = vmatpush2.msra.mxu0 0.0
    %3444 = vmatprep.subr.mxu0 0.0
    %3445 = vmatpush2.msra.mxu0 0.0
    %3446 = vmatprep.subr.mxu0 0.0
    %3447 = vmatpush2.msra.mxu0 0.0
    %3448 = vmatprep.subr.mxu0 0.0
    %3449 = vmatpush2.msra.mxu0 0.0
    %3450 = vmatprep.subr.mxu0 0.0
    %3451 = vmatpush2.msra.mxu0 0.0
    %3452 = vmatprep.mubr.f32.mxu0 0.0
    %v3453 = vand.u32 %v3286, 4294901760
    %3454 = vmatmul.mubr.f32.gmra.mxu0 %v3453
    %v3455 = vpop.f32.mrf.mxu0
    %v3456 = vadd.f32 %v3365, %v3455
    %v3457 = vpop.f32.mrf.mxu0
    %3458 = vmatprep.mubr.f32.mxu0 0.0
    %v3459 = vand.u32 %v3289, 4294901760
    %3460 = vmatmul.mubr.f32.gmra.mxu0 %v3459
    %v3461 = vpop.f32.mrf.mxu0
    %v3462 = vadd.f32 %v3375, %v3461
    %v3463 = vpop.f32.mrf.mxu0
    %3464 = vdwg.mxu0
    %3465 = vmatprep.subr.mxu0 0.0
    %3466 = vmatpush1.msra.mxu0 0.0
    %3467 = vmatprep.subr.mxu0 0.0
    %3468 = vmatpush1.msra.mxu0 0.0
    %3469 = vmatprep.subr.mxu0 0.0
    %3470 = vmatpush1.msra.mxu0 0.0
    %3471 = vmatprep.subr.mxu0 0.0
    %3472 = vmatpush1.msra.mxu0 0.0
    %3473 = vmatprep.subr.mxu0 0.0
    %3474 = vmatpush1.msra.mxu0 0.0
    %3475 = vmatprep.subr.mxu0 0.0
    %3476 = vmatpush1.msra.mxu0 0.0
    %3477 = vmatprep.subr.mxu0 0.0
    %3478 = vmatpush1.msra.mxu0 0.0
    %3479 = vmatprep.subr.mxu0 0.0
    %3480 = vmatpush1.msra.mxu0 0.0
    %3481 = vmatprep.subr.mxu0 0.0
    %3482 = vmatpush1.msra.mxu0 0.0
    %3483 = vmatprep.subr.mxu0 0.0
    %3484 = vmatpush1.msra.mxu0 0.0
    %3485 = vmatprep.subr.mxu0 0.0
    %3486 = vmatpush1.msra.mxu0 0.0
    %3487 = vmatprep.subr.mxu0 0.0
    %3488 = vmatpush1.msra.mxu0 0.0
    %3489 = vmatprep.subr.mxu0 0.0
    %3490 = vmatpush1.msra.mxu0 0.0
    %3491 = vmatprep.subr.mxu0 0.0
    %3492 = vmatpush1.msra.mxu0 0.0
    %3493 = vmatprep.subr.mxu0 0.0
    %v3494 = vand.u32 %v3282, 4294901760
    %v3495 = vsub.f32 %v3282, %v3494
    %3496 = vmatpush1.msra.mxu0 %v3495
    %3497 = vmatprep.subr.mxu0 0.0
    %v3498 = vand.u32 %v3281, 4294901760
    %v3499 = vsub.f32 %v3281, %v3498
    %3500 = vmatpush1.msra.mxu0 %v3499
    %3501 = vmatprep.subr.mxu0 0.0
    %3502 = vmatpush2.msra.mxu0 0.0
    %3503 = vmatprep.subr.mxu0 0.0
    %3504 = vmatpush2.msra.mxu0 0.0
    %3505 = vmatprep.subr.mxu0 0.0
    %3506 = vmatpush2.msra.mxu0 0.0
    %3507 = vmatprep.subr.mxu0 0.0
    %3508 = vmatpush2.msra.mxu0 0.0
    %3509 = vmatprep.subr.mxu0 0.0
    %3510 = vmatpush2.msra.mxu0 0.0
    %3511 = vmatprep.subr.mxu0 0.0
    %3512 = vmatpush2.msra.mxu0 0.0
    %3513 = vmatprep.subr.mxu0 0.0
    %3514 = vmatpush2.msra.mxu0 0.0
    %3515 = vmatprep.subr.mxu0 0.0
    %3516 = vmatpush2.msra.mxu0 0.0
    %3517 = vmatprep.subr.mxu0 0.0
    %3518 = vmatpush2.msra.mxu0 0.0
    %3519 = vmatprep.subr.mxu0 0.0
    %3520 = vmatpush2.msra.mxu0 0.0
    %3521 = vmatprep.subr.mxu0 0.0
    %3522 = vmatpush2.msra.mxu0 0.0
    %3523 = vmatprep.subr.mxu0 0.0
    %3524 = vmatpush2.msra.mxu0 0.0
    %3525 = vmatprep.subr.mxu0 0.0
    %3526 = vmatpush2.msra.mxu0 0.0
    %3527 = vmatprep.subr.mxu0 0.0
    %3528 = vmatpush2.msra.mxu0 0.0
    %3529 = vmatprep.subr.mxu0 0.0
    %3530 = vmatpush2.msra.mxu0 0.0
    %3531 = vmatprep.subr.mxu0 0.0
    %3532 = vmatpush2.msra.mxu0 0.0
    %3533 = vmatprep.mubr.f32.mxu0 0.0
    %v3534 = vand.u32 %v3286, 4294901760
    %v3535 = vsub.f32 %v3286, %v3534
    %3536 = vmatmul.mubr.f32.gmra.mxu0 %v3535
    %v3537 = vpop.f32.mrf.mxu0
    %v3538 = vadd.f32 %v3456, %v3537
    %v3539 = vpop.f32.mrf.mxu0
    %3540 = vmatprep.mubr.f32.mxu0 0.0
    %v3541 = vand.u32 %v3289, 4294901760
    %v3542 = vsub.f32 %v3289, %v3541
    %3543 = vmatmul.mubr.f32.gmra.mxu0 %v3542
    %v3544 = vpop.f32.mrf.mxu0
    %v3545 = vadd.f32 %v3462, %v3544
    %v3546 = vpop.f32.mrf.mxu0
    %3547 = vdwg.mxu0
    %3548 = vmatprep.subr.mxu0 0.0
    %3549 = vmatpush1.msra.mxu0 0.0
    %3550 = vmatprep.subr.mxu0 0.0
    %3551 = vmatpush1.msra.mxu0 0.0
    %3552 = vmatprep.subr.mxu0 0.0
    %3553 = vmatpush1.msra.mxu0 0.0
    %3554 = vmatprep.subr.mxu0 0.0
    %3555 = vmatpush1.msra.mxu0 0.0
    %3556 = vmatprep.subr.mxu0 0.0
    %3557 = vmatpush1.msra.mxu0 0.0
    %3558 = vmatprep.subr.mxu0 0.0
    %3559 = vmatpush1.msra.mxu0 0.0
    %3560 = vmatprep.subr.mxu0 0.0
    %3561 = vmatpush1.msra.mxu0 0.0
    %3562 = vmatprep.subr.mxu0 0.0
    %3563 = vmatpush1.msra.mxu0 0.0
    %3564 = vmatprep.subr.mxu0 0.0
    %3565 = vmatpush1.msra.mxu0 0.0
    %3566 = vmatprep.subr.mxu0 0.0
    %3567 = vmatpush1.msra.mxu0 0.0
    %3568 = vmatprep.subr.mxu0 0.0
    %3569 = vmatpush1.msra.mxu0 0.0
    %3570 = vmatprep.subr.mxu0 0.0
    %3571 = vmatpush1.msra.mxu0 0.0
    %3572 = vmatprep.subr.mxu0 0.0
    %3573 = vmatpush1.msra.mxu0 0.0
    %3574 = vmatprep.subr.mxu0 0.0
    %3575 = vmatpush1.msra.mxu0 0.0
    %3576 = vmatprep.subr.mxu0 0.0
    %v3577 = vand.u32 %v3282, 4294901760
    %3578 = vmatpush1.msra.mxu0 %v3577
    %3579 = vmatprep.subr.mxu0 0.0
    %v3580 = vand.u32 %v3281, 4294901760
    %3581 = vmatpush1.msra.mxu0 %v3580
    %3582 = vmatprep.subr.mxu0 0.0
    %3583 = vmatpush2.msra.mxu0 0.0
    %3584 = vmatprep.subr.mxu0 0.0
    %3585 = vmatpush2.msra.mxu0 0.0
    %3586 = vmatprep.subr.mxu0 0.0
    %3587 = vmatpush2.msra.mxu0 0.0
    %3588 = vmatprep.subr.mxu0 0.0
    %3589 = vmatpush2.msra.mxu0 0.0
    %3590 = vmatprep.subr.mxu0 0.0
    %3591 = vmatpush2.msra.mxu0 0.0
    %3592 = vmatprep.subr.mxu0 0.0
    %3593 = vmatpush2.msra.mxu0 0.0
    %3594 = vmatprep.subr.mxu0 0.0
    %3595 = vmatpush2.msra.mxu0 0.0
    %3596 = vmatprep.subr.mxu0 0.0
    %3597 = vmatpush2.msra.mxu0 0.0
    %3598 = vmatprep.subr.mxu0 0.0
    %3599 = vmatpush2.msra.mxu0 0.0
    %3600 = vmatprep.subr.mxu0 0.0
    %3601 = vmatpush2.msra.mxu0 0.0
    %3602 = vmatprep.subr.mxu0 0.0
    %3603 = vmatpush2.msra.mxu0 0.0
    %3604 = vmatprep.subr.mxu0 0.0
    %3605 = vmatpush2.msra.mxu0 0.0
    %3606 = vmatprep.subr.mxu0 0.0
    %3607 = vmatpush2.msra.mxu0 0.0
    %3608 = vmatprep.subr.mxu0 0.0
    %3609 = vmatpush2.msra.mxu0 0.0
    %3610 = vmatprep.subr.mxu0 0.0
    %3611 = vmatpush2.msra.mxu0 0.0
    %3612 = vmatprep.subr.mxu0 0.0
    %3613 = vmatpush2.msra.mxu0 0.0
    %3614 = vmatprep.mubr.f32.mxu0 0.0
    %v3615 = vand.u32 %v3286, 4294901760
    %v3616 = vsub.f32 %v3286, %v3615
    %v3617 = vand.u32 %v3616, 4294901760
    %3618 = vmatmul.mubr.f32.gmra.mxu0 %v3617
    %v3619 = vpop.f32.mrf.mxu0
    %v3620 = vadd.f32 %v3538, %v3619
    %v3621 = vpop.f32.mrf.mxu0
    %3622 = vmatprep.mubr.f32.mxu0 0.0
    %v3623 = vand.u32 %v3289, 4294901760
    %v3624 = vsub.f32 %v3289, %v3623
    %v3625 = vand.u32 %v3624, 4294901760
    %3626 = vmatmul.mubr.f32.gmra.mxu0 %v3625
    %v3627 = vpop.f32.mrf.mxu0
    %v3628 = vadd.f32 %v3545, %v3627
    %v3629 = vpop.f32.mrf.mxu0
    %3630 = vdwg.mxu0
    %3631 = vmatprep.subr.mxu0 0.0
    %3632 = vmatpush1.msra.mxu0 0.0
    %3633 = vmatprep.subr.mxu0 0.0
    %3634 = vmatpush1.msra.mxu0 0.0
    %3635 = vmatprep.subr.mxu0 0.0
    %3636 = vmatpush1.msra.mxu0 0.0
    %3637 = vmatprep.subr.mxu0 0.0
    %3638 = vmatpush1.msra.mxu0 0.0
    %3639 = vmatprep.subr.mxu0 0.0
    %3640 = vmatpush1.msra.mxu0 0.0
    %3641 = vmatprep.subr.mxu0 0.0
    %3642 = vmatpush1.msra.mxu0 0.0
    %3643 = vmatprep.subr.mxu0 0.0
    %3644 = vmatpush1.msra.mxu0 0.0
    %3645 = vmatprep.subr.mxu0 0.0
    %3646 = vmatpush1.msra.mxu0 0.0
    %3647 = vmatprep.subr.mxu0 0.0
    %3648 = vmatpush1.msra.mxu0 0.0
    %3649 = vmatprep.subr.mxu0 0.0
    %3650 = vmatpush1.msra.mxu0 0.0
    %3651 = vmatprep.subr.mxu0 0.0
    %3652 = vmatpush1.msra.mxu0 0.0
    %3653 = vmatprep.subr.mxu0 0.0
    %3654 = vmatpush1.msra.mxu0 0.0
    %3655 = vmatprep.subr.mxu0 0.0
    %3656 = vmatpush1.msra.mxu0 0.0
    %3657 = vmatprep.subr.mxu0 0.0
    %3658 = vmatpush1.msra.mxu0 0.0
    %3659 = vmatprep.subr.mxu0 0.0
    %v3660 = vand.u32 %v3282, 4294901760
    %v3661 = vsub.f32 %v3282, %v3660
    %v3662 = vand.u32 %v3661, 4294901760
    %3663 = vmatpush1.msra.mxu0 %v3662
    %3664 = vmatprep.subr.mxu0 0.0
    %v3665 = vand.u32 %v3281, 4294901760
    %v3666 = vsub.f32 %v3281, %v3665
    %v3667 = vand.u32 %v3666, 4294901760
    %3668 = vmatpush1.msra.mxu0 %v3667
    %3669 = vmatprep.subr.mxu0 0.0
    %3670 = vmatpush2.msra.mxu0 0.0
    %3671 = vmatprep.subr.mxu0 0.0
    %3672 = vmatpush2.msra.mxu0 0.0
    %3673 = vmatprep.subr.mxu0 0.0
    %3674 = vmatpush2.msra.mxu0 0.0
    %3675 = vmatprep.subr.mxu0 0.0
    %3676 = vmatpush2.msra.mxu0 0.0
    %3677 = vmatprep.subr.mxu0 0.0
    %3678 = vmatpush2.msra.mxu0 0.0
    %3679 = vmatprep.subr.mxu0 0.0
    %3680 = vmatpush2.msra.mxu0 0.0
    %3681 = vmatprep.subr.mxu0 0.0
    %3682 = vmatpush2.msra.mxu0 0.0
    %3683 = vmatprep.subr.mxu0 0.0
    %3684 = vmatpush2.msra.mxu0 0.0
    %3685 = vmatprep.subr.mxu0 0.0
    %3686 = vmatpush2.msra.mxu0 0.0
    %3687 = vmatprep.subr.mxu0 0.0
    %3688 = vmatpush2.msra.mxu0 0.0
    %3689 = vmatprep.subr.mxu0 0.0
    %3690 = vmatpush2.msra.mxu0 0.0
    %3691 = vmatprep.subr.mxu0 0.0
    %3692 = vmatpush2.msra.mxu0 0.0
    %3693 = vmatprep.subr.mxu0 0.0
    %3694 = vmatpush2.msra.mxu0 0.0
    %3695 = vmatprep.subr.mxu0 0.0
    %3696 = vmatpush2.msra.mxu0 0.0
    %3697 = vmatprep.subr.mxu0 0.0
    %3698 = vmatpush2.msra.mxu0 0.0
    %3699 = vmatprep.subr.mxu0 0.0
    %3700 = vmatpush2.msra.mxu0 0.0
    %3701 = vmatprep.mubr.f32.mxu0 0.0
    %v3702 = vand.u32 %v3286, 4294901760
    %3703 = vmatmul.mubr.f32.gmra.mxu0 %v3702
    %v3704 = vpop.f32.mrf.mxu0
    %v3705 = vadd.f32 %v3620, %v3704
    %v3706 = vpop.f32.mrf.mxu0
    %3707 = vmatprep.mubr.f32.mxu0 0.0
    %v3708 = vand.u32 %v3289, 4294901760
    %3709 = vmatmul.mubr.f32.gmra.mxu0 %v3708
    %v3710 = vpop.f32.mrf.mxu0
    %v3711 = vadd.f32 %v3628, %v3710
    %v3712 = vpop.f32.mrf.mxu0
    %3713 = vdwg.mxu0
    %3714 = vmatprep.subr.mxu0 0.0
    %3715 = vmatpush1.msra.mxu0 0.0
    %3716 = vmatprep.subr.mxu0 0.0
    %3717 = vmatpush1.msra.mxu0 0.0
    %3718 = vmatprep.subr.mxu0 0.0
    %3719 = vmatpush1.msra.mxu0 0.0
    %3720 = vmatprep.subr.mxu0 0.0
    %3721 = vmatpush1.msra.mxu0 0.0
    %3722 = vmatprep.subr.mxu0 0.0
    %3723 = vmatpush1.msra.mxu0 0.0
    %3724 = vmatprep.subr.mxu0 0.0
    %3725 = vmatpush1.msra.mxu0 0.0
    %3726 = vmatprep.subr.mxu0 0.0
    %3727 = vmatpush1.msra.mxu0 0.0
    %3728 = vmatprep.subr.mxu0 0.0
    %3729 = vmatpush1.msra.mxu0 0.0
    %3730 = vmatprep.subr.mxu0 0.0
    %3731 = vmatpush1.msra.mxu0 0.0
    %3732 = vmatprep.subr.mxu0 0.0
    %3733 = vmatpush1.msra.mxu0 0.0
    %3734 = vmatprep.subr.mxu0 0.0
    %3735 = vmatpush1.msra.mxu0 0.0
    %3736 = vmatprep.subr.mxu0 0.0
    %3737 = vmatpush1.msra.mxu0 0.0
    %3738 = vmatprep.subr.mxu0 0.0
    %3739 = vmatpush1.msra.mxu0 0.0
    %3740 = vmatprep.subr.mxu0 0.0
    %3741 = vmatpush1.msra.mxu0 0.0
    %3742 = vmatprep.subr.mxu0 0.0
    %v3743 = vand.u32 %v3282, 4294901760
    %3744 = vmatpush1.msra.mxu0 %v3743
    %3745 = vmatprep.subr.mxu0 0.0
    %v3746 = vand.u32 %v3281, 4294901760
    %3747 = vmatpush1.msra.mxu0 %v3746
    %3748 = vmatprep.subr.mxu0 0.0
    %3749 = vmatpush2.msra.mxu0 0.0
    %3750 = vmatprep.subr.mxu0 0.0
    %3751 = vmatpush2.msra.mxu0 0.0
    %3752 = vmatprep.subr.mxu0 0.0
    %3753 = vmatpush2.msra.mxu0 0.0
    %3754 = vmatprep.subr.mxu0 0.0
    %3755 = vmatpush2.msra.mxu0 0.0
    %3756 = vmatprep.subr.mxu0 0.0
    %3757 = vmatpush2.msra.mxu0 0.0
    %3758 = vmatprep.subr.mxu0 0.0
    %3759 = vmatpush2.msra.mxu0 0.0
    %3760 = vmatprep.subr.mxu0 0.0
    %3761 = vmatpush2.msra.mxu0 0.0
    %3762 = vmatprep.subr.mxu0 0.0
    %3763 = vmatpush2.msra.mxu0 0.0
    %3764 = vmatprep.subr.mxu0 0.0
    %3765 = vmatpush2.msra.mxu0 0.0
    %3766 = vmatprep.subr.mxu0 0.0
    %3767 = vmatpush2.msra.mxu0 0.0
    %3768 = vmatprep.subr.mxu0 0.0
    %3769 = vmatpush2.msra.mxu0 0.0
    %3770 = vmatprep.subr.mxu0 0.0
    %3771 = vmatpush2.msra.mxu0 0.0
    %3772 = vmatprep.subr.mxu0 0.0
    %3773 = vmatpush2.msra.mxu0 0.0
    %3774 = vmatprep.subr.mxu0 0.0
    %3775 = vmatpush2.msra.mxu0 0.0
    %3776 = vmatprep.subr.mxu0 0.0
    %3777 = vmatpush2.msra.mxu0 0.0
    %3778 = vmatprep.subr.mxu0 0.0
    %3779 = vmatpush2.msra.mxu0 0.0
    %3780 = vmatprep.mubr.f32.mxu0 0.0
    %v3781 = vand.u32 %v3286, 4294901760
    %3782 = vmatmul.mubr.f32.gmra.mxu0 %v3781
    %v3783 = vpop.f32.mrf.mxu0
    %v3784 = vadd.f32 %v3705, %v3783
    %v3785 = vpop.f32.mrf.mxu0
    %3786 = vmatprep.mubr.f32.mxu0 0.0
    %v3787 = vand.u32 %v3289, 4294901760
    %3788 = vmatmul.mubr.f32.gmra.mxu0 %v3787
    %v3789 = vpop.f32.mrf.mxu0
    %v3790 = vadd.f32 %v3711, %v3789
    %v3791 = vpop.f32.mrf.mxu0
    %3792 = vdwg.mxu0
    %v3793 = vld [vmem:[#allocation7] sm:$0xff]
    %v3794 = vld [vmem:[#allocation7 + $0x8] sm:$0xff]
    %v3795 = vld [vmem:[#allocation7 + $0x10] sm:$0xff]
    %v3796 = vld [vmem:[#allocation7 + $0x18] sm:$0xff]
    %v3798 = vsel %vm83, %v3784, 0
    %v3801 = vsel %vm83, %v3790, 0
    %3803 = vmatprep.subr.mxu0 0.0
    %3804 = vmatpush1.msra.mxu0 0.0
    %3805 = vmatprep.subr.mxu0 0.0
    %3806 = vmatpush1.msra.mxu0 0.0
    %3807 = vmatprep.subr.mxu0 0.0
    %3808 = vmatpush1.msra.mxu0 0.0
    %3809 = vmatprep.subr.mxu0 0.0
    %3810 = vmatpush1.msra.mxu0 0.0
    %3811 = vmatprep.subr.mxu0 0.0
    %3812 = vmatpush1.msra.mxu0 0.0
    %3813 = vmatprep.subr.mxu0 0.0
    %3814 = vmatpush1.msra.mxu0 0.0
    %3815 = vmatprep.subr.mxu0 0.0
    %3816 = vmatpush1.msra.mxu0 0.0
    %3817 = vmatprep.subr.mxu0 0.0
    %3818 = vmatpush1.msra.mxu0 0.0
    %3819 = vmatprep.subr.mxu0 0.0
    %3820 = vmatpush1.msra.mxu0 0.0
    %3821 = vmatprep.subr.mxu0 0.0
    %3822 = vmatpush1.msra.mxu0 0.0
    %3823 = vmatprep.subr.mxu0 0.0
    %3824 = vmatpush1.msra.mxu0 0.0
    %3825 = vmatprep.subr.mxu0 0.0
    %3826 = vmatpush1.msra.mxu0 0.0
    %3827 = vmatprep.subr.mxu0 0.0
    %v3828 = vand.u32 %v3796, 4294901760
    %3829 = vmatpush1.msra.mxu0 %v3828
    %3830 = vmatprep.subr.mxu0 0.0
    %v3831 = vand.u32 %v3795, 4294901760
    %3832 = vmatpush1.msra.mxu0 %v3831
    %3833 = vmatprep.subr.mxu0 0.0
    %v3834 = vand.u32 %v3794, 4294901760
    %3835 = vmatpush1.msra.mxu0 %v3834
    %3836 = vmatprep.subr.mxu0 0.0
    %v3837 = vand.u32 %v3793, 4294901760
    %3838 = vmatpush1.msra.mxu0 %v3837
    %3839 = vmatprep.subr.mxu0 0.0
    %3840 = vmatpush2.msra.mxu0 0.0
    %3841 = vmatprep.subr.mxu0 0.0
    %3842 = vmatpush2.msra.mxu0 0.0
    %3843 = vmatprep.subr.mxu0 0.0
    %3844 = vmatpush2.msra.mxu0 0.0
    %3845 = vmatprep.subr.mxu0 0.0
    %3846 = vmatpush2.msra.mxu0 0.0
    %3847 = vmatprep.subr.mxu0 0.0
    %3848 = vmatpush2.msra.mxu0 0.0
    %3849 = vmatprep.subr.mxu0 0.0
    %3850 = vmatpush2.msra.mxu0 0.0
    %3851 = vmatprep.subr.mxu0 0.0
    %3852 = vmatpush2.msra.mxu0 0.0
    %3853 = vmatprep.subr.mxu0 0.0
    %3854 = vmatpush2.msra.mxu0 0.0
    %3855 = vmatprep.subr.mxu0 0.0
    %3856 = vmatpush2.msra.mxu0 0.0
    %3857 = vmatprep.subr.mxu0 0.0
    %3858 = vmatpush2.msra.mxu0 0.0
    %3859 = vmatprep.subr.mxu0 0.0
    %3860 = vmatpush2.msra.mxu0 0.0
    %3861 = vmatprep.subr.mxu0 0.0
    %3862 = vmatpush2.msra.mxu0 0.0
    %3863 = vmatprep.subr.mxu0 0.0
    %3864 = vmatpush2.msra.mxu0 0.0
    %3865 = vmatprep.subr.mxu0 0.0
    %3866 = vmatpush2.msra.mxu0 0.0
    %3867 = vmatprep.subr.mxu0 0.0
    %3868 = vmatpush2.msra.mxu0 0.0
    %3869 = vmatprep.subr.mxu0 0.0
    %3870 = vmatpush2.msra.mxu0 0.0
    %3871 = vmatprep.mubr.f32.mxu0 0.0
    %v3872 = vand.u32 %v3798, 4294901760
    %v3873 = vsub.f32 %v3798, %v3872
    %v3874 = vand.u32 %v3873, 4294901760
    %v3875 = vsub.f32 %v3873, %v3874
    %v3876 = vand.u32 %v3875, 4294901760
    %3877 = vmatmul.mubr.f32.gmra.mxu0 %v3876
    %v3878 = vpop.f32.mrf.mxu0
    %v3879 = vadd.f32 0.0, %v3878
    %v3880 = vpop.f32.mrf.mxu0
    %3881 = vmatprep.mubr.f32.mxu0 0.0
    %v3882 = vand.u32 %v3801, 4294901760
    %v3883 = vsub.f32 %v3801, %v3882
    %v3884 = vand.u32 %v3883, 4294901760
    %v3885 = vsub.f32 %v3883, %v3884
    %v3886 = vand.u32 %v3885, 4294901760
    %3887 = vmatmul.mubr.f32.gmra.mxu0 %v3886
    %v3888 = vpop.f32.mrf.mxu0
    %v3889 = vadd.f32 0.0, %v3888
    %v3890 = vpop.f32.mrf.mxu0
    %3891 = vdwg.mxu0
    %3892 = vmatprep.subr.mxu0 0.0
    %3893 = vmatpush1.msra.mxu0 0.0
    %3894 = vmatprep.subr.mxu0 0.0
    %3895 = vmatpush1.msra.mxu0 0.0
    %3896 = vmatprep.subr.mxu0 0.0
    %3897 = vmatpush1.msra.mxu0 0.0
    %3898 = vmatprep.subr.mxu0 0.0
    %3899 = vmatpush1.msra.mxu0 0.0
    %3900 = vmatprep.subr.mxu0 0.0
    %3901 = vmatpush1.msra.mxu0 0.0
    %3902 = vmatprep.subr.mxu0 0.0
    %3903 = vmatpush1.msra.mxu0 0.0
    %3904 = vmatprep.subr.mxu0 0.0
    %3905 = vmatpush1.msra.mxu0 0.0
    %3906 = vmatprep.subr.mxu0 0.0
    %3907 = vmatpush1.msra.mxu0 0.0
    %3908 = vmatprep.subr.mxu0 0.0
    %3909 = vmatpush1.msra.mxu0 0.0
    %3910 = vmatprep.subr.mxu0 0.0
    %3911 = vmatpush1.msra.mxu0 0.0
    %3912 = vmatprep.subr.mxu0 0.0
    %3913 = vmatpush1.msra.mxu0 0.0
    %3914 = vmatprep.subr.mxu0 0.0
    %3915 = vmatpush1.msra.mxu0 0.0
    %3916 = vmatprep.subr.mxu0 0.0
    %v3917 = vand.u32 %v3796, 4294901760
    %v3918 = vsub.f32 %v3796, %v3917
    %v3919 = vand.u32 %v3918, 4294901760
    %v3920 = vsub.f32 %v3918, %v3919
    %v3921 = vand.u32 %v3920, 4294901760
    %3922 = vmatpush1.msra.mxu0 %v3921
    %3923 = vmatprep.subr.mxu0 0.0
    %v3924 = vand.u32 %v3795, 4294901760
    %v3925 = vsub.f32 %v3795, %v3924
    %v3926 = vand.u32 %v3925, 4294901760
    %v3927 = vsub.f32 %v3925, %v3926
    %v3928 = vand.u32 %v3927, 4294901760
    %3929 = vmatpush1.msra.mxu0 %v3928
    %3930 = vmatprep.subr.mxu0 0.0
    %v3931 = vand.u32 %v3794, 4294901760
    %v3932 = vsub.f32 %v3794, %v3931
    %v3933 = vand.u32 %v3932, 4294901760
    %v3934 = vsub.f32 %v3932, %v3933
    %v3935 = vand.u32 %v3934, 4294901760
    %3936 = vmatpush1.msra.mxu0 %v3935
    %3937 = vmatprep.subr.mxu0 0.0
    %v3938 = vand.u32 %v3793, 4294901760
    %v3939 = vsub.f32 %v3793, %v3938
    %v3940 = vand.u32 %v3939, 4294901760
    %v3941 = vsub.f32 %v3939, %v3940
    %v3942 = vand.u32 %v3941, 4294901760
    %3943 = vmatpush1.msra.mxu0 %v3942
    %3944 = vmatprep.subr.mxu0 0.0
    %3945 = vmatpush2.msra.mxu0 0.0
    %3946 = vmatprep.subr.mxu0 0.0
    %3947 = vmatpush2.msra.mxu0 0.0
    %3948 = vmatprep.subr.mxu0 0.0
    %3949 = vmatpush2.msra.mxu0 0.0
    %3950 = vmatprep.subr.mxu0 0.0
    %3951 = vmatpush2.msra.mxu0 0.0
    %3952 = vmatprep.subr.mxu0 0.0
    %3953 = vmatpush2.msra.mxu0 0.0
    %3954 = vmatprep.subr.mxu0 0.0
    %3955 = vmatpush2.msra.mxu0 0.0
    %3956 = vmatprep.subr.mxu0 0.0
    %3957 = vmatpush2.msra.mxu0 0.0
    %3958 = vmatprep.subr.mxu0 0.0
    %3959 = vmatpush2.msra.mxu0 0.0
    %3960 = vmatprep.subr.mxu0 0.0
    %3961 = vmatpush2.msra.mxu0 0.0
    %3962 = vmatprep.subr.mxu0 0.0
    %3963 = vmatpush2.msra.mxu0 0.0
    %3964 = vmatprep.subr.mxu0 0.0
    %3965 = vmatpush2.msra.mxu0 0.0
    %3966 = vmatprep.subr.mxu0 0.0
    %3967 = vmatpush2.msra.mxu0 0.0
    %3968 = vmatprep.subr.mxu0 0.0
    %3969 = vmatpush2.msra.mxu0 0.0
    %3970 = vmatprep.subr.mxu0 0.0
    %3971 = vmatpush2.msra.mxu0 0.0
    %3972 = vmatprep.subr.mxu0 0.0
    %3973 = vmatpush2.msra.mxu0 0.0
    %3974 = vmatprep.subr.mxu0 0.0
    %3975 = vmatpush2.msra.mxu0 0.0
    %3976 = vmatprep.mubr.f32.mxu0 0.0
    %v3977 = vand.u32 %v3798, 4294901760
    %3978 = vmatmul.mubr.f32.gmra.mxu0 %v3977
    %v3979 = vpop.f32.mrf.mxu0
    %v3980 = vadd.f32 %v3879, %v3979
    %v3981 = vpop.f32.mrf.mxu0
    %3982 = vmatprep.mubr.f32.mxu0 0.0
    %v3983 = vand.u32 %v3801, 4294901760
    %3984 = vmatmul.mubr.f32.gmra.mxu0 %v3983
    %v3985 = vpop.f32.mrf.mxu0
    %v3986 = vadd.f32 %v3889, %v3985
    %v3987 = vpop.f32.mrf.mxu0
    %3988 = vdwg.mxu0
    %3989 = vmatprep.subr.mxu0 0.0
    %3990 = vmatpush1.msra.mxu0 0.0
    %3991 = vmatprep.subr.mxu0 0.0
    %3992 = vmatpush1.msra.mxu0 0.0
    %3993 = vmatprep.subr.mxu0 0.0
    %3994 = vmatpush1.msra.mxu0 0.0
    %3995 = vmatprep.subr.mxu0 0.0
    %3996 = vmatpush1.msra.mxu0 0.0
    %3997 = vmatprep.subr.mxu0 0.0
    %3998 = vmatpush1.msra.mxu0 0.0
    %3999 = vmatprep.subr.mxu0 0.0
    %4000 = vmatpush1.msra.mxu0 0.0
    %4001 = vmatprep.subr.mxu0 0.0
    %4002 = vmatpush1.msra.mxu0 0.0
    %4003 = vmatprep.subr.mxu0 0.0
    %4004 = vmatpush1.msra.mxu0 0.0
    %4005 = vmatprep.subr.mxu0 0.0
    %4006 = vmatpush1.msra.mxu0 0.0
    %4007 = vmatprep.subr.mxu0 0.0
    %4008 = vmatpush1.msra.mxu0 0.0
    %4009 = vmatprep.subr.mxu0 0.0
    %4010 = vmatpush1.msra.mxu0 0.0
    %4011 = vmatprep.subr.mxu0 0.0
    %4012 = vmatpush1.msra.mxu0 0.0
    %4013 = vmatprep.subr.mxu0 0.0
    %v4014 = vand.u32 %v3796, 4294901760
    %v4015 = vsub.f32 %v3796, %v4014
    %4016 = vmatpush1.msra.mxu0 %v4015
    %4017 = vmatprep.subr.mxu0 0.0
    %v4018 = vand.u32 %v3795, 4294901760
    %v4019 = vsub.f32 %v3795, %v4018
    %4020 = vmatpush1.msra.mxu0 %v4019
    %4021 = vmatprep.subr.mxu0 0.0
    %v4022 = vand.u32 %v3794, 4294901760
    %v4023 = vsub.f32 %v3794, %v4022
    %4024 = vmatpush1.msra.mxu0 %v4023
    %4025 = vmatprep.subr.mxu0 0.0
    %v4026 = vand.u32 %v3793, 4294901760
    %v4027 = vsub.f32 %v3793, %v4026
    %4028 = vmatpush1.msra.mxu0 %v4027
    %4029 = vmatprep.subr.mxu0 0.0
    %4030 = vmatpush2.msra.mxu0 0.0
    %4031 = vmatprep.subr.mxu0 0.0
    %4032 = vmatpush2.msra.mxu0 0.0
    %4033 = vmatprep.subr.mxu0 0.0
    %4034 = vmatpush2.msra.mxu0 0.0
    %4035 = vmatprep.subr.mxu0 0.0
    %4036 = vmatpush2.msra.mxu0 0.0
    %4037 = vmatprep.subr.mxu0 0.0
    %4038 = vmatpush2.msra.mxu0 0.0
    %4039 = vmatprep.subr.mxu0 0.0
    %4040 = vmatpush2.msra.mxu0 0.0
    %4041 = vmatprep.subr.mxu0 0.0
    %4042 = vmatpush2.msra.mxu0 0.0
    %4043 = vmatprep.subr.mxu0 0.0
    %4044 = vmatpush2.msra.mxu0 0.0
    %4045 = vmatprep.subr.mxu0 0.0
    %4046 = vmatpush2.msra.mxu0 0.0
    %4047 = vmatprep.subr.mxu0 0.0
    %4048 = vmatpush2.msra.mxu0 0.0
    %4049 = vmatprep.subr.mxu0 0.0
    %4050 = vmatpush2.msra.mxu0 0.0
    %4051 = vmatprep.subr.mxu0 0.0
    %4052 = vmatpush2.msra.mxu0 0.0
    %4053 = vmatprep.subr.mxu0 0.0
    %4054 = vmatpush2.msra.mxu0 0.0
    %4055 = vmatprep.subr.mxu0 0.0
    %4056 = vmatpush2.msra.mxu0 0.0
    %4057 = vmatprep.subr.mxu0 0.0
    %4058 = vmatpush2.msra.mxu0 0.0
    %4059 = vmatprep.subr.mxu0 0.0
    %4060 = vmatpush2.msra.mxu0 0.0
    %4061 = vmatprep.mubr.f32.mxu0 0.0
    %v4062 = vand.u32 %v3798, 4294901760
    %v4063 = vsub.f32 %v3798, %v4062
    %4064 = vmatmul.mubr.f32.gmra.mxu0 %v4063
    %v4065 = vpop.f32.mrf.mxu0
    %v4066 = vadd.f32 %v3980, %v4065
    %v4067 = vpop.f32.mrf.mxu0
    %4068 = vmatprep.mubr.f32.mxu0 0.0
    %v4069 = vand.u32 %v3801, 4294901760
    %v4070 = vsub.f32 %v3801, %v4069
    %4071 = vmatmul.mubr.f32.gmra.mxu0 %v4070
    %v4072 = vpop.f32.mrf.mxu0
    %v4073 = vadd.f32 %v3986, %v4072
    %v4074 = vpop.f32.mrf.mxu0
    %4075 = vdwg.mxu0
    %4076 = vmatprep.subr.mxu0 0.0
    %4077 = vmatpush1.msra.mxu0 0.0
    %4078 = vmatprep.subr.mxu0 0.0
    %4079 = vmatpush1.msra.mxu0 0.0
    %4080 = vmatprep.subr.mxu0 0.0
    %4081 = vmatpush1.msra.mxu0 0.0
    %4082 = vmatprep.subr.mxu0 0.0
    %4083 = vmatpush1.msra.mxu0 0.0
    %4084 = vmatprep.subr.mxu0 0.0
    %4085 = vmatpush1.msra.mxu0 0.0
    %4086 = vmatprep.subr.mxu0 0.0
    %4087 = vmatpush1.msra.mxu0 0.0
    %4088 = vmatprep.subr.mxu0 0.0
    %4089 = vmatpush1.msra.mxu0 0.0
    %4090 = vmatprep.subr.mxu0 0.0
    %4091 = vmatpush1.msra.mxu0 0.0
    %4092 = vmatprep.subr.mxu0 0.0
    %4093 = vmatpush1.msra.mxu0 0.0
    %4094 = vmatprep.subr.mxu0 0.0
    %4095 = vmatpush1.msra.mxu0 0.0
    %4096 = vmatprep.subr.mxu0 0.0
    %4097 = vmatpush1.msra.mxu0 0.0
    %4098 = vmatprep.subr.mxu0 0.0
    %4099 = vmatpush1.msra.mxu0 0.0
    %4100 = vmatprep.subr.mxu0 0.0
    %v4101 = vand.u32 %v3796, 4294901760
    %4102 = vmatpush1.msra.mxu0 %v4101
    %4103 = vmatprep.subr.mxu0 0.0
    %v4104 = vand.u32 %v3795, 4294901760
    %4105 = vmatpush1.msra.mxu0 %v4104
    %4106 = vmatprep.subr.mxu0 0.0
    %v4107 = vand.u32 %v3794, 4294901760
    %4108 = vmatpush1.msra.mxu0 %v4107
    %4109 = vmatprep.subr.mxu0 0.0
    %v4110 = vand.u32 %v3793, 4294901760
    %4111 = vmatpush1.msra.mxu0 %v4110
    %4112 = vmatprep.subr.mxu0 0.0
    %4113 = vmatpush2.msra.mxu0 0.0
    %4114 = vmatprep.subr.mxu0 0.0
    %4115 = vmatpush2.msra.mxu0 0.0
    %4116 = vmatprep.subr.mxu0 0.0
    %4117 = vmatpush2.msra.mxu0 0.0
    %4118 = vmatprep.subr.mxu0 0.0
    %4119 = vmatpush2.msra.mxu0 0.0
    %4120 = vmatprep.subr.mxu0 0.0
    %4121 = vmatpush2.msra.mxu0 0.0
    %4122 = vmatprep.subr.mxu0 0.0
    %4123 = vmatpush2.msra.mxu0 0.0
    %4124 = vmatprep.subr.mxu0 0.0
    %4125 = vmatpush2.msra.mxu0 0.0
    %4126 = vmatprep.subr.mxu0 0.0
    %4127 = vmatpush2.msra.mxu0 0.0
    %4128 = vmatprep.subr.mxu0 0.0
    %4129 = vmatpush2.msra.mxu0 0.0
    %4130 = vmatprep.subr.mxu0 0.0
    %4131 = vmatpush2.msra.mxu0 0.0
    %4132 = vmatprep.subr.mxu0 0.0
    %4133 = vmatpush2.msra.mxu0 0.0
    %4134 = vmatprep.subr.mxu0 0.0
    %4135 = vmatpush2.msra.mxu0 0.0
    %4136 = vmatprep.subr.mxu0 0.0
    %4137 = vmatpush2.msra.mxu0 0.0
    %4138 = vmatprep.subr.mxu0 0.0
    %4139 = vmatpush2.msra.mxu0 0.0
    %4140 = vmatprep.subr.mxu0 0.0
    %4141 = vmatpush2.msra.mxu0 0.0
    %4142 = vmatprep.subr.mxu0 0.0
    %4143 = vmatpush2.msra.mxu0 0.0
    %4144 = vmatprep.mubr.f32.mxu0 0.0
    %v4145 = vand.u32 %v3798, 4294901760
    %v4146 = vsub.f32 %v3798, %v4145
    %v4147 = vand.u32 %v4146, 4294901760
    %4148 = vmatmul.mubr.f32.gmra.mxu0 %v4147
    %v4149 = vpop.f32.mrf.mxu0
    %v4150 = vadd.f32 %v4066, %v4149
    %v4151 = vpop.f32.mrf.mxu0
    %4152 = vmatprep.mubr.f32.mxu0 0.0
    %v4153 = vand.u32 %v3801, 4294901760
    %v4154 = vsub.f32 %v3801, %v4153
    %v4155 = vand.u32 %v4154, 4294901760
    %4156 = vmatmul.mubr.f32.gmra.mxu0 %v4155
    %v4157 = vpop.f32.mrf.mxu0
    %v4158 = vadd.f32 %v4073, %v4157
    %v4159 = vpop.f32.mrf.mxu0
    %4160 = vdwg.mxu0
    %4161 = vmatprep.subr.mxu0 0.0
    %4162 = vmatpush1.msra.mxu0 0.0
    %4163 = vmatprep.subr.mxu0 0.0
    %4164 = vmatpush1.msra.mxu0 0.0
    %4165 = vmatprep.subr.mxu0 0.0
    %4166 = vmatpush1.msra.mxu0 0.0
    %4167 = vmatprep.subr.mxu0 0.0
    %4168 = vmatpush1.msra.mxu0 0.0
    %4169 = vmatprep.subr.mxu0 0.0
    %4170 = vmatpush1.msra.mxu0 0.0
    %4171 = vmatprep.subr.mxu0 0.0
    %4172 = vmatpush1.msra.mxu0 0.0
    %4173 = vmatprep.subr.mxu0 0.0
    %4174 = vmatpush1.msra.mxu0 0.0
    %4175 = vmatprep.subr.mxu0 0.0
    %4176 = vmatpush1.msra.mxu0 0.0
    %4177 = vmatprep.subr.mxu0 0.0
    %4178 = vmatpush1.msra.mxu0 0.0
    %4179 = vmatprep.subr.mxu0 0.0
    %4180 = vmatpush1.msra.mxu0 0.0
    %4181 = vmatprep.subr.mxu0 0.0
    %4182 = vmatpush1.msra.mxu0 0.0
    %4183 = vmatprep.subr.mxu0 0.0
    %4184 = vmatpush1.msra.mxu0 0.0
    %4185 = vmatprep.subr.mxu0 0.0
    %v4186 = vand.u32 %v3796, 4294901760
    %v4187 = vsub.f32 %v3796, %v4186
    %v4188 = vand.u32 %v4187, 4294901760
    %4189 = vmatpush1.msra.mxu0 %v4188
    %4190 = vmatprep.subr.mxu0 0.0
    %v4191 = vand.u32 %v3795, 4294901760
    %v4192 = vsub.f32 %v3795, %v4191
    %v4193 = vand.u32 %v4192, 4294901760
    %4194 = vmatpush1.msra.mxu0 %v4193
    %4195 = vmatprep.subr.mxu0 0.0
    %v4196 = vand.u32 %v3794, 4294901760
    %v4197 = vsub.f32 %v3794, %v4196
    %v4198 = vand.u32 %v4197, 4294901760
    %4199 = vmatpush1.msra.mxu0 %v4198
    %4200 = vmatprep.subr.mxu0 0.0
    %v4201 = vand.u32 %v3793, 4294901760
    %v4202 = vsub.f32 %v3793, %v4201
    %v4203 = vand.u32 %v4202, 4294901760
    %4204 = vmatpush1.msra.mxu0 %v4203
    %4205 = vmatprep.subr.mxu0 0.0
    %4206 = vmatpush2.msra.mxu0 0.0
    %4207 = vmatprep.subr.mxu0 0.0
    %4208 = vmatpush2.msra.mxu0 0.0
    %4209 = vmatprep.subr.mxu0 0.0
    %4210 = vmatpush2.msra.mxu0 0.0
    %4211 = vmatprep.subr.mxu0 0.0
    %4212 = vmatpush2.msra.mxu0 0.0
    %4213 = vmatprep.subr.mxu0 0.0
    %4214 = vmatpush2.msra.mxu0 0.0
    %4215 = vmatprep.subr.mxu0 0.0
    %4216 = vmatpush2.msra.mxu0 0.0
    %4217 = vmatprep.subr.mxu0 0.0
    %4218 = vmatpush2.msra.mxu0 0.0
    %4219 = vmatprep.subr.mxu0 0.0
    %4220 = vmatpush2.msra.mxu0 0.0
    %4221 = vmatprep.subr.mxu0 0.0
    %4222 = vmatpush2.msra.mxu0 0.0
    %4223 = vmatprep.subr.mxu0 0.0
    %4224 = vmatpush2.msra.mxu0 0.0
    %4225 = vmatprep.subr.mxu0 0.0
    %4226 = vmatpush2.msra.mxu0 0.0
    %4227 = vmatprep.subr.mxu0 0.0
    %4228 = vmatpush2.msra.mxu0 0.0
    %4229 = vmatprep.subr.mxu0 0.0
    %4230 = vmatpush2.msra.mxu0 0.0
    %4231 = vmatprep.subr.mxu0 0.0
    %4232 = vmatpush2.msra.mxu0 0.0
    %4233 = vmatprep.subr.mxu0 0.0
    %4234 = vmatpush2.msra.mxu0 0.0
    %4235 = vmatprep.subr.mxu0 0.0
    %4236 = vmatpush2.msra.mxu0 0.0
    %4237 = vmatprep.mubr.f32.mxu0 0.0
    %v4238 = vand.u32 %v3798, 4294901760
    %4239 = vmatmul.mubr.f32.gmra.mxu0 %v4238
    %v4240 = vpop.f32.mrf.mxu0
    %v4241 = vadd.f32 %v4150, %v4240
    %v4242 = vpop.f32.mrf.mxu0
    %4243 = vmatprep.mubr.f32.mxu0 0.0
    %v4244 = vand.u32 %v3801, 4294901760
    %4245 = vmatmul.mubr.f32.gmra.mxu0 %v4244
    %v4246 = vpop.f32.mrf.mxu0
    %v4247 = vadd.f32 %v4158, %v4246
    %v4248 = vpop.f32.mrf.mxu0
    %4249 = vdwg.mxu0
    %4250 = vmatprep.subr.mxu0 0.0
    %4251 = vmatpush1.msra.mxu0 0.0
    %4252 = vmatprep.subr.mxu0 0.0
    %4253 = vmatpush1.msra.mxu0 0.0
    %4254 = vmatprep.subr.mxu0 0.0
    %4255 = vmatpush1.msra.mxu0 0.0
    %4256 = vmatprep.subr.mxu0 0.0
    %4257 = vmatpush1.msra.mxu0 0.0
    %4258 = vmatprep.subr.mxu0 0.0
    %4259 = vmatpush1.msra.mxu0 0.0
    %4260 = vmatprep.subr.mxu0 0.0
    %4261 = vmatpush1.msra.mxu0 0.0
    %4262 = vmatprep.subr.mxu0 0.0
    %4263 = vmatpush1.msra.mxu0 0.0
    %4264 = vmatprep.subr.mxu0 0.0
    %4265 = vmatpush1.msra.mxu0 0.0
    %4266 = vmatprep.subr.mxu0 0.0
    %4267 = vmatpush1.msra.mxu0 0.0
    %4268 = vmatprep.subr.mxu0 0.0
    %4269 = vmatpush1.msra.mxu0 0.0
    %4270 = vmatprep.subr.mxu0 0.0
    %4271 = vmatpush1.msra.mxu0 0.0
    %4272 = vmatprep.subr.mxu0 0.0
    %4273 = vmatpush1.msra.mxu0 0.0
    %4274 = vmatprep.subr.mxu0 0.0
    %v4275 = vand.u32 %v3796, 4294901760
    %4276 = vmatpush1.msra.mxu0 %v4275
    %4277 = vmatprep.subr.mxu0 0.0
    %v4278 = vand.u32 %v3795, 4294901760
    %4279 = vmatpush1.msra.mxu0 %v4278
    %4280 = vmatprep.subr.mxu0 0.0
    %v4281 = vand.u32 %v3794, 4294901760
    %4282 = vmatpush1.msra.mxu0 %v4281
    %4283 = vmatprep.subr.mxu0 0.0
    %v4284 = vand.u32 %v3793, 4294901760
    %4285 = vmatpush1.msra.mxu0 %v4284
    %4286 = vmatprep.subr.mxu0 0.0
    %4287 = vmatpush2.msra.mxu0 0.0
    %4288 = vmatprep.subr.mxu0 0.0
    %4289 = vmatpush2.msra.mxu0 0.0
    %4290 = vmatprep.subr.mxu0 0.0
    %4291 = vmatpush2.msra.mxu0 0.0
    %4292 = vmatprep.subr.mxu0 0.0
    %4293 = vmatpush2.msra.mxu0 0.0
    %4294 = vmatprep.subr.mxu0 0.0
    %4295 = vmatpush2.msra.mxu0 0.0
    %4296 = vmatprep.subr.mxu0 0.0
    %4297 = vmatpush2.msra.mxu0 0.0
    %4298 = vmatprep.subr.mxu0 0.0
    %4299 = vmatpush2.msra.mxu0 0.0
    %4300 = vmatprep.subr.mxu0 0.0
    %4301 = vmatpush2.msra.mxu0 0.0
    %4302 = vmatprep.subr.mxu0 0.0
    %4303 = vmatpush2.msra.mxu0 0.0
    %4304 = vmatprep.subr.mxu0 0.0
    %4305 = vmatpush2.msra.mxu0 0.0
    %4306 = vmatprep.subr.mxu0 0.0
    %4307 = vmatpush2.msra.mxu0 0.0
    %4308 = vmatprep.subr.mxu0 0.0
    %4309 = vmatpush2.msra.mxu0 0.0
    %4310 = vmatprep.subr.mxu0 0.0
    %4311 = vmatpush2.msra.mxu0 0.0
    %4312 = vmatprep.subr.mxu0 0.0
    %4313 = vmatpush2.msra.mxu0 0.0
    %4314 = vmatprep.subr.mxu0 0.0
    %4315 = vmatpush2.msra.mxu0 0.0
    %4316 = vmatprep.subr.mxu0 0.0
    %4317 = vmatpush2.msra.mxu0 0.0
    %4318 = vmatprep.mubr.f32.mxu0 0.0
    %v4319 = vand.u32 %v3798, 4294901760
    %4320 = vmatmul.mubr.f32.gmra.mxu0 %v4319
    %v4321 = vpop.f32.mrf.mxu0
    %v4322 = vadd.f32 %v4241, %v4321
    %v4323 = vpop.f32.mrf.mxu0
    %4324 = vmatprep.mubr.f32.mxu0 0.0
    %v4325 = vand.u32 %v3801, 4294901760
    %4326 = vmatmul.mubr.f32.gmra.mxu0 %v4325
    %v4327 = vpop.f32.mrf.mxu0
    %v4328 = vadd.f32 %v4247, %v4327
    %v4329 = vpop.f32.mrf.mxu0
    %4330 = vdwg.mxu0
    %v4331 = vadd.f32 %v73, %v4322
    %v4332 = vadd.f32 %v74, %v4328
    %v4333 = vld [vmem:[%s1152] sm:$0xff]
    %v4334 = vld [vmem:[%s1152 + $0x8] sm:$0xff]
    %v4336 = vsel %vm103, %v4333, 0
    %v4339 = vsel %vm103, %v4334, 0
    %4341 = vmatprep.subr.mxu0 0.0
    %4342 = vmatpush1.msra.mxu0 0.0
    %4343 = vmatprep.subr.mxu0 0.0
    %4344 = vmatpush1.msra.mxu0 0.0
    %4345 = vmatprep.subr.mxu0 0.0
    %4346 = vmatpush1.msra.mxu0 0.0
    %4347 = vmatprep.subr.mxu0 0.0
    %4348 = vmatpush1.msra.mxu0 0.0
    %4349 = vmatprep.subr.mxu0 0.0
    %4350 = vmatpush1.msra.mxu0 0.0
    %4351 = vmatprep.subr.mxu0 0.0
    %4352 = vmatpush1.msra.mxu0 0.0
    %4353 = vmatprep.subr.mxu0 0.0
    %4354 = vmatpush1.msra.mxu0 0.0
    %4355 = vmatprep.subr.mxu0 0.0
    %4356 = vmatpush1.msra.mxu0 0.0
    %4357 = vmatprep.subr.mxu0 0.0
    %4358 = vmatpush1.msra.mxu0 0.0
    %4359 = vmatprep.subr.mxu0 0.0
    %4360 = vmatpush1.msra.mxu0 0.0
    %4361 = vmatprep.subr.mxu0 0.0
    %4362 = vmatpush1.msra.mxu0 0.0
    %4363 = vmatprep.subr.mxu0 0.0
    %4364 = vmatpush1.msra.mxu0 0.0
    %4365 = vmatprep.subr.mxu0 0.0
    %4366 = vmatpush1.msra.mxu0 0.0
    %4367 = vmatprep.subr.mxu0 0.0
    %4368 = vmatpush1.msra.mxu0 0.0
    %4369 = vmatprep.subr.mxu0 0.0
    %v4370 = vand.u32 %v3282, 4294901760
    %4371 = vmatpush1.msra.mxu0 %v4370
    %4372 = vmatprep.subr.mxu0 0.0
    %v4373 = vand.u32 %v3281, 4294901760
    %4374 = vmatpush1.msra.mxu0 %v4373
    %4375 = vmatprep.subr.mxu0 0.0
    %4376 = vmatpush2.msra.mxu0 0.0
    %4377 = vmatprep.subr.mxu0 0.0
    %4378 = vmatpush2.msra.mxu0 0.0
    %4379 = vmatprep.subr.mxu0 0.0
    %4380 = vmatpush2.msra.mxu0 0.0
    %4381 = vmatprep.subr.mxu0 0.0
    %4382 = vmatpush2.msra.mxu0 0.0
    %4383 = vmatprep.subr.mxu0 0.0
    %4384 = vmatpush2.msra.mxu0 0.0
    %4385 = vmatprep.subr.mxu0 0.0
    %4386 = vmatpush2.msra.mxu0 0.0
    %4387 = vmatprep.subr.mxu0 0.0
    %4388 = vmatpush2.msra.mxu0 0.0
    %4389 = vmatprep.subr.mxu0 0.0
    %4390 = vmatpush2.msra.mxu0 0.0
    %4391 = vmatprep.subr.mxu0 0.0
    %4392 = vmatpush2.msra.mxu0 0.0
    %4393 = vmatprep.subr.mxu0 0.0
    %4394 = vmatpush2.msra.mxu0 0.0
    %4395 = vmatprep.subr.mxu0 0.0
    %4396 = vmatpush2.msra.mxu0 0.0
    %4397 = vmatprep.subr.mxu0 0.0
    %4398 = vmatpush2.msra.mxu0 0.0
    %4399 = vmatprep.subr.mxu0 0.0
    %4400 = vmatpush2.msra.mxu0 0.0
    %4401 = vmatprep.subr.mxu0 0.0
    %4402 = vmatpush2.msra.mxu0 0.0
    %4403 = vmatprep.subr.mxu0 0.0
    %4404 = vmatpush2.msra.mxu0 0.0
    %4405 = vmatprep.subr.mxu0 0.0
    %4406 = vmatpush2.msra.mxu0 0.0
    %4407 = vmatprep.mubr.f32.mxu0 0.0
    %v4408 = vand.u32 %v4336, 4294901760
    %v4409 = vsub.f32 %v4336, %v4408
    %v4410 = vand.u32 %v4409, 4294901760
    %v4411 = vsub.f32 %v4409, %v4410
    %v4412 = vand.u32 %v4411, 4294901760
    %4413 = vmatmul.mubr.f32.gmra.mxu0 %v4412
    %v4414 = vpop.f32.mrf.mxu0
    %v4415 = vadd.f32 0.0, %v4414
    %v4416 = vpop.f32.mrf.mxu0
    %4417 = vmatprep.mubr.f32.mxu0 0.0
    %v4418 = vand.u32 %v4339, 4294901760
    %v4419 = vsub.f32 %v4339, %v4418
    %v4420 = vand.u32 %v4419, 4294901760
    %v4421 = vsub.f32 %v4419, %v4420
    %v4422 = vand.u32 %v4421, 4294901760
    %4423 = vmatmul.mubr.f32.gmra.mxu0 %v4422
    %v4424 = vpop.f32.mrf.mxu0
    %v4425 = vadd.f32 0.0, %v4424
    %v4426 = vpop.f32.mrf.mxu0
    %4427 = vdwg.mxu0
    %4428 = vmatprep.subr.mxu0 0.0
    %4429 = vmatpush1.msra.mxu0 0.0
    %4430 = vmatprep.subr.mxu0 0.0
    %4431 = vmatpush1.msra.mxu0 0.0
    %4432 = vmatprep.subr.mxu0 0.0
    %4433 = vmatpush1.msra.mxu0 0.0
    %4434 = vmatprep.subr.mxu0 0.0
    %4435 = vmatpush1.msra.mxu0 0.0
    %4436 = vmatprep.subr.mxu0 0.0
    %4437 = vmatpush1.msra.mxu0 0.0
    %4438 = vmatprep.subr.mxu0 0.0
    %4439 = vmatpush1.msra.mxu0 0.0
    %4440 = vmatprep.subr.mxu0 0.0
    %4441 = vmatpush1.msra.mxu0 0.0
    %4442 = vmatprep.subr.mxu0 0.0
    %4443 = vmatpush1.msra.mxu0 0.0
    %4444 = vmatprep.subr.mxu0 0.0
    %4445 = vmatpush1.msra.mxu0 0.0
    %4446 = vmatprep.subr.mxu0 0.0
    %4447 = vmatpush1.msra.mxu0 0.0
    %4448 = vmatprep.subr.mxu0 0.0
    %4449 = vmatpush1.msra.mxu0 0.0
    %4450 = vmatprep.subr.mxu0 0.0
    %4451 = vmatpush1.msra.mxu0 0.0
    %4452 = vmatprep.subr.mxu0 0.0
    %4453 = vmatpush1.msra.mxu0 0.0
    %4454 = vmatprep.subr.mxu0 0.0
    %4455 = vmatpush1.msra.mxu0 0.0
    %4456 = vmatprep.subr.mxu0 0.0
    %v4457 = vand.u32 %v3282, 4294901760
    %v4458 = vsub.f32 %v3282, %v4457
    %v4459 = vand.u32 %v4458, 4294901760
    %v4460 = vsub.f32 %v4458, %v4459
    %v4461 = vand.u32 %v4460, 4294901760
    %4462 = vmatpush1.msra.mxu0 %v4461
    %4463 = vmatprep.subr.mxu0 0.0
    %v4464 = vand.u32 %v3281, 4294901760
    %v4465 = vsub.f32 %v3281, %v4464
    %v4466 = vand.u32 %v4465, 4294901760
    %v4467 = vsub.f32 %v4465, %v4466
    %v4468 = vand.u32 %v4467, 4294901760
    %4469 = vmatpush1.msra.mxu0 %v4468
    %4470 = vmatprep.subr.mxu0 0.0
    %4471 = vmatpush2.msra.mxu0 0.0
    %4472 = vmatprep.subr.mxu0 0.0
    %4473 = vmatpush2.msra.mxu0 0.0
    %4474 = vmatprep.subr.mxu0 0.0
    %4475 = vmatpush2.msra.mxu0 0.0
    %4476 = vmatprep.subr.mxu0 0.0
    %4477 = vmatpush2.msra.mxu0 0.0
    %4478 = vmatprep.subr.mxu0 0.0
    %4479 = vmatpush2.msra.mxu0 0.0
    %4480 = vmatprep.subr.mxu0 0.0
    %4481 = vmatpush2.msra.mxu0 0.0
    %4482 = vmatprep.subr.mxu0 0.0
    %4483 = vmatpush2.msra.mxu0 0.0
    %4484 = vmatprep.subr.mxu0 0.0
    %4485 = vmatpush2.msra.mxu0 0.0
    %4486 = vmatprep.subr.mxu0 0.0
    %4487 = vmatpush2.msra.mxu0 0.0
    %4488 = vmatprep.subr.mxu0 0.0
    %4489 = vmatpush2.msra.mxu0 0.0
    %4490 = vmatprep.subr.mxu0 0.0
    %4491 = vmatpush2.msra.mxu0 0.0
    %4492 = vmatprep.subr.mxu0 0.0
    %4493 = vmatpush2.msra.mxu0 0.0
    %4494 = vmatprep.subr.mxu0 0.0
    %4495 = vmatpush2.msra.mxu0 0.0
    %4496 = vmatprep.subr.mxu0 0.0
    %4497 = vmatpush2.msra.mxu0 0.0
    %4498 = vmatprep.subr.mxu0 0.0
    %4499 = vmatpush2.msra.mxu0 0.0
    %4500 = vmatprep.subr.mxu0 0.0
    %4501 = vmatpush2.msra.mxu0 0.0
    %4502 = vmatprep.mubr.f32.mxu0 0.0
    %v4503 = vand.u32 %v4336, 4294901760
    %4504 = vmatmul.mubr.f32.gmra.mxu0 %v4503
    %v4505 = vpop.f32.mrf.mxu0
    %v4506 = vadd.f32 %v4415, %v4505
    %v4507 = vpop.f32.mrf.mxu0
    %4508 = vmatprep.mubr.f32.mxu0 0.0
    %v4509 = vand.u32 %v4339, 4294901760
    %4510 = vmatmul.mubr.f32.gmra.mxu0 %v4509
    %v4511 = vpop.f32.mrf.mxu0
    %v4512 = vadd.f32 %v4425, %v4511
    %v4513 = vpop.f32.mrf.mxu0
    %4514 = vdwg.mxu0
    %4515 = vmatprep.subr.mxu0 0.0
    %4516 = vmatpush1.msra.mxu0 0.0
    %4517 = vmatprep.subr.mxu0 0.0
    %4518 = vmatpush1.msra.mxu0 0.0
    %4519 = vmatprep.subr.mxu0 0.0
    %4520 = vmatpush1.msra.mxu0 0.0
    %4521 = vmatprep.subr.mxu0 0.0
    %4522 = vmatpush1.msra.mxu0 0.0
    %4523 = vmatprep.subr.mxu0 0.0
    %4524 = vmatpush1.msra.mxu0 0.0
    %4525 = vmatprep.subr.mxu0 0.0
    %4526 = vmatpush1.msra.mxu0 0.0
    %4527 = vmatprep.subr.mxu0 0.0
    %4528 = vmatpush1.msra.mxu0 0.0
    %4529 = vmatprep.subr.mxu0 0.0
    %4530 = vmatpush1.msra.mxu0 0.0
    %4531 = vmatprep.subr.mxu0 0.0
    %4532 = vmatpush1.msra.mxu0 0.0
    %4533 = vmatprep.subr.mxu0 0.0
    %4534 = vmatpush1.msra.mxu0 0.0
    %4535 = vmatprep.subr.mxu0 0.0
    %4536 = vmatpush1.msra.mxu0 0.0
    %4537 = vmatprep.subr.mxu0 0.0
    %4538 = vmatpush1.msra.mxu0 0.0
    %4539 = vmatprep.subr.mxu0 0.0
    %4540 = vmatpush1.msra.mxu0 0.0
    %4541 = vmatprep.subr.mxu0 0.0
    %4542 = vmatpush1.msra.mxu0 0.0
    %4543 = vmatprep.subr.mxu0 0.0
    %v4544 = vand.u32 %v3282, 4294901760
    %v4545 = vsub.f32 %v3282, %v4544
    %4546 = vmatpush1.msra.mxu0 %v4545
    %4547 = vmatprep.subr.mxu0 0.0
    %v4548 = vand.u32 %v3281, 4294901760
    %v4549 = vsub.f32 %v3281, %v4548
    %4550 = vmatpush1.msra.mxu0 %v4549
    %4551 = vmatprep.subr.mxu0 0.0
    %4552 = vmatpush2.msra.mxu0 0.0
    %4553 = vmatprep.subr.mxu0 0.0
    %4554 = vmatpush2.msra.mxu0 0.0
    %4555 = vmatprep.subr.mxu0 0.0
    %4556 = vmatpush2.msra.mxu0 0.0
    %4557 = vmatprep.subr.mxu0 0.0
    %4558 = vmatpush2.msra.mxu0 0.0
    %4559 = vmatprep.subr.mxu0 0.0
    %4560 = vmatpush2.msra.mxu0 0.0
    %4561 = vmatprep.subr.mxu0 0.0
    %4562 = vmatpush2.msra.mxu0 0.0
    %4563 = vmatprep.subr.mxu0 0.0
    %4564 = vmatpush2.msra.mxu0 0.0
    %4565 = vmatprep.subr.mxu0 0.0
    %4566 = vmatpush2.msra.mxu0 0.0
    %4567 = vmatprep.subr.mxu0 0.0
    %4568 = vmatpush2.msra.mxu0 0.0
    %4569 = vmatprep.subr.mxu0 0.0
    %4570 = vmatpush2.msra.mxu0 0.0
    %4571 = vmatprep.subr.mxu0 0.0
    %4572 = vmatpush2.msra.mxu0 0.0
    %4573 = vmatprep.subr.mxu0 0.0
    %4574 = vmatpush2.msra.mxu0 0.0
    %4575 = vmatprep.subr.mxu0 0.0
    %4576 = vmatpush2.msra.mxu0 0.0
    %4577 = vmatprep.subr.mxu0 0.0
    %4578 = vmatpush2.msra.mxu0 0.0
    %4579 = vmatprep.subr.mxu0 0.0
    %4580 = vmatpush2.msra.mxu0 0.0
    %4581 = vmatprep.subr.mxu0 0.0
    %4582 = vmatpush2.msra.mxu0 0.0
    %4583 = vmatprep.mubr.f32.mxu0 0.0
    %v4584 = vand.u32 %v4336, 4294901760
    %v4585 = vsub.f32 %v4336, %v4584
    %4586 = vmatmul.mubr.f32.gmra.mxu0 %v4585
    %v4587 = vpop.f32.mrf.mxu0
    %v4588 = vadd.f32 %v4506, %v4587
    %v4589 = vpop.f32.mrf.mxu0
    %4590 = vmatprep.mubr.f32.mxu0 0.0
    %v4591 = vand.u32 %v4339, 4294901760
    %v4592 = vsub.f32 %v4339, %v4591
    %4593 = vmatmul.mubr.f32.gmra.mxu0 %v4592
    %v4594 = vpop.f32.mrf.mxu0
    %v4595 = vadd.f32 %v4512, %v4594
    %v4596 = vpop.f32.mrf.mxu0
    %4597 = vdwg.mxu0
    %4598 = vmatprep.subr.mxu0 0.0
    %4599 = vmatpush1.msra.mxu0 0.0
    %4600 = vmatprep.subr.mxu0 0.0
    %4601 = vmatpush1.msra.mxu0 0.0
    %4602 = vmatprep.subr.mxu0 0.0
    %4603 = vmatpush1.msra.mxu0 0.0
    %4604 = vmatprep.subr.mxu0 0.0
    %4605 = vmatpush1.msra.mxu0 0.0
    %4606 = vmatprep.subr.mxu0 0.0
    %4607 = vmatpush1.msra.mxu0 0.0
    %4608 = vmatprep.subr.mxu0 0.0
    %4609 = vmatpush1.msra.mxu0 0.0
    %4610 = vmatprep.subr.mxu0 0.0
    %4611 = vmatpush1.msra.mxu0 0.0
    %4612 = vmatprep.subr.mxu0 0.0
    %4613 = vmatpush1.msra.mxu0 0.0
    %4614 = vmatprep.subr.mxu0 0.0
    %4615 = vmatpush1.msra.mxu0 0.0
    %4616 = vmatprep.subr.mxu0 0.0
    %4617 = vmatpush1.msra.mxu0 0.0
    %4618 = vmatprep.subr.mxu0 0.0
    %4619 = vmatpush1.msra.mxu0 0.0
    %4620 = vmatprep.subr.mxu0 0.0
    %4621 = vmatpush1.msra.mxu0 0.0
    %4622 = vmatprep.subr.mxu0 0.0
    %4623 = vmatpush1.msra.mxu0 0.0
    %4624 = vmatprep.subr.mxu0 0.0
    %4625 = vmatpush1.msra.mxu0 0.0
    %4626 = vmatprep.subr.mxu0 0.0
    %v4627 = vand.u32 %v3282, 4294901760
    %4628 = vmatpush1.msra.mxu0 %v4627
    %4629 = vmatprep.subr.mxu0 0.0
    %v4630 = vand.u32 %v3281, 4294901760
    %4631 = vmatpush1.msra.mxu0 %v4630
    %4632 = vmatprep.subr.mxu0 0.0
    %4633 = vmatpush2.msra.mxu0 0.0
    %4634 = vmatprep.subr.mxu0 0.0
    %4635 = vmatpush2.msra.mxu0 0.0
    %4636 = vmatprep.subr.mxu0 0.0
    %4637 = vmatpush2.msra.mxu0 0.0
    %4638 = vmatprep.subr.mxu0 0.0
    %4639 = vmatpush2.msra.mxu0 0.0
    %4640 = vmatprep.subr.mxu0 0.0
    %4641 = vmatpush2.msra.mxu0 0.0
    %4642 = vmatprep.subr.mxu0 0.0
    %4643 = vmatpush2.msra.mxu0 0.0
    %4644 = vmatprep.subr.mxu0 0.0
    %4645 = vmatpush2.msra.mxu0 0.0
    %4646 = vmatprep.subr.mxu0 0.0
    %4647 = vmatpush2.msra.mxu0 0.0
    %4648 = vmatprep.subr.mxu0 0.0
    %4649 = vmatpush2.msra.mxu0 0.0
    %4650 = vmatprep.subr.mxu0 0.0
    %4651 = vmatpush2.msra.mxu0 0.0
    %4652 = vmatprep.subr.mxu0 0.0
    %4653 = vmatpush2.msra.mxu0 0.0
    %4654 = vmatprep.subr.mxu0 0.0
    %4655 = vmatpush2.msra.mxu0 0.0
    %4656 = vmatprep.subr.mxu0 0.0
    %4657 = vmatpush2.msra.mxu0 0.0
    %4658 = vmatprep.subr.mxu0 0.0
    %4659 = vmatpush2.msra.mxu0 0.0
    %4660 = vmatprep.subr.mxu0 0.0
    %4661 = vmatpush2.msra.mxu0 0.0
    %4662 = vmatprep.subr.mxu0 0.0
    %4663 = vmatpush2.msra.mxu0 0.0
    %4664 = vmatprep.mubr.f32.mxu0 0.0
    %v4665 = vand.u32 %v4336, 4294901760
    %v4666 = vsub.f32 %v4336, %v4665
    %v4667 = vand.u32 %v4666, 4294901760
    %4668 = vmatmul.mubr.f32.gmra.mxu0 %v4667
    %v4669 = vpop.f32.mrf.mxu0
    %v4670 = vadd.f32 %v4588, %v4669
    %v4671 = vpop.f32.mrf.mxu0
    %4672 = vmatprep.mubr.f32.mxu0 0.0
    %v4673 = vand.u32 %v4339, 4294901760
    %v4674 = vsub.f32 %v4339, %v4673
    %v4675 = vand.u32 %v4674, 4294901760
    %4676 = vmatmul.mubr.f32.gmra.mxu0 %v4675
    %v4677 = vpop.f32.mrf.mxu0
    %v4678 = vadd.f32 %v4595, %v4677
    %v4679 = vpop.f32.mrf.mxu0
    %4680 = vdwg.mxu0
    %4681 = vmatprep.subr.mxu0 0.0
    %4682 = vmatpush1.msra.mxu0 0.0
    %4683 = vmatprep.subr.mxu0 0.0
    %4684 = vmatpush1.msra.mxu0 0.0
    %4685 = vmatprep.subr.mxu0 0.0
    %4686 = vmatpush1.msra.mxu0 0.0
    %4687 = vmatprep.subr.mxu0 0.0
    %4688 = vmatpush1.msra.mxu0 0.0
    %4689 = vmatprep.subr.mxu0 0.0
    %4690 = vmatpush1.msra.mxu0 0.0
    %4691 = vmatprep.subr.mxu0 0.0
    %4692 = vmatpush1.msra.mxu0 0.0
    %4693 = vmatprep.subr.mxu0 0.0
    %4694 = vmatpush1.msra.mxu0 0.0
    %4695 = vmatprep.subr.mxu0 0.0
    %4696 = vmatpush1.msra.mxu0 0.0
    %4697 = vmatprep.subr.mxu0 0.0
    %4698 = vmatpush1.msra.mxu0 0.0
    %4699 = vmatprep.subr.mxu0 0.0
    %4700 = vmatpush1.msra.mxu0 0.0
    %4701 = vmatprep.subr.mxu0 0.0
    %4702 = vmatpush1.msra.mxu0 0.0
    %4703 = vmatprep.subr.mxu0 0.0
    %4704 = vmatpush1.msra.mxu0 0.0
    %4705 = vmatprep.subr.mxu0 0.0
    %4706 = vmatpush1.msra.mxu0 0.0
    %4707 = vmatprep.subr.mxu0 0.0
    %4708 = vmatpush1.msra.mxu0 0.0
    %4709 = vmatprep.subr.mxu0 0.0
    %v4710 = vand.u32 %v3282, 4294901760
    %v4711 = vsub.f32 %v3282, %v4710
    %v4712 = vand.u32 %v4711, 4294901760
    %4713 = vmatpush1.msra.mxu0 %v4712
    %4714 = vmatprep.subr.mxu0 0.0
    %v4715 = vand.u32 %v3281, 4294901760
    %v4716 = vsub.f32 %v3281, %v4715
    %v4717 = vand.u32 %v4716, 4294901760
    %4718 = vmatpush1.msra.mxu0 %v4717
    %4719 = vmatprep.subr.mxu0 0.0
    %4720 = vmatpush2.msra.mxu0 0.0
    %4721 = vmatprep.subr.mxu0 0.0
    %4722 = vmatpush2.msra.mxu0 0.0
    %4723 = vmatprep.subr.mxu0 0.0
    %4724 = vmatpush2.msra.mxu0 0.0
    %4725 = vmatprep.subr.mxu0 0.0
    %4726 = vmatpush2.msra.mxu0 0.0
    %4727 = vmatprep.subr.mxu0 0.0
    %4728 = vmatpush2.msra.mxu0 0.0
    %4729 = vmatprep.subr.mxu0 0.0
    %4730 = vmatpush2.msra.mxu0 0.0
    %4731 = vmatprep.subr.mxu0 0.0
    %4732 = vmatpush2.msra.mxu0 0.0
    %4733 = vmatprep.subr.mxu0 0.0
    %4734 = vmatpush2.msra.mxu0 0.0
    %4735 = vmatprep.subr.mxu0 0.0
    %4736 = vmatpush2.msra.mxu0 0.0
    %4737 = vmatprep.subr.mxu0 0.0
    %4738 = vmatpush2.msra.mxu0 0.0
    %4739 = vmatprep.subr.mxu0 0.0
    %4740 = vmatpush2.msra.mxu0 0.0
    %4741 = vmatprep.subr.mxu0 0.0
    %4742 = vmatpush2.msra.mxu0 0.0
    %4743 = vmatprep.subr.mxu0 0.0
    %4744 = vmatpush2.msra.mxu0 0.0
    %4745 = vmatprep.subr.mxu0 0.0
    %4746 = vmatpush2.msra.mxu0 0.0
    %4747 = vmatprep.subr.mxu0 0.0
    %4748 = vmatpush2.msra.mxu0 0.0
    %4749 = vmatprep.subr.mxu0 0.0
    %4750 = vmatpush2.msra.mxu0 0.0
    %4751 = vmatprep.mubr.f32.mxu0 0.0
    %v4752 = vand.u32 %v4336, 4294901760
    %4753 = vmatmul.mubr.f32.gmra.mxu0 %v4752
    %v4754 = vpop.f32.mrf.mxu0
    %v4755 = vadd.f32 %v4670, %v4754
    %v4756 = vpop.f32.mrf.mxu0
    %4757 = vmatprep.mubr.f32.mxu0 0.0
    %v4758 = vand.u32 %v4339, 4294901760
    %4759 = vmatmul.mubr.f32.gmra.mxu0 %v4758
    %v4760 = vpop.f32.mrf.mxu0
    %v4761 = vadd.f32 %v4678, %v4760
    %v4762 = vpop.f32.mrf.mxu0
    %4763 = vdwg.mxu0
    %4764 = vmatprep.subr.mxu0 0.0
    %4765 = vmatpush1.msra.mxu0 0.0
    %4766 = vmatprep.subr.mxu0 0.0
    %4767 = vmatpush1.msra.mxu0 0.0
    %4768 = vmatprep.subr.mxu0 0.0
    %4769 = vmatpush1.msra.mxu0 0.0
    %4770 = vmatprep.subr.mxu0 0.0
    %4771 = vmatpush1.msra.mxu0 0.0
    %4772 = vmatprep.subr.mxu0 0.0
    %4773 = vmatpush1.msra.mxu0 0.0
    %4774 = vmatprep.subr.mxu0 0.0
    %4775 = vmatpush1.msra.mxu0 0.0
    %4776 = vmatprep.subr.mxu0 0.0
    %4777 = vmatpush1.msra.mxu0 0.0
    %4778 = vmatprep.subr.mxu0 0.0
    %4779 = vmatpush1.msra.mxu0 0.0
    %4780 = vmatprep.subr.mxu0 0.0
    %4781 = vmatpush1.msra.mxu0 0.0
    %4782 = vmatprep.subr.mxu0 0.0
    %4783 = vmatpush1.msra.mxu0 0.0
    %4784 = vmatprep.subr.mxu0 0.0
    %4785 = vmatpush1.msra.mxu0 0.0
    %4786 = vmatprep.subr.mxu0 0.0
    %4787 = vmatpush1.msra.mxu0 0.0
    %4788 = vmatprep.subr.mxu0 0.0
    %4789 = vmatpush1.msra.mxu0 0.0
    %4790 = vmatprep.subr.mxu0 0.0
    %4791 = vmatpush1.msra.mxu0 0.0
    %4792 = vmatprep.subr.mxu0 0.0
    %v4793 = vand.u32 %v3282, 4294901760
    %4794 = vmatpush1.msra.mxu0 %v4793
    %4795 = vmatprep.subr.mxu0 0.0
    %v4796 = vand.u32 %v3281, 4294901760
    %4797 = vmatpush1.msra.mxu0 %v4796
    %4798 = vmatprep.subr.mxu0 0.0
    %4799 = vmatpush2.msra.mxu0 0.0
    %4800 = vmatprep.subr.mxu0 0.0
    %4801 = vmatpush2.msra.mxu0 0.0
    %4802 = vmatprep.subr.mxu0 0.0
    %4803 = vmatpush2.msra.mxu0 0.0
    %4804 = vmatprep.subr.mxu0 0.0
    %4805 = vmatpush2.msra.mxu0 0.0
    %4806 = vmatprep.subr.mxu0 0.0
    %4807 = vmatpush2.msra.mxu0 0.0
    %4808 = vmatprep.subr.mxu0 0.0
    %4809 = vmatpush2.msra.mxu0 0.0
    %4810 = vmatprep.subr.mxu0 0.0
    %4811 = vmatpush2.msra.mxu0 0.0
    %4812 = vmatprep.subr.mxu0 0.0
    %4813 = vmatpush2.msra.mxu0 0.0
    %4814 = vmatprep.subr.mxu0 0.0
    %4815 = vmatpush2.msra.mxu0 0.0
    %4816 = vmatprep.subr.mxu0 0.0
    %4817 = vmatpush2.msra.mxu0 0.0
    %4818 = vmatprep.subr.mxu0 0.0
    %4819 = vmatpush2.msra.mxu0 0.0
    %4820 = vmatprep.subr.mxu0 0.0
    %4821 = vmatpush2.msra.mxu0 0.0
    %4822 = vmatprep.subr.mxu0 0.0
    %4823 = vmatpush2.msra.mxu0 0.0
    %4824 = vmatprep.subr.mxu0 0.0
    %4825 = vmatpush2.msra.mxu0 0.0
    %4826 = vmatprep.subr.mxu0 0.0
    %4827 = vmatpush2.msra.mxu0 0.0
    %4828 = vmatprep.subr.mxu0 0.0
    %4829 = vmatpush2.msra.mxu0 0.0
    %4830 = vmatprep.mubr.f32.mxu0 0.0
    %v4831 = vand.u32 %v4336, 4294901760
    %4832 = vmatmul.mubr.f32.gmra.mxu0 %v4831
    %v4833 = vpop.f32.mrf.mxu0
    %v4834 = vadd.f32 %v4755, %v4833
    %v4835 = vpop.f32.mrf.mxu0
    %4836 = vmatprep.mubr.f32.mxu0 0.0
    %v4837 = vand.u32 %v4339, 4294901760
    %4838 = vmatmul.mubr.f32.gmra.mxu0 %v4837
    %v4839 = vpop.f32.mrf.mxu0
    %v4840 = vadd.f32 %v4761, %v4839
    %v4841 = vpop.f32.mrf.mxu0
    %4842 = vdwg.mxu0
    %v4843 = vld [vmem:[%s1663] sm:$0xff]
    %v4844 = vld [vmem:[%s1663 + $0x8] sm:$0xff]
    %v4845 = vld [vmem:[%s1663 + $0x10] sm:$0xff]
    %v4846 = vld [vmem:[%s1663 + $0x18] sm:$0xff]
    %v4848 = vsel %vm83, %v4834, 0
    %v4851 = vsel %vm83, %v4840, 0
    %4853 = vmatprep.subr.mxu0 0.0
    %4854 = vmatpush1.msra.mxu0 0.0
    %4855 = vmatprep.subr.mxu0 0.0
    %4856 = vmatpush1.msra.mxu0 0.0
    %4857 = vmatprep.subr.mxu0 0.0
    %4858 = vmatpush1.msra.mxu0 0.0
    %4859 = vmatprep.subr.mxu0 0.0
    %4860 = vmatpush1.msra.mxu0 0.0
    %4861 = vmatprep.subr.mxu0 0.0
    %4862 = vmatpush1.msra.mxu0 0.0
    %4863 = vmatprep.subr.mxu0 0.0
    %4864 = vmatpush1.msra.mxu0 0.0
    %4865 = vmatprep.subr.mxu0 0.0
    %4866 = vmatpush1.msra.mxu0 0.0
    %4867 = vmatprep.subr.mxu0 0.0
    %4868 = vmatpush1.msra.mxu0 0.0
    %4869 = vmatprep.subr.mxu0 0.0
    %4870 = vmatpush1.msra.mxu0 0.0
    %4871 = vmatprep.subr.mxu0 0.0
    %4872 = vmatpush1.msra.mxu0 0.0
    %4873 = vmatprep.subr.mxu0 0.0
    %4874 = vmatpush1.msra.mxu0 0.0
    %4875 = vmatprep.subr.mxu0 0.0
    %4876 = vmatpush1.msra.mxu0 0.0
    %4877 = vmatprep.subr.mxu0 0.0
    %v4878 = vand.u32 %v4846, 4294901760
    %4879 = vmatpush1.msra.mxu0 %v4878
    %4880 = vmatprep.subr.mxu0 0.0
    %v4881 = vand.u32 %v4845, 4294901760
    %4882 = vmatpush1.msra.mxu0 %v4881
    %4883 = vmatprep.subr.mxu0 0.0
    %v4884 = vand.u32 %v4844, 4294901760
    %4885 = vmatpush1.msra.mxu0 %v4884
    %4886 = vmatprep.subr.mxu0 0.0
    %v4887 = vand.u32 %v4843, 4294901760
    %4888 = vmatpush1.msra.mxu0 %v4887
    %4889 = vmatprep.subr.mxu0 0.0
    %4890 = vmatpush2.msra.mxu0 0.0
    %4891 = vmatprep.subr.mxu0 0.0
    %4892 = vmatpush2.msra.mxu0 0.0
    %4893 = vmatprep.subr.mxu0 0.0
    %4894 = vmatpush2.msra.mxu0 0.0
    %4895 = vmatprep.subr.mxu0 0.0
    %4896 = vmatpush2.msra.mxu0 0.0
    %4897 = vmatprep.subr.mxu0 0.0
    %4898 = vmatpush2.msra.mxu0 0.0
    %4899 = vmatprep.subr.mxu0 0.0
    %4900 = vmatpush2.msra.mxu0 0.0
    %4901 = vmatprep.subr.mxu0 0.0
    %4902 = vmatpush2.msra.mxu0 0.0
    %4903 = vmatprep.subr.mxu0 0.0
    %4904 = vmatpush2.msra.mxu0 0.0
    %4905 = vmatprep.subr.mxu0 0.0
    %4906 = vmatpush2.msra.mxu0 0.0
    %4907 = vmatprep.subr.mxu0 0.0
    %4908 = vmatpush2.msra.mxu0 0.0
    %4909 = vmatprep.subr.mxu0 0.0
    %4910 = vmatpush2.msra.mxu0 0.0
    %4911 = vmatprep.subr.mxu0 0.0
    %4912 = vmatpush2.msra.mxu0 0.0
    %4913 = vmatprep.subr.mxu0 0.0
    %4914 = vmatpush2.msra.mxu0 0.0
    %4915 = vmatprep.subr.mxu0 0.0
    %4916 = vmatpush2.msra.mxu0 0.0
    %4917 = vmatprep.subr.mxu0 0.0
    %4918 = vmatpush2.msra.mxu0 0.0
    %4919 = vmatprep.subr.mxu0 0.0
    %4920 = vmatpush2.msra.mxu0 0.0
    %4921 = vmatprep.mubr.f32.mxu0 0.0
    %v4922 = vand.u32 %v4848, 4294901760
    %v4923 = vsub.f32 %v4848, %v4922
    %v4924 = vand.u32 %v4923, 4294901760
    %v4925 = vsub.f32 %v4923, %v4924
    %v4926 = vand.u32 %v4925, 4294901760
    %4927 = vmatmul.mubr.f32.gmra.mxu0 %v4926
    %v4928 = vpop.f32.mrf.mxu0
    %v4929 = vadd.f32 0.0, %v4928
    %v4930 = vpop.f32.mrf.mxu0
    %4931 = vmatprep.mubr.f32.mxu0 0.0
    %v4932 = vand.u32 %v4851, 4294901760
    %v4933 = vsub.f32 %v4851, %v4932
    %v4934 = vand.u32 %v4933, 4294901760
    %v4935 = vsub.f32 %v4933, %v4934
    %v4936 = vand.u32 %v4935, 4294901760
    %4937 = vmatmul.mubr.f32.gmra.mxu0 %v4936
    %v4938 = vpop.f32.mrf.mxu0
    %v4939 = vadd.f32 0.0, %v4938
    %v4940 = vpop.f32.mrf.mxu0
    %4941 = vdwg.mxu0
    %4942 = vmatprep.subr.mxu0 0.0
    %4943 = vmatpush1.msra.mxu0 0.0
    %4944 = vmatprep.subr.mxu0 0.0
    %4945 = vmatpush1.msra.mxu0 0.0
    %4946 = vmatprep.subr.mxu0 0.0
    %4947 = vmatpush1.msra.mxu0 0.0
    %4948 = vmatprep.subr.mxu0 0.0
    %4949 = vmatpush1.msra.mxu0 0.0
    %4950 = vmatprep.subr.mxu0 0.0
    %4951 = vmatpush1.msra.mxu0 0.0
    %4952 = vmatprep.subr.mxu0 0.0
    %4953 = vmatpush1.msra.mxu0 0.0
    %4954 = vmatprep.subr.mxu0 0.0
    %4955 = vmatpush1.msra.mxu0 0.0
    %4956 = vmatprep.subr.mxu0 0.0
    %4957 = vmatpush1.msra.mxu0 0.0
    %4958 = vmatprep.subr.mxu0 0.0
    %4959 = vmatpush1.msra.mxu0 0.0
    %4960 = vmatprep.subr.mxu0 0.0
    %4961 = vmatpush1.msra.mxu0 0.0
    %4962 = vmatprep.subr.mxu0 0.0
    %4963 = vmatpush1.msra.mxu0 0.0
    %4964 = vmatprep.subr.mxu0 0.0
    %4965 = vmatpush1.msra.mxu0 0.0
    %4966 = vmatprep.subr.mxu0 0.0
    %v4967 = vand.u32 %v4846, 4294901760
    %v4968 = vsub.f32 %v4846, %v4967
    %v4969 = vand.u32 %v4968, 4294901760
    %v4970 = vsub.f32 %v4968, %v4969
    %v4971 = vand.u32 %v4970, 4294901760
    %4972 = vmatpush1.msra.mxu0 %v4971
    %4973 = vmatprep.subr.mxu0 0.0
    %v4974 = vand.u32 %v4845, 4294901760
    %v4975 = vsub.f32 %v4845, %v4974
    %v4976 = vand.u32 %v4975, 4294901760
    %v4977 = vsub.f32 %v4975, %v4976
    %v4978 = vand.u32 %v4977, 4294901760
    %4979 = vmatpush1.msra.mxu0 %v4978
    %4980 = vmatprep.subr.mxu0 0.0
    %v4981 = vand.u32 %v4844, 4294901760
    %v4982 = vsub.f32 %v4844, %v4981
    %v4983 = vand.u32 %v4982, 4294901760
    %v4984 = vsub.f32 %v4982, %v4983
    %v4985 = vand.u32 %v4984, 4294901760
    %4986 = vmatpush1.msra.mxu0 %v4985
    %4987 = vmatprep.subr.mxu0 0.0
    %v4988 = vand.u32 %v4843, 4294901760
    %v4989 = vsub.f32 %v4843, %v4988
    %v4990 = vand.u32 %v4989, 4294901760
    %v4991 = vsub.f32 %v4989, %v4990
    %v4992 = vand.u32 %v4991, 4294901760
    %4993 = vmatpush1.msra.mxu0 %v4992
    %4994 = vmatprep.subr.mxu0 0.0
    %4995 = vmatpush2.msra.mxu0 0.0
    %4996 = vmatprep.subr.mxu0 0.0
    %4997 = vmatpush2.msra.mxu0 0.0
    %4998 = vmatprep.subr.mxu0 0.0
    %4999 = vmatpush2.msra.mxu0 0.0
    %5000 = vmatprep.subr.mxu0 0.0
    %5001 = vmatpush2.msra.mxu0 0.0
    %5002 = vmatprep.subr.mxu0 0.0
    %5003 = vmatpush2.msra.mxu0 0.0
    %5004 = vmatprep.subr.mxu0 0.0
    %5005 = vmatpush2.msra.mxu0 0.0
    %5006 = vmatprep.subr.mxu0 0.0
    %5007 = vmatpush2.msra.mxu0 0.0
    %5008 = vmatprep.subr.mxu0 0.0
    %5009 = vmatpush2.msra.mxu0 0.0
    %5010 = vmatprep.subr.mxu0 0.0
    %5011 = vmatpush2.msra.mxu0 0.0
    %5012 = vmatprep.subr.mxu0 0.0
    %5013 = vmatpush2.msra.mxu0 0.0
    %5014 = vmatprep.subr.mxu0 0.0
    %5015 = vmatpush2.msra.mxu0 0.0
    %5016 = vmatprep.subr.mxu0 0.0
    %5017 = vmatpush2.msra.mxu0 0.0
    %5018 = vmatprep.subr.mxu0 0.0
    %5019 = vmatpush2.msra.mxu0 0.0
    %5020 = vmatprep.subr.mxu0 0.0
    %5021 = vmatpush2.msra.mxu0 0.0
    %5022 = vmatprep.subr.mxu0 0.0
    %5023 = vmatpush2.msra.mxu0 0.0
    %5024 = vmatprep.subr.mxu0 0.0
    %5025 = vmatpush2.msra.mxu0 0.0
    %5026 = vmatprep.mubr.f32.mxu0 0.0
    %v5027 = vand.u32 %v4848, 4294901760
    %5028 = vmatmul.mubr.f32.gmra.mxu0 %v5027
    %v5029 = vpop.f32.mrf.mxu0
    %v5030 = vadd.f32 %v4929, %v5029
    %v5031 = vpop.f32.mrf.mxu0
    %5032 = vmatprep.mubr.f32.mxu0 0.0
    %v5033 = vand.u32 %v4851, 4294901760
    %5034 = vmatmul.mubr.f32.gmra.mxu0 %v5033
    %v5035 = vpop.f32.mrf.mxu0
    %v5036 = vadd.f32 %v4939, %v5035
    %v5037 = vpop.f32.mrf.mxu0
    %5038 = vdwg.mxu0
    %5039 = vmatprep.subr.mxu0 0.0
    %5040 = vmatpush1.msra.mxu0 0.0
    %5041 = vmatprep.subr.mxu0 0.0
    %5042 = vmatpush1.msra.mxu0 0.0
    %5043 = vmatprep.subr.mxu0 0.0
    %5044 = vmatpush1.msra.mxu0 0.0
    %5045 = vmatprep.subr.mxu0 0.0
    %5046 = vmatpush1.msra.mxu0 0.0
    %5047 = vmatprep.subr.mxu0 0.0
    %5048 = vmatpush1.msra.mxu0 0.0
    %5049 = vmatprep.subr.mxu0 0.0
    %5050 = vmatpush1.msra.mxu0 0.0
    %5051 = vmatprep.subr.mxu0 0.0
    %5052 = vmatpush1.msra.mxu0 0.0
    %5053 = vmatprep.subr.mxu0 0.0
    %5054 = vmatpush1.msra.mxu0 0.0
    %5055 = vmatprep.subr.mxu0 0.0
    %5056 = vmatpush1.msra.mxu0 0.0
    %5057 = vmatprep.subr.mxu0 0.0
    %5058 = vmatpush1.msra.mxu0 0.0
    %5059 = vmatprep.subr.mxu0 0.0
    %5060 = vmatpush1.msra.mxu0 0.0
    %5061 = vmatprep.subr.mxu0 0.0
    %5062 = vmatpush1.msra.mxu0 0.0
    %5063 = vmatprep.subr.mxu0 0.0
    %v5064 = vand.u32 %v4846, 4294901760
    %v5065 = vsub.f32 %v4846, %v5064
    %5066 = vmatpush1.msra.mxu0 %v5065
    %5067 = vmatprep.subr.mxu0 0.0
    %v5068 = vand.u32 %v4845, 4294901760
    %v5069 = vsub.f32 %v4845, %v5068
    %5070 = vmatpush1.msra.mxu0 %v5069
    %5071 = vmatprep.subr.mxu0 0.0
    %v5072 = vand.u32 %v4844, 4294901760
    %v5073 = vsub.f32 %v4844, %v5072
    %5074 = vmatpush1.msra.mxu0 %v5073
    %5075 = vmatprep.subr.mxu0 0.0
    %v5076 = vand.u32 %v4843, 4294901760
    %v5077 = vsub.f32 %v4843, %v5076
    %5078 = vmatpush1.msra.mxu0 %v5077
    %5079 = vmatprep.subr.mxu0 0.0
    %5080 = vmatpush2.msra.mxu0 0.0
    %5081 = vmatprep.subr.mxu0 0.0
    %5082 = vmatpush2.msra.mxu0 0.0
    %5083 = vmatprep.subr.mxu0 0.0
    %5084 = vmatpush2.msra.mxu0 0.0
    %5085 = vmatprep.subr.mxu0 0.0
    %5086 = vmatpush2.msra.mxu0 0.0
    %5087 = vmatprep.subr.mxu0 0.0
    %5088 = vmatpush2.msra.mxu0 0.0
    %5089 = vmatprep.subr.mxu0 0.0
    %5090 = vmatpush2.msra.mxu0 0.0
    %5091 = vmatprep.subr.mxu0 0.0
    %5092 = vmatpush2.msra.mxu0 0.0
    %5093 = vmatprep.subr.mxu0 0.0
    %5094 = vmatpush2.msra.mxu0 0.0
    %5095 = vmatprep.subr.mxu0 0.0
    %5096 = vmatpush2.msra.mxu0 0.0
    %5097 = vmatprep.subr.mxu0 0.0
    %5098 = vmatpush2.msra.mxu0 0.0
    %5099 = vmatprep.subr.mxu0 0.0
    %5100 = vmatpush2.msra.mxu0 0.0
    %5101 = vmatprep.subr.mxu0 0.0
    %5102 = vmatpush2.msra.mxu0 0.0
    %5103 = vmatprep.subr.mxu0 0.0
    %5104 = vmatpush2.msra.mxu0 0.0
    %5105 = vmatprep.subr.mxu0 0.0
    %5106 = vmatpush2.msra.mxu0 0.0
    %5107 = vmatprep.subr.mxu0 0.0
    %5108 = vmatpush2.msra.mxu0 0.0
    %5109 = vmatprep.subr.mxu0 0.0
    %5110 = vmatpush2.msra.mxu0 0.0
    %5111 = vmatprep.mubr.f32.mxu0 0.0
    %v5112 = vand.u32 %v4848, 4294901760
    %v5113 = vsub.f32 %v4848, %v5112
    %5114 = vmatmul.mubr.f32.gmra.mxu0 %v5113
    %v5115 = vpop.f32.mrf.mxu0
    %v5116 = vadd.f32 %v5030, %v5115
    %v5117 = vpop.f32.mrf.mxu0
    %5118 = vmatprep.mubr.f32.mxu0 0.0
    %v5119 = vand.u32 %v4851, 4294901760
    %v5120 = vsub.f32 %v4851, %v5119
    %5121 = vmatmul.mubr.f32.gmra.mxu0 %v5120
    %v5122 = vpop.f32.mrf.mxu0
    %v5123 = vadd.f32 %v5036, %v5122
    %v5124 = vpop.f32.mrf.mxu0
    %5125 = vdwg.mxu0
    %5126 = vmatprep.subr.mxu0 0.0
    %5127 = vmatpush1.msra.mxu0 0.0
    %5128 = vmatprep.subr.mxu0 0.0
    %5129 = vmatpush1.msra.mxu0 0.0
    %5130 = vmatprep.subr.mxu0 0.0
    %5131 = vmatpush1.msra.mxu0 0.0
    %5132 = vmatprep.subr.mxu0 0.0
    %5133 = vmatpush1.msra.mxu0 0.0
    %5134 = vmatprep.subr.mxu0 0.0
    %5135 = vmatpush1.msra.mxu0 0.0
    %5136 = vmatprep.subr.mxu0 0.0
    %5137 = vmatpush1.msra.mxu0 0.0
    %5138 = vmatprep.subr.mxu0 0.0
    %5139 = vmatpush1.msra.mxu0 0.0
    %5140 = vmatprep.subr.mxu0 0.0
    %5141 = vmatpush1.msra.mxu0 0.0
    %5142 = vmatprep.subr.mxu0 0.0
    %5143 = vmatpush1.msra.mxu0 0.0
    %5144 = vmatprep.subr.mxu0 0.0
    %5145 = vmatpush1.msra.mxu0 0.0
    %5146 = vmatprep.subr.mxu0 0.0
    %5147 = vmatpush1.msra.mxu0 0.0
    %5148 = vmatprep.subr.mxu0 0.0
    %5149 = vmatpush1.msra.mxu0 0.0
    %5150 = vmatprep.subr.mxu0 0.0
    %v5151 = vand.u32 %v4846, 4294901760
    %5152 = vmatpush1.msra.mxu0 %v5151
    %5153 = vmatprep.subr.mxu0 0.0
    %v5154 = vand.u32 %v4845, 4294901760
    %5155 = vmatpush1.msra.mxu0 %v5154
    %5156 = vmatprep.subr.mxu0 0.0
    %v5157 = vand.u32 %v4844, 4294901760
    %5158 = vmatpush1.msra.mxu0 %v5157
    %5159 = vmatprep.subr.mxu0 0.0
    %v5160 = vand.u32 %v4843, 4294901760
    %5161 = vmatpush1.msra.mxu0 %v5160
    %5162 = vmatprep.subr.mxu0 0.0
    %5163 = vmatpush2.msra.mxu0 0.0
    %5164 = vmatprep.subr.mxu0 0.0
    %5165 = vmatpush2.msra.mxu0 0.0
    %5166 = vmatprep.subr.mxu0 0.0
    %5167 = vmatpush2.msra.mxu0 0.0
    %5168 = vmatprep.subr.mxu0 0.0
    %5169 = vmatpush2.msra.mxu0 0.0
    %5170 = vmatprep.subr.mxu0 0.0
    %5171 = vmatpush2.msra.mxu0 0.0
    %5172 = vmatprep.subr.mxu0 0.0
    %5173 = vmatpush2.msra.mxu0 0.0
    %5174 = vmatprep.subr.mxu0 0.0
    %5175 = vmatpush2.msra.mxu0 0.0
    %5176 = vmatprep.subr.mxu0 0.0
    %5177 = vmatpush2.msra.mxu0 0.0
    %5178 = vmatprep.subr.mxu0 0.0
    %5179 = vmatpush2.msra.mxu0 0.0
    %5180 = vmatprep.subr.mxu0 0.0
    %5181 = vmatpush2.msra.mxu0 0.0
    %5182 = vmatprep.subr.mxu0 0.0
    %5183 = vmatpush2.msra.mxu0 0.0
    %5184 = vmatprep.subr.mxu0 0.0
    %5185 = vmatpush2.msra.mxu0 0.0
    %5186 = vmatprep.subr.mxu0 0.0
    %5187 = vmatpush2.msra.mxu0 0.0
    %5188 = vmatprep.subr.mxu0 0.0
    %5189 = vmatpush2.msra.mxu0 0.0
    %5190 = vmatprep.subr.mxu0 0.0
    %5191 = vmatpush2.msra.mxu0 0.0
    %5192 = vmatprep.subr.mxu0 0.0
    %5193 = vmatpush2.msra.mxu0 0.0
    %5194 = vmatprep.mubr.f32.mxu0 0.0
    %v5195 = vand.u32 %v4848, 4294901760
    %v5196 = vsub.f32 %v4848, %v5195
    %v5197 = vand.u32 %v5196, 4294901760
    %5198 = vmatmul.mubr.f32.gmra.mxu0 %v5197
    %v5199 = vpop.f32.mrf.mxu0
    %v5200 = vadd.f32 %v5116, %v5199
    %v5201 = vpop.f32.mrf.mxu0
    %5202 = vmatprep.mubr.f32.mxu0 0.0
    %v5203 = vand.u32 %v4851, 4294901760
    %v5204 = vsub.f32 %v4851, %v5203
    %v5205 = vand.u32 %v5204, 4294901760
    %5206 = vmatmul.mubr.f32.gmra.mxu0 %v5205
    %v5207 = vpop.f32.mrf.mxu0
    %v5208 = vadd.f32 %v5123, %v5207
    %v5209 = vpop.f32.mrf.mxu0
    %5210 = vdwg.mxu0
    %5211 = vmatprep.subr.mxu0 0.0
    %5212 = vmatpush1.msra.mxu0 0.0
    %5213 = vmatprep.subr.mxu0 0.0
    %5214 = vmatpush1.msra.mxu0 0.0
    %5215 = vmatprep.subr.mxu0 0.0
    %5216 = vmatpush1.msra.mxu0 0.0
    %5217 = vmatprep.subr.mxu0 0.0
    %5218 = vmatpush1.msra.mxu0 0.0
    %5219 = vmatprep.subr.mxu0 0.0
    %5220 = vmatpush1.msra.mxu0 0.0
    %5221 = vmatprep.subr.mxu0 0.0
    %5222 = vmatpush1.msra.mxu0 0.0
    %5223 = vmatprep.subr.mxu0 0.0
    %5224 = vmatpush1.msra.mxu0 0.0
    %5225 = vmatprep.subr.mxu0 0.0
    %5226 = vmatpush1.msra.mxu0 0.0
    %5227 = vmatprep.subr.mxu0 0.0
    %5228 = vmatpush1.msra.mxu0 0.0
    %5229 = vmatprep.subr.mxu0 0.0
    %5230 = vmatpush1.msra.mxu0 0.0
    %5231 = vmatprep.subr.mxu0 0.0
    %5232 = vmatpush1.msra.mxu0 0.0
    %5233 = vmatprep.subr.mxu0 0.0
    %5234 = vmatpush1.msra.mxu0 0.0
    %5235 = vmatprep.subr.mxu0 0.0
    %v5236 = vand.u32 %v4846, 4294901760
    %v5237 = vsub.f32 %v4846, %v5236
    %v5238 = vand.u32 %v5237, 4294901760
    %5239 = vmatpush1.msra.mxu0 %v5238
    %5240 = vmatprep.subr.mxu0 0.0
    %v5241 = vand.u32 %v4845, 4294901760
    %v5242 = vsub.f32 %v4845, %v5241
    %v5243 = vand.u32 %v5242, 4294901760
    %5244 = vmatpush1.msra.mxu0 %v5243
    %5245 = vmatprep.subr.mxu0 0.0
    %v5246 = vand.u32 %v4844, 4294901760
    %v5247 = vsub.f32 %v4844, %v5246
    %v5248 = vand.u32 %v5247, 4294901760
    %5249 = vmatpush1.msra.mxu0 %v5248
    %5250 = vmatprep.subr.mxu0 0.0
    %v5251 = vand.u32 %v4843, 4294901760
    %v5252 = vsub.f32 %v4843, %v5251
    %v5253 = vand.u32 %v5252, 4294901760
    %5254 = vmatpush1.msra.mxu0 %v5253
    %5255 = vmatprep.subr.mxu0 0.0
    %5256 = vmatpush2.msra.mxu0 0.0
    %5257 = vmatprep.subr.mxu0 0.0
    %5258 = vmatpush2.msra.mxu0 0.0
    %5259 = vmatprep.subr.mxu0 0.0
    %5260 = vmatpush2.msra.mxu0 0.0
    %5261 = vmatprep.subr.mxu0 0.0
    %5262 = vmatpush2.msra.mxu0 0.0
    %5263 = vmatprep.subr.mxu0 0.0
    %5264 = vmatpush2.msra.mxu0 0.0
    %5265 = vmatprep.subr.mxu0 0.0
    %5266 = vmatpush2.msra.mxu0 0.0
    %5267 = vmatprep.subr.mxu0 0.0
    %5268 = vmatpush2.msra.mxu0 0.0
    %5269 = vmatprep.subr.mxu0 0.0
    %5270 = vmatpush2.msra.mxu0 0.0
    %5271 = vmatprep.subr.mxu0 0.0
    %5272 = vmatpush2.msra.mxu0 0.0
    %5273 = vmatprep.subr.mxu0 0.0
    %5274 = vmatpush2.msra.mxu0 0.0
    %5275 = vmatprep.subr.mxu0 0.0
    %5276 = vmatpush2.msra.mxu0 0.0
    %5277 = vmatprep.subr.mxu0 0.0
    %5278 = vmatpush2.msra.mxu0 0.0
    %5279 = vmatprep.subr.mxu0 0.0
    %5280 = vmatpush2.msra.mxu0 0.0
    %5281 = vmatprep.subr.mxu0 0.0
    %5282 = vmatpush2.msra.mxu0 0.0
    %5283 = vmatprep.subr.mxu0 0.0
    %5284 = vmatpush2.msra.mxu0 0.0
    %5285 = vmatprep.subr.mxu0 0.0
    %5286 = vmatpush2.msra.mxu0 0.0
    %5287 = vmatprep.mubr.f32.mxu0 0.0
    %v5288 = vand.u32 %v4848, 4294901760
    %5289 = vmatmul.mubr.f32.gmra.mxu0 %v5288
    %v5290 = vpop.f32.mrf.mxu0
    %v5291 = vadd.f32 %v5200, %v5290
    %v5292 = vpop.f32.mrf.mxu0
    %5293 = vmatprep.mubr.f32.mxu0 0.0
    %v5294 = vand.u32 %v4851, 4294901760
    %5295 = vmatmul.mubr.f32.gmra.mxu0 %v5294
    %v5296 = vpop.f32.mrf.mxu0
    %v5297 = vadd.f32 %v5208, %v5296
    %v5298 = vpop.f32.mrf.mxu0
    %5299 = vdwg.mxu0
    %5300 = vmatprep.subr.mxu0 0.0
    %5301 = vmatpush1.msra.mxu0 0.0
    %5302 = vmatprep.subr.mxu0 0.0
    %5303 = vmatpush1.msra.mxu0 0.0
    %5304 = vmatprep.subr.mxu0 0.0
    %5305 = vmatpush1.msra.mxu0 0.0
    %5306 = vmatprep.subr.mxu0 0.0
    %5307 = vmatpush1.msra.mxu0 0.0
    %5308 = vmatprep.subr.mxu0 0.0
    %5309 = vmatpush1.msra.mxu0 0.0
    %5310 = vmatprep.subr.mxu0 0.0
    %5311 = vmatpush1.msra.mxu0 0.0
    %5312 = vmatprep.subr.mxu0 0.0
    %5313 = vmatpush1.msra.mxu0 0.0
    %5314 = vmatprep.subr.mxu0 0.0
    %5315 = vmatpush1.msra.mxu0 0.0
    %5316 = vmatprep.subr.mxu0 0.0
    %5317 = vmatpush1.msra.mxu0 0.0
    %5318 = vmatprep.subr.mxu0 0.0
    %5319 = vmatpush1.msra.mxu0 0.0
    %5320 = vmatprep.subr.mxu0 0.0
    %5321 = vmatpush1.msra.mxu0 0.0
    %5322 = vmatprep.subr.mxu0 0.0
    %5323 = vmatpush1.msra.mxu0 0.0
    %5324 = vmatprep.subr.mxu0 0.0
    %v5325 = vand.u32 %v4846, 4294901760
    %5326 = vmatpush1.msra.mxu0 %v5325
    %5327 = vmatprep.subr.mxu0 0.0
    %v5328 = vand.u32 %v4845, 4294901760
    %5329 = vmatpush1.msra.mxu0 %v5328
    %5330 = vmatprep.subr.mxu0 0.0
    %v5331 = vand.u32 %v4844, 4294901760
    %5332 = vmatpush1.msra.mxu0 %v5331
    %5333 = vmatprep.subr.mxu0 0.0
    %v5334 = vand.u32 %v4843, 4294901760
    %5335 = vmatpush1.msra.mxu0 %v5334
    %5336 = vmatprep.subr.mxu0 0.0
    %5337 = vmatpush2.msra.mxu0 0.0
    %5338 = vmatprep.subr.mxu0 0.0
    %5339 = vmatpush2.msra.mxu0 0.0
    %5340 = vmatprep.subr.mxu0 0.0
    %5341 = vmatpush2.msra.mxu0 0.0
    %5342 = vmatprep.subr.mxu0 0.0
    %5343 = vmatpush2.msra.mxu0 0.0
    %5344 = vmatprep.subr.mxu0 0.0
    %5345 = vmatpush2.msra.mxu0 0.0
    %5346 = vmatprep.subr.mxu0 0.0
    %5347 = vmatpush2.msra.mxu0 0.0
    %5348 = vmatprep.subr.mxu0 0.0
    %5349 = vmatpush2.msra.mxu0 0.0
    %5350 = vmatprep.subr.mxu0 0.0
    %5351 = vmatpush2.msra.mxu0 0.0
    %5352 = vmatprep.subr.mxu0 0.0
    %5353 = vmatpush2.msra.mxu0 0.0
    %5354 = vmatprep.subr.mxu0 0.0
    %5355 = vmatpush2.msra.mxu0 0.0
    %5356 = vmatprep.subr.mxu0 0.0
    %5357 = vmatpush2.msra.mxu0 0.0
    %5358 = vmatprep.subr.mxu0 0.0
    %5359 = vmatpush2.msra.mxu0 0.0
    %5360 = vmatprep.subr.mxu0 0.0
    %5361 = vmatpush2.msra.mxu0 0.0
    %5362 = vmatprep.subr.mxu0 0.0
    %5363 = vmatpush2.msra.mxu0 0.0
    %5364 = vmatprep.subr.mxu0 0.0
    %5365 = vmatpush2.msra.mxu0 0.0
    %5366 = vmatprep.subr.mxu0 0.0
    %5367 = vmatpush2.msra.mxu0 0.0
    %5368 = vmatprep.mubr.f32.mxu0 0.0
    %v5369 = vand.u32 %v4848, 4294901760
    %5370 = vmatmul.mubr.f32.gmra.mxu0 %v5369
    %v5371 = vpop.f32.mrf.mxu0
    %v5372 = vadd.f32 %v5291, %v5371
    %v5373 = vpop.f32.mrf.mxu0
    %5374 = vmatprep.mubr.f32.mxu0 0.0
    %v5375 = vand.u32 %v4851, 4294901760
    %5376 = vmatmul.mubr.f32.gmra.mxu0 %v5375
    %v5377 = vpop.f32.mrf.mxu0
    %v5378 = vadd.f32 %v5297, %v5377
    %v5379 = vpop.f32.mrf.mxu0
    %5380 = vdwg.mxu0
    %v5381 = vadd.f32 %v4331, %v5372
    %v5382 = vadd.f32 %v4332, %v5378
    %v5383 = vld [vmem:[%s2204] sm:$0xff]
    %v5384 = vld [vmem:[%s2204 + $0x8] sm:$0xff]
    %v5386 = vsel %vm103, %v5383, 0
    %v5389 = vsel %vm103, %v5384, 0
    %5391 = vmatprep.subr.mxu0 0.0
    %5392 = vmatpush1.msra.mxu0 0.0
    %5393 = vmatprep.subr.mxu0 0.0
    %5394 = vmatpush1.msra.mxu0 0.0
    %5395 = vmatprep.subr.mxu0 0.0
    %5396 = vmatpush1.msra.mxu0 0.0
    %5397 = vmatprep.subr.mxu0 0.0
    %5398 = vmatpush1.msra.mxu0 0.0
    %5399 = vmatprep.subr.mxu0 0.0
    %5400 = vmatpush1.msra.mxu0 0.0
    %5401 = vmatprep.subr.mxu0 0.0
    %5402 = vmatpush1.msra.mxu0 0.0
    %5403 = vmatprep.subr.mxu0 0.0
    %5404 = vmatpush1.msra.mxu0 0.0
    %5405 = vmatprep.subr.mxu0 0.0
    %5406 = vmatpush1.msra.mxu0 0.0
    %5407 = vmatprep.subr.mxu0 0.0
    %5408 = vmatpush1.msra.mxu0 0.0
    %5409 = vmatprep.subr.mxu0 0.0
    %5410 = vmatpush1.msra.mxu0 0.0
    %5411 = vmatprep.subr.mxu0 0.0
    %5412 = vmatpush1.msra.mxu0 0.0
    %5413 = vmatprep.subr.mxu0 0.0
    %5414 = vmatpush1.msra.mxu0 0.0
    %5415 = vmatprep.subr.mxu0 0.0
    %5416 = vmatpush1.msra.mxu0 0.0
    %5417 = vmatprep.subr.mxu0 0.0
    %5418 = vmatpush1.msra.mxu0 0.0
    %5419 = vmatprep.subr.mxu0 0.0
    %v5420 = vand.u32 %v3282, 4294901760
    %5421 = vmatpush1.msra.mxu0 %v5420
    %5422 = vmatprep.subr.mxu0 0.0
    %v5423 = vand.u32 %v3281, 4294901760
    %5424 = vmatpush1.msra.mxu0 %v5423
    %5425 = vmatprep.subr.mxu0 0.0
    %5426 = vmatpush2.msra.mxu0 0.0
    %5427 = vmatprep.subr.mxu0 0.0
    %5428 = vmatpush2.msra.mxu0 0.0
    %5429 = vmatprep.subr.mxu0 0.0
    %5430 = vmatpush2.msra.mxu0 0.0
    %5431 = vmatprep.subr.mxu0 0.0
    %5432 = vmatpush2.msra.mxu0 0.0
    %5433 = vmatprep.subr.mxu0 0.0
    %5434 = vmatpush2.msra.mxu0 0.0
    %5435 = vmatprep.subr.mxu0 0.0
    %5436 = vmatpush2.msra.mxu0 0.0
    %5437 = vmatprep.subr.mxu0 0.0
    %5438 = vmatpush2.msra.mxu0 0.0
    %5439 = vmatprep.subr.mxu0 0.0
    %5440 = vmatpush2.msra.mxu0 0.0
    %5441 = vmatprep.subr.mxu0 0.0
    %5442 = vmatpush2.msra.mxu0 0.0
    %5443 = vmatprep.subr.mxu0 0.0
    %5444 = vmatpush2.msra.mxu0 0.0
    %5445 = vmatprep.subr.mxu0 0.0
    %5446 = vmatpush2.msra.mxu0 0.0
    %5447 = vmatprep.subr.mxu0 0.0
    %5448 = vmatpush2.msra.mxu0 0.0
    %5449 = vmatprep.subr.mxu0 0.0
    %5450 = vmatpush2.msra.mxu0 0.0
    %5451 = vmatprep.subr.mxu0 0.0
    %5452 = vmatpush2.msra.mxu0 0.0
    %5453 = vmatprep.subr.mxu0 0.0
    %5454 = vmatpush2.msra.mxu0 0.0
    %5455 = vmatprep.subr.mxu0 0.0
    %5456 = vmatpush2.msra.mxu0 0.0
    %5457 = vmatprep.mubr.f32.mxu0 0.0
    %v5458 = vand.u32 %v5386, 4294901760
    %v5459 = vsub.f32 %v5386, %v5458
    %v5460 = vand.u32 %v5459, 4294901760
    %v5461 = vsub.f32 %v5459, %v5460
    %v5462 = vand.u32 %v5461, 4294901760
    %5463 = vmatmul.mubr.f32.gmra.mxu0 %v5462
    %v5464 = vpop.f32.mrf.mxu0
    %v5465 = vadd.f32 0.0, %v5464
    %v5466 = vpop.f32.mrf.mxu0
    %5467 = vmatprep.mubr.f32.mxu0 0.0
    %v5468 = vand.u32 %v5389, 4294901760
    %v5469 = vsub.f32 %v5389, %v5468
    %v5470 = vand.u32 %v5469, 4294901760
    %v5471 = vsub.f32 %v5469, %v5470
    %v5472 = vand.u32 %v5471, 4294901760
    %5473 = vmatmul.mubr.f32.gmra.mxu0 %v5472
    %v5474 = vpop.f32.mrf.mxu0
    %v5475 = vadd.f32 0.0, %v5474
    %v5476 = vpop.f32.mrf.mxu0
    %5477 = vdwg.mxu0
    %5478 = vmatprep.subr.mxu0 0.0
    %5479 = vmatpush1.msra.mxu0 0.0
    %5480 = vmatprep.subr.mxu0 0.0
    %5481 = vmatpush1.msra.mxu0 0.0
    %5482 = vmatprep.subr.mxu0 0.0
    %5483 = vmatpush1.msra.mxu0 0.0
    %5484 = vmatprep.subr.mxu0 0.0
    %5485 = vmatpush1.msra.mxu0 0.0
    %5486 = vmatprep.subr.mxu0 0.0
    %5487 = vmatpush1.msra.mxu0 0.0
    %5488 = vmatprep.subr.mxu0 0.0
    %5489 = vmatpush1.msra.mxu0 0.0
    %5490 = vmatprep.subr.mxu0 0.0
    %5491 = vmatpush1.msra.mxu0 0.0
    %5492 = vmatprep.subr.mxu0 0.0
    %5493 = vmatpush1.msra.mxu0 0.0
    %5494 = vmatprep.subr.mxu0 0.0
    %5495 = vmatpush1.msra.mxu0 0.0
    %5496 = vmatprep.subr.mxu0 0.0
    %5497 = vmatpush1.msra.mxu0 0.0
    %5498 = vmatprep.subr.mxu0 0.0
    %5499 = vmatpush1.msra.mxu0 0.0
    %5500 = vmatprep.subr.mxu0 0.0
    %5501 = vmatpush1.msra.mxu0 0.0
    %5502 = vmatprep.subr.mxu0 0.0
    %5503 = vmatpush1.msra.mxu0 0.0
    %5504 = vmatprep.subr.mxu0 0.0
    %5505 = vmatpush1.msra.mxu0 0.0
    %5506 = vmatprep.subr.mxu0 0.0
    %v5507 = vand.u32 %v3282, 4294901760
    %v5508 = vsub.f32 %v3282, %v5507
    %v5509 = vand.u32 %v5508, 4294901760
    %v5510 = vsub.f32 %v5508, %v5509
    %v5511 = vand.u32 %v5510, 4294901760
    %5512 = vmatpush1.msra.mxu0 %v5511
    %5513 = vmatprep.subr.mxu0 0.0
    %v5514 = vand.u32 %v3281, 4294901760
    %v5515 = vsub.f32 %v3281, %v5514
    %v5516 = vand.u32 %v5515, 4294901760
    %v5517 = vsub.f32 %v5515, %v5516
    %v5518 = vand.u32 %v5517, 4294901760
    %5519 = vmatpush1.msra.mxu0 %v5518
    %5520 = vmatprep.subr.mxu0 0.0
    %5521 = vmatpush2.msra.mxu0 0.0
    %5522 = vmatprep.subr.mxu0 0.0
    %5523 = vmatpush2.msra.mxu0 0.0
    %5524 = vmatprep.subr.mxu0 0.0
    %5525 = vmatpush2.msra.mxu0 0.0
    %5526 = vmatprep.subr.mxu0 0.0
    %5527 = vmatpush2.msra.mxu0 0.0
    %5528 = vmatprep.subr.mxu0 0.0
    %5529 = vmatpush2.msra.mxu0 0.0
    %5530 = vmatprep.subr.mxu0 0.0
    %5531 = vmatpush2.msra.mxu0 0.0
    %5532 = vmatprep.subr.mxu0 0.0
    %5533 = vmatpush2.msra.mxu0 0.0
    %5534 = vmatprep.subr.mxu0 0.0
    %5535 = vmatpush2.msra.mxu0 0.0
    %5536 = vmatprep.subr.mxu0 0.0
    %5537 = vmatpush2.msra.mxu0 0.0
    %5538 = vmatprep.subr.mxu0 0.0
    %5539 = vmatpush2.msra.mxu0 0.0
    %5540 = vmatprep.subr.mxu0 0.0
    %5541 = vmatpush2.msra.mxu0 0.0
    %5542 = vmatprep.subr.mxu0 0.0
    %5543 = vmatpush2.msra.mxu0 0.0
    %5544 = vmatprep.subr.mxu0 0.0
    %5545 = vmatpush2.msra.mxu0 0.0
    %5546 = vmatprep.subr.mxu0 0.0
    %5547 = vmatpush2.msra.mxu0 0.0
    %5548 = vmatprep.subr.mxu0 0.0
    %5549 = vmatpush2.msra.mxu0 0.0
    %5550 = vmatprep.subr.mxu0 0.0
    %5551 = vmatpush2.msra.mxu0 0.0
    %5552 = vmatprep.mubr.f32.mxu0 0.0
    %v5553 = vand.u32 %v5386, 4294901760
    %5554 = vmatmul.mubr.f32.gmra.mxu0 %v5553
    %v5555 = vpop.f32.mrf.mxu0
    %v5556 = vadd.f32 %v5465, %v5555
    %v5557 = vpop.f32.mrf.mxu0
    %5558 = vmatprep.mubr.f32.mxu0 0.0
    %v5559 = vand.u32 %v5389, 4294901760
    %5560 = vmatmul.mubr.f32.gmra.mxu0 %v5559
    %v5561 = vpop.f32.mrf.mxu0
    %v5562 = vadd.f32 %v5475, %v5561
    %v5563 = vpop.f32.mrf.mxu0
    %5564 = vdwg.mxu0
    %5565 = vmatprep.subr.mxu0 0.0
    %5566 = vmatpush1.msra.mxu0 0.0
    %5567 = vmatprep.subr.mxu0 0.0
    %5568 = vmatpush1.msra.mxu0 0.0
    %5569 = vmatprep.subr.mxu0 0.0
    %5570 = vmatpush1.msra.mxu0 0.0
    %5571 = vmatprep.subr.mxu0 0.0
    %5572 = vmatpush1.msra.mxu0 0.0
    %5573 = vmatprep.subr.mxu0 0.0
    %5574 = vmatpush1.msra.mxu0 0.0
    %5575 = vmatprep.subr.mxu0 0.0
    %5576 = vmatpush1.msra.mxu0 0.0
    %5577 = vmatprep.subr.mxu0 0.0
    %5578 = vmatpush1.msra.mxu0 0.0
    %5579 = vmatprep.subr.mxu0 0.0
    %5580 = vmatpush1.msra.mxu0 0.0
    %5581 = vmatprep.subr.mxu0 0.0
    %5582 = vmatpush1.msra.mxu0 0.0
    %5583 = vmatprep.subr.mxu0 0.0
    %5584 = vmatpush1.msra.mxu0 0.0
    %5585 = vmatprep.subr.mxu0 0.0
    %5586 = vmatpush1.msra.mxu0 0.0
    %5587 = vmatprep.subr.mxu0 0.0
    %5588 = vmatpush1.msra.mxu0 0.0
    %5589 = vmatprep.subr.mxu0 0.0
    %5590 = vmatpush1.msra.mxu0 0.0
    %5591 = vmatprep.subr.mxu0 0.0
    %5592 = vmatpush1.msra.mxu0 0.0
    %5593 = vmatprep.subr.mxu0 0.0
    %v5594 = vand.u32 %v3282, 4294901760
    %v5595 = vsub.f32 %v3282, %v5594
    %5596 = vmatpush1.msra.mxu0 %v5595
    %5597 = vmatprep.subr.mxu0 0.0
    %v5598 = vand.u32 %v3281, 4294901760
    %v5599 = vsub.f32 %v3281, %v5598
    %5600 = vmatpush1.msra.mxu0 %v5599
    %5601 = vmatprep.subr.mxu0 0.0
    %5602 = vmatpush2.msra.mxu0 0.0
    %5603 = vmatprep.subr.mxu0 0.0
    %5604 = vmatpush2.msra.mxu0 0.0
    %5605 = vmatprep.subr.mxu0 0.0
    %5606 = vmatpush2.msra.mxu0 0.0
    %5607 = vmatprep.subr.mxu0 0.0
    %5608 = vmatpush2.msra.mxu0 0.0
    %5609 = vmatprep.subr.mxu0 0.0
    %5610 = vmatpush2.msra.mxu0 0.0
    %5611 = vmatprep.subr.mxu0 0.0
    %5612 = vmatpush2.msra.mxu0 0.0
    %5613 = vmatprep.subr.mxu0 0.0
    %5614 = vmatpush2.msra.mxu0 0.0
    %5615 = vmatprep.subr.mxu0 0.0
    %5616 = vmatpush2.msra.mxu0 0.0
    %5617 = vmatprep.subr.mxu0 0.0
    %5618 = vmatpush2.msra.mxu0 0.0
    %5619 = vmatprep.subr.mxu0 0.0
    %5620 = vmatpush2.msra.mxu0 0.0
    %5621 = vmatprep.subr.mxu0 0.0
    %5622 = vmatpush2.msra.mxu0 0.0
    %5623 = vmatprep.subr.mxu0 0.0
    %5624 = vmatpush2.msra.mxu0 0.0
    %5625 = vmatprep.subr.mxu0 0.0
    %5626 = vmatpush2.msra.mxu0 0.0
    %5627 = vmatprep.subr.mxu0 0.0
    %5628 = vmatpush2.msra.mxu0 0.0
    %5629 = vmatprep.subr.mxu0 0.0
    %5630 = vmatpush2.msra.mxu0 0.0
    %5631 = vmatprep.subr.mxu0 0.0
    %5632 = vmatpush2.msra.mxu0 0.0
    %5633 = vmatprep.mubr.f32.mxu0 0.0
    %v5634 = vand.u32 %v5386, 4294901760
    %v5635 = vsub.f32 %v5386, %v5634
    %5636 = vmatmul.mubr.f32.gmra.mxu0 %v5635
    %v5637 = vpop.f32.mrf.mxu0
    %v5638 = vadd.f32 %v5556, %v5637
    %v5639 = vpop.f32.mrf.mxu0
    %5640 = vmatprep.mubr.f32.mxu0 0.0
    %v5641 = vand.u32 %v5389, 4294901760
    %v5642 = vsub.f32 %v5389, %v5641
    %5643 = vmatmul.mubr.f32.gmra.mxu0 %v5642
    %v5644 = vpop.f32.mrf.mxu0
    %v5645 = vadd.f32 %v5562, %v5644
    %v5646 = vpop.f32.mrf.mxu0
    %5647 = vdwg.mxu0
    %5648 = vmatprep.subr.mxu0 0.0
    %5649 = vmatpush1.msra.mxu0 0.0
    %5650 = vmatprep.subr.mxu0 0.0
    %5651 = vmatpush1.msra.mxu0 0.0
    %5652 = vmatprep.subr.mxu0 0.0
    %5653 = vmatpush1.msra.mxu0 0.0
    %5654 = vmatprep.subr.mxu0 0.0
    %5655 = vmatpush1.msra.mxu0 0.0
    %5656 = vmatprep.subr.mxu0 0.0
    %5657 = vmatpush1.msra.mxu0 0.0
    %5658 = vmatprep.subr.mxu0 0.0
    %5659 = vmatpush1.msra.mxu0 0.0
    %5660 = vmatprep.subr.mxu0 0.0
    %5661 = vmatpush1.msra.mxu0 0.0
    %5662 = vmatprep.subr.mxu0 0.0
    %5663 = vmatpush1.msra.mxu0 0.0
    %5664 = vmatprep.subr.mxu0 0.0
    %5665 = vmatpush1.msra.mxu0 0.0
    %5666 = vmatprep.subr.mxu0 0.0
    %5667 = vmatpush1.msra.mxu0 0.0
    %5668 = vmatprep.subr.mxu0 0.0
    %5669 = vmatpush1.msra.mxu0 0.0
    %5670 = vmatprep.subr.mxu0 0.0
    %5671 = vmatpush1.msra.mxu0 0.0
    %5672 = vmatprep.subr.mxu0 0.0
    %5673 = vmatpush1.msra.mxu0 0.0
    %5674 = vmatprep.subr.mxu0 0.0
    %5675 = vmatpush1.msra.mxu0 0.0
    %5676 = vmatprep.subr.mxu0 0.0
    %v5677 = vand.u32 %v3282, 4294901760
    %5678 = vmatpush1.msra.mxu0 %v5677
    %5679 = vmatprep.subr.mxu0 0.0
    %v5680 = vand.u32 %v3281, 4294901760
    %5681 = vmatpush1.msra.mxu0 %v5680
    %5682 = vmatprep.subr.mxu0 0.0
    %5683 = vmatpush2.msra.mxu0 0.0
    %5684 = vmatprep.subr.mxu0 0.0
    %5685 = vmatpush2.msra.mxu0 0.0
    %5686 = vmatprep.subr.mxu0 0.0
    %5687 = vmatpush2.msra.mxu0 0.0
    %5688 = vmatprep.subr.mxu0 0.0
    %5689 = vmatpush2.msra.mxu0 0.0
    %5690 = vmatprep.subr.mxu0 0.0
    %5691 = vmatpush2.msra.mxu0 0.0
    %5692 = vmatprep.subr.mxu0 0.0
    %5693 = vmatpush2.msra.mxu0 0.0
    %5694 = vmatprep.subr.mxu0 0.0
    %5695 = vmatpush2.msra.mxu0 0.0
    %5696 = vmatprep.subr.mxu0 0.0
    %5697 = vmatpush2.msra.mxu0 0.0
    %5698 = vmatprep.subr.mxu0 0.0
    %5699 = vmatpush2.msra.mxu0 0.0
    %5700 = vmatprep.subr.mxu0 0.0
    %5701 = vmatpush2.msra.mxu0 0.0
    %5702 = vmatprep.subr.mxu0 0.0
    %5703 = vmatpush2.msra.mxu0 0.0
    %5704 = vmatprep.subr.mxu0 0.0
    %5705 = vmatpush2.msra.mxu0 0.0
    %5706 = vmatprep.subr.mxu0 0.0
    %5707 = vmatpush2.msra.mxu0 0.0
    %5708 = vmatprep.subr.mxu0 0.0
    %5709 = vmatpush2.msra.mxu0 0.0
    %5710 = vmatprep.subr.mxu0 0.0
    %5711 = vmatpush2.msra.mxu0 0.0
    %5712 = vmatprep.subr.mxu0 0.0
    %5713 = vmatpush2.msra.mxu0 0.0
    %5714 = vmatprep.mubr.f32.mxu0 0.0
    %v5715 = vand.u32 %v5386, 4294901760
    %v5716 = vsub.f32 %v5386, %v5715
    %v5717 = vand.u32 %v5716, 4294901760
    %5718 = vmatmul.mubr.f32.gmra.mxu0 %v5717
    %v5719 = vpop.f32.mrf.mxu0
    %v5720 = vadd.f32 %v5638, %v5719
    %v5721 = vpop.f32.mrf.mxu0
    %5722 = vmatprep.mubr.f32.mxu0 0.0
    %v5723 = vand.u32 %v5389, 4294901760
    %v5724 = vsub.f32 %v5389, %v5723
    %v5725 = vand.u32 %v5724, 4294901760
    %5726 = vmatmul.mubr.f32.gmra.mxu0 %v5725
    %v5727 = vpop.f32.mrf.mxu0
    %v5728 = vadd.f32 %v5645, %v5727
    %v5729 = vpop.f32.mrf.mxu0
    %5730 = vdwg.mxu0
    %5731 = vmatprep.subr.mxu0 0.0
    %5732 = vmatpush1.msra.mxu0 0.0
    %5733 = vmatprep.subr.mxu0 0.0
    %5734 = vmatpush1.msra.mxu0 0.0
    %5735 = vmatprep.subr.mxu0 0.0
    %5736 = vmatpush1.msra.mxu0 0.0
    %5737 = vmatprep.subr.mxu0 0.0
    %5738 = vmatpush1.msra.mxu0 0.0
    %5739 = vmatprep.subr.mxu0 0.0
    %5740 = vmatpush1.msra.mxu0 0.0
    %5741 = vmatprep.subr.mxu0 0.0
    %5742 = vmatpush1.msra.mxu0 0.0
    %5743 = vmatprep.subr.mxu0 0.0
    %5744 = vmatpush1.msra.mxu0 0.0
    %5745 = vmatprep.subr.mxu0 0.0
    %5746 = vmatpush1.msra.mxu0 0.0
    %5747 = vmatprep.subr.mxu0 0.0
    %5748 = vmatpush1.msra.mxu0 0.0
    %5749 = vmatprep.subr.mxu0 0.0
    %5750 = vmatpush1.msra.mxu0 0.0
    %5751 = vmatprep.subr.mxu0 0.0
    %5752 = vmatpush1.msra.mxu0 0.0
    %5753 = vmatprep.subr.mxu0 0.0
    %5754 = vmatpush1.msra.mxu0 0.0
    %5755 = vmatprep.subr.mxu0 0.0
    %5756 = vmatpush1.msra.mxu0 0.0
    %5757 = vmatprep.subr.mxu0 0.0
    %5758 = vmatpush1.msra.mxu0 0.0
    %5759 = vmatprep.subr.mxu0 0.0
    %v5760 = vand.u32 %v3282, 4294901760
    %v5761 = vsub.f32 %v3282, %v5760
    %v5762 = vand.u32 %v5761, 4294901760
    %5763 = vmatpush1.msra.mxu0 %v5762
    %5764 = vmatprep.subr.mxu0 0.0
    %v5765 = vand.u32 %v3281, 4294901760
    %v5766 = vsub.f32 %v3281, %v5765
    %v5767 = vand.u32 %v5766, 4294901760
    %5768 = vmatpush1.msra.mxu0 %v5767
    %5769 = vmatprep.subr.mxu0 0.0
    %5770 = vmatpush2.msra.mxu0 0.0
    %5771 = vmatprep.subr.mxu0 0.0
    %5772 = vmatpush2.msra.mxu0 0.0
    %5773 = vmatprep.subr.mxu0 0.0
    %5774 = vmatpush2.msra.mxu0 0.0
    %5775 = vmatprep.subr.mxu0 0.0
    %5776 = vmatpush2.msra.mxu0 0.0
    %5777 = vmatprep.subr.mxu0 0.0
    %5778 = vmatpush2.msra.mxu0 0.0
    %5779 = vmatprep.subr.mxu0 0.0
    %5780 = vmatpush2.msra.mxu0 0.0
    %5781 = vmatprep.subr.mxu0 0.0
    %5782 = vmatpush2.msra.mxu0 0.0
    %5783 = vmatprep.subr.mxu0 0.0
    %5784 = vmatpush2.msra.mxu0 0.0
    %5785 = vmatprep.subr.mxu0 0.0
    %5786 = vmatpush2.msra.mxu0 0.0
    %5787 = vmatprep.subr.mxu0 0.0
    %5788 = vmatpush2.msra.mxu0 0.0
    %5789 = vmatprep.subr.mxu0 0.0
    %5790 = vmatpush2.msra.mxu0 0.0
    %5791 = vmatprep.subr.mxu0 0.0
    %5792 = vmatpush2.msra.mxu0 0.0
    %5793 = vmatprep.subr.mxu0 0.0
    %5794 = vmatpush2.msra.mxu0 0.0
    %5795 = vmatprep.subr.mxu0 0.0
    %5796 = vmatpush2.msra.mxu0 0.0
    %5797 = vmatprep.subr.mxu0 0.0
    %5798 = vmatpush2.msra.mxu0 0.0
    %5799 = vmatprep.subr.mxu0 0.0
    %5800 = vmatpush2.msra.mxu0 0.0
    %5801 = vmatprep.mubr.f32.mxu0 0.0
    %v5802 = vand.u32 %v5386, 4294901760
    %5803 = vmatmul.mubr.f32.gmra.mxu0 %v5802
    %v5804 = vpop.f32.mrf.mxu0
    %v5805 = vadd.f32 %v5720, %v5804
    %v5806 = vpop.f32.mrf.mxu0
    %5807 = vmatprep.mubr.f32.mxu0 0.0
    %v5808 = vand.u32 %v5389, 4294901760
    %5809 = vmatmul.mubr.f32.gmra.mxu0 %v5808
    %v5810 = vpop.f32.mrf.mxu0
    %v5811 = vadd.f32 %v5728, %v5810
    %v5812 = vpop.f32.mrf.mxu0
    %5813 = vdwg.mxu0
    %5814 = vmatprep.subr.mxu0 0.0
    %5815 = vmatpush1.msra.mxu0 0.0
    %5816 = vmatprep.subr.mxu0 0.0
    %5817 = vmatpush1.msra.mxu0 0.0
    %5818 = vmatprep.subr.mxu0 0.0
    %5819 = vmatpush1.msra.mxu0 0.0
    %5820 = vmatprep.subr.mxu0 0.0
    %5821 = vmatpush1.msra.mxu0 0.0
    %5822 = vmatprep.subr.mxu0 0.0
    %5823 = vmatpush1.msra.mxu0 0.0
    %5824 = vmatprep.subr.mxu0 0.0
    %5825 = vmatpush1.msra.mxu0 0.0
    %5826 = vmatprep.subr.mxu0 0.0
    %5827 = vmatpush1.msra.mxu0 0.0
    %5828 = vmatprep.subr.mxu0 0.0
    %5829 = vmatpush1.msra.mxu0 0.0
    %5830 = vmatprep.subr.mxu0 0.0
    %5831 = vmatpush1.msra.mxu0 0.0
    %5832 = vmatprep.subr.mxu0 0.0
    %5833 = vmatpush1.msra.mxu0 0.0
    %5834 = vmatprep.subr.mxu0 0.0
    %5835 = vmatpush1.msra.mxu0 0.0
    %5836 = vmatprep.subr.mxu0 0.0
    %5837 = vmatpush1.msra.mxu0 0.0
    %5838 = vmatprep.subr.mxu0 0.0
    %5839 = vmatpush1.msra.mxu0 0.0
    %5840 = vmatprep.subr.mxu0 0.0
    %5841 = vmatpush1.msra.mxu0 0.0
    %5842 = vmatprep.subr.mxu0 0.0
    %v5843 = vand.u32 %v3282, 4294901760
    %5844 = vmatpush1.msra.mxu0 %v5843
    %5845 = vmatprep.subr.mxu0 0.0
    %v5846 = vand.u32 %v3281, 4294901760
    %5847 = vmatpush1.msra.mxu0 %v5846
    %5848 = vmatprep.subr.mxu0 0.0
    %5849 = vmatpush2.msra.mxu0 0.0
    %5850 = vmatprep.subr.mxu0 0.0
    %5851 = vmatpush2.msra.mxu0 0.0
    %5852 = vmatprep.subr.mxu0 0.0
    %5853 = vmatpush2.msra.mxu0 0.0
    %5854 = vmatprep.subr.mxu0 0.0
    %5855 = vmatpush2.msra.mxu0 0.0
    %5856 = vmatprep.subr.mxu0 0.0
    %5857 = vmatpush2.msra.mxu0 0.0
    %5858 = vmatprep.subr.mxu0 0.0
    %5859 = vmatpush2.msra.mxu0 0.0
    %5860 = vmatprep.subr.mxu0 0.0
    %5861 = vmatpush2.msra.mxu0 0.0
    %5862 = vmatprep.subr.mxu0 0.0
    %5863 = vmatpush2.msra.mxu0 0.0
    %5864 = vmatprep.subr.mxu0 0.0
    %5865 = vmatpush2.msra.mxu0 0.0
    %5866 = vmatprep.subr.mxu0 0.0
    %5867 = vmatpush2.msra.mxu0 0.0
    %5868 = vmatprep.subr.mxu0 0.0
    %5869 = vmatpush2.msra.mxu0 0.0
    %5870 = vmatprep.subr.mxu0 0.0
    %5871 = vmatpush2.msra.mxu0 0.0
    %5872 = vmatprep.subr.mxu0 0.0
    %5873 = vmatpush2.msra.mxu0 0.0
    %5874 = vmatprep.subr.mxu0 0.0
    %5875 = vmatpush2.msra.mxu0 0.0
    %5876 = vmatprep.subr.mxu0 0.0
    %5877 = vmatpush2.msra.mxu0 0.0
    %5878 = vmatprep.subr.mxu0 0.0
    %5879 = vmatpush2.msra.mxu0 0.0
    %5880 = vmatprep.mubr.f32.mxu0 0.0
    %v5881 = vand.u32 %v5386, 4294901760
    %5882 = vmatmul.mubr.f32.gmra.mxu0 %v5881
    %v5883 = vpop.f32.mrf.mxu0
    %v5884 = vadd.f32 %v5805, %v5883
    %v5885 = vpop.f32.mrf.mxu0
    %5886 = vmatprep.mubr.f32.mxu0 0.0
    %v5887 = vand.u32 %v5389, 4294901760
    %5888 = vmatmul.mubr.f32.gmra.mxu0 %v5887
    %v5889 = vpop.f32.mrf.mxu0
    %v5890 = vadd.f32 %v5811, %v5889
    %v5891 = vpop.f32.mrf.mxu0
    %5892 = vdwg.mxu0
    %v5893 = vld [vmem:[%s2715] sm:$0xff]
    %v5894 = vld [vmem:[%s2715 + $0x8] sm:$0xff]
    %v5895 = vld [vmem:[%s2715 + $0x10] sm:$0xff]
    %v5896 = vld [vmem:[%s2715 + $0x18] sm:$0xff]
    %v5898 = vsel %vm83, %v5884, 0
    %v5901 = vsel %vm83, %v5890, 0
    %5903 = vmatprep.subr.mxu0 0.0
    %5904 = vmatpush1.msra.mxu0 0.0
    %5905 = vmatprep.subr.mxu0 0.0
    %5906 = vmatpush1.msra.mxu0 0.0
    %5907 = vmatprep.subr.mxu0 0.0
    %5908 = vmatpush1.msra.mxu0 0.0
    %5909 = vmatprep.subr.mxu0 0.0
    %5910 = vmatpush1.msra.mxu0 0.0
    %5911 = vmatprep.subr.mxu0 0.0
    %5912 = vmatpush1.msra.mxu0 0.0
    %5913 = vmatprep.subr.mxu0 0.0
    %5914 = vmatpush1.msra.mxu0 0.0
    %5915 = vmatprep.subr.mxu0 0.0
    %5916 = vmatpush1.msra.mxu0 0.0
    %5917 = vmatprep.subr.mxu0 0.0
    %5918 = vmatpush1.msra.mxu0 0.0
    %5919 = vmatprep.subr.mxu0 0.0
    %5920 = vmatpush1.msra.mxu0 0.0
    %5921 = vmatprep.subr.mxu0 0.0
    %5922 = vmatpush1.msra.mxu0 0.0
    %5923 = vmatprep.subr.mxu0 0.0
    %5924 = vmatpush1.msra.mxu0 0.0
    %5925 = vmatprep.subr.mxu0 0.0
    %5926 = vmatpush1.msra.mxu0 0.0
    %5927 = vmatprep.subr.mxu0 0.0
    %v5928 = vand.u32 %v5896, 4294901760
    %5929 = vmatpush1.msra.mxu0 %v5928
    %5930 = vmatprep.subr.mxu0 0.0
    %v5931 = vand.u32 %v5895, 4294901760
    %5932 = vmatpush1.msra.mxu0 %v5931
    %5933 = vmatprep.subr.mxu0 0.0
    %v5934 = vand.u32 %v5894, 4294901760
    %5935 = vmatpush1.msra.mxu0 %v5934
    %5936 = vmatprep.subr.mxu0 0.0
    %v5937 = vand.u32 %v5893, 4294901760
    %5938 = vmatpush1.msra.mxu0 %v5937
    %5939 = vmatprep.subr.mxu0 0.0
    %5940 = vmatpush2.msra.mxu0 0.0
    %5941 = vmatprep.subr.mxu0 0.0
    %5942 = vmatpush2.msra.mxu0 0.0
    %5943 = vmatprep.subr.mxu0 0.0
    %5944 = vmatpush2.msra.mxu0 0.0
    %5945 = vmatprep.subr.mxu0 0.0
    %5946 = vmatpush2.msra.mxu0 0.0
    %5947 = vmatprep.subr.mxu0 0.0
    %5948 = vmatpush2.msra.mxu0 0.0
    %5949 = vmatprep.subr.mxu0 0.0
    %5950 = vmatpush2.msra.mxu0 0.0
    %5951 = vmatprep.subr.mxu0 0.0
    %5952 = vmatpush2.msra.mxu0 0.0
    %5953 = vmatprep.subr.mxu0 0.0
    %5954 = vmatpush2.msra.mxu0 0.0
    %5955 = vmatprep.subr.mxu0 0.0
    %5956 = vmatpush2.msra.mxu0 0.0
    %5957 = vmatprep.subr.mxu0 0.0
    %5958 = vmatpush2.msra.mxu0 0.0
    %5959 = vmatprep.subr.mxu0 0.0
    %5960 = vmatpush2.msra.mxu0 0.0
    %5961 = vmatprep.subr.mxu0 0.0
    %5962 = vmatpush2.msra.mxu0 0.0
    %5963 = vmatprep.subr.mxu0 0.0
    %5964 = vmatpush2.msra.mxu0 0.0
    %5965 = vmatprep.subr.mxu0 0.0
    %5966 = vmatpush2.msra.mxu0 0.0
    %5967 = vmatprep.subr.mxu0 0.0
    %5968 = vmatpush2.msra.mxu0 0.0
    %5969 = vmatprep.subr.mxu0 0.0
    %5970 = vmatpush2.msra.mxu0 0.0
    %5971 = vmatprep.mubr.f32.mxu0 0.0
    %v5972 = vand.u32 %v5898, 4294901760
    %v5973 = vsub.f32 %v5898, %v5972
    %v5974 = vand.u32 %v5973, 4294901760
    %v5975 = vsub.f32 %v5973, %v5974
    %v5976 = vand.u32 %v5975, 4294901760
    %5977 = vmatmul.mubr.f32.gmra.mxu0 %v5976
    %v5978 = vpop.f32.mrf.mxu0
    %v5979 = vadd.f32 0.0, %v5978
    %v5980 = vpop.f32.mrf.mxu0
    %5981 = vmatprep.mubr.f32.mxu0 0.0
    %v5982 = vand.u32 %v5901, 4294901760
    %v5983 = vsub.f32 %v5901, %v5982
    %v5984 = vand.u32 %v5983, 4294901760
    %v5985 = vsub.f32 %v5983, %v5984
    %v5986 = vand.u32 %v5985, 4294901760
    %5987 = vmatmul.mubr.f32.gmra.mxu0 %v5986
    %v5988 = vpop.f32.mrf.mxu0
    %v5989 = vadd.f32 0.0, %v5988
    %v5990 = vpop.f32.mrf.mxu0
    %5991 = vdwg.mxu0
    %5992 = vmatprep.subr.mxu0 0.0
    %5993 = vmatpush1.msra.mxu0 0.0
    %5994 = vmatprep.subr.mxu0 0.0
    %5995 = vmatpush1.msra.mxu0 0.0
    %5996 = vmatprep.subr.mxu0 0.0
    %5997 = vmatpush1.msra.mxu0 0.0
    %5998 = vmatprep.subr.mxu0 0.0
    %5999 = vmatpush1.msra.mxu0 0.0
    %6000 = vmatprep.subr.mxu0 0.0
    %6001 = vmatpush1.msra.mxu0 0.0
    %6002 = vmatprep.subr.mxu0 0.0
    %6003 = vmatpush1.msra.mxu0 0.0
    %6004 = vmatprep.subr.mxu0 0.0
    %6005 = vmatpush1.msra.mxu0 0.0
    %6006 = vmatprep.subr.mxu0 0.0
    %6007 = vmatpush1.msra.mxu0 0.0
    %6008 = vmatprep.subr.mxu0 0.0
    %6009 = vmatpush1.msra.mxu0 0.0
    %6010 = vmatprep.subr.mxu0 0.0
    %6011 = vmatpush1.msra.mxu0 0.0
    %6012 = vmatprep.subr.mxu0 0.0
    %6013 = vmatpush1.msra.mxu0 0.0
    %6014 = vmatprep.subr.mxu0 0.0
    %6015 = vmatpush1.msra.mxu0 0.0
    %6016 = vmatprep.subr.mxu0 0.0
    %v6017 = vand.u32 %v5896, 4294901760
    %v6018 = vsub.f32 %v5896, %v6017
    %v6019 = vand.u32 %v6018, 4294901760
    %v6020 = vsub.f32 %v6018, %v6019
    %v6021 = vand.u32 %v6020, 4294901760
    %6022 = vmatpush1.msra.mxu0 %v6021
    %6023 = vmatprep.subr.mxu0 0.0
    %v6024 = vand.u32 %v5895, 4294901760
    %v6025 = vsub.f32 %v5895, %v6024
    %v6026 = vand.u32 %v6025, 4294901760
    %v6027 = vsub.f32 %v6025, %v6026
    %v6028 = vand.u32 %v6027, 4294901760
    %6029 = vmatpush1.msra.mxu0 %v6028
    %6030 = vmatprep.subr.mxu0 0.0
    %v6031 = vand.u32 %v5894, 4294901760
    %v6032 = vsub.f32 %v5894, %v6031
    %v6033 = vand.u32 %v6032, 4294901760
    %v6034 = vsub.f32 %v6032, %v6033
    %v6035 = vand.u32 %v6034, 4294901760
    %6036 = vmatpush1.msra.mxu0 %v6035
    %6037 = vmatprep.subr.mxu0 0.0
    %v6038 = vand.u32 %v5893, 4294901760
    %v6039 = vsub.f32 %v5893, %v6038
    %v6040 = vand.u32 %v6039, 4294901760
    %v6041 = vsub.f32 %v6039, %v6040
    %v6042 = vand.u32 %v6041, 4294901760
    %6043 = vmatpush1.msra.mxu0 %v6042
    %6044 = vmatprep.subr.mxu0 0.0
    %6045 = vmatpush2.msra.mxu0 0.0
    %6046 = vmatprep.subr.mxu0 0.0
    %6047 = vmatpush2.msra.mxu0 0.0
    %6048 = vmatprep.subr.mxu0 0.0
    %6049 = vmatpush2.msra.mxu0 0.0
    %6050 = vmatprep.subr.mxu0 0.0
    %6051 = vmatpush2.msra.mxu0 0.0
    %6052 = vmatprep.subr.mxu0 0.0
    %6053 = vmatpush2.msra.mxu0 0.0
    %6054 = vmatprep.subr.mxu0 0.0
    %6055 = vmatpush2.msra.mxu0 0.0
    %6056 = vmatprep.subr.mxu0 0.0
    %6057 = vmatpush2.msra.mxu0 0.0
    %6058 = vmatprep.subr.mxu0 0.0
    %6059 = vmatpush2.msra.mxu0 0.0
    %6060 = vmatprep.subr.mxu0 0.0
    %6061 = vmatpush2.msra.mxu0 0.0
    %6062 = vmatprep.subr.mxu0 0.0
    %6063 = vmatpush2.msra.mxu0 0.0
    %6064 = vmatprep.subr.mxu0 0.0
    %6065 = vmatpush2.msra.mxu0 0.0
    %6066 = vmatprep.subr.mxu0 0.0
    %6067 = vmatpush2.msra.mxu0 0.0
    %6068 = vmatprep.subr.mxu0 0.0
    %6069 = vmatpush2.msra.mxu0 0.0
    %6070 = vmatprep.subr.mxu0 0.0
    %6071 = vmatpush2.msra.mxu0 0.0
    %6072 = vmatprep.subr.mxu0 0.0
    %6073 = vmatpush2.msra.mxu0 0.0
    %6074 = vmatprep.subr.mxu0 0.0
    %6075 = vmatpush2.msra.mxu0 0.0
    %6076 = vmatprep.mubr.f32.mxu0 0.0
    %v6077 = vand.u32 %v5898, 4294901760
    %6078 = vmatmul.mubr.f32.gmra.mxu0 %v6077
    %v6079 = vpop.f32.mrf.mxu0
    %v6080 = vadd.f32 %v5979, %v6079
    %v6081 = vpop.f32.mrf.mxu0
    %6082 = vmatprep.mubr.f32.mxu0 0.0
    %v6083 = vand.u32 %v5901, 4294901760
    %6084 = vmatmul.mubr.f32.gmra.mxu0 %v6083
    %v6085 = vpop.f32.mrf.mxu0
    %v6086 = vadd.f32 %v5989, %v6085
    %v6087 = vpop.f32.mrf.mxu0
    %6088 = vdwg.mxu0
    %6089 = vmatprep.subr.mxu0 0.0
    %6090 = vmatpush1.msra.mxu0 0.0
    %6091 = vmatprep.subr.mxu0 0.0
    %6092 = vmatpush1.msra.mxu0 0.0
    %6093 = vmatprep.subr.mxu0 0.0
    %6094 = vmatpush1.msra.mxu0 0.0
    %6095 = vmatprep.subr.mxu0 0.0
    %6096 = vmatpush1.msra.mxu0 0.0
    %6097 = vmatprep.subr.mxu0 0.0
    %6098 = vmatpush1.msra.mxu0 0.0
    %6099 = vmatprep.subr.mxu0 0.0
    %6100 = vmatpush1.msra.mxu0 0.0
    %6101 = vmatprep.subr.mxu0 0.0
    %6102 = vmatpush1.msra.mxu0 0.0
    %6103 = vmatprep.subr.mxu0 0.0
    %6104 = vmatpush1.msra.mxu0 0.0
    %6105 = vmatprep.subr.mxu0 0.0
    %6106 = vmatpush1.msra.mxu0 0.0
    %6107 = vmatprep.subr.mxu0 0.0
    %6108 = vmatpush1.msra.mxu0 0.0
    %6109 = vmatprep.subr.mxu0 0.0
    %6110 = vmatpush1.msra.mxu0 0.0
    %6111 = vmatprep.subr.mxu0 0.0
    %6112 = vmatpush1.msra.mxu0 0.0
    %6113 = vmatprep.subr.mxu0 0.0
    %v6114 = vand.u32 %v5896, 4294901760
    %v6115 = vsub.f32 %v5896, %v6114
    %6116 = vmatpush1.msra.mxu0 %v6115
    %6117 = vmatprep.subr.mxu0 0.0
    %v6118 = vand.u32 %v5895, 4294901760
    %v6119 = vsub.f32 %v5895, %v6118
    %6120 = vmatpush1.msra.mxu0 %v6119
    %6121 = vmatprep.subr.mxu0 0.0
    %v6122 = vand.u32 %v5894, 4294901760
    %v6123 = vsub.f32 %v5894, %v6122
    %6124 = vmatpush1.msra.mxu0 %v6123
    %6125 = vmatprep.subr.mxu0 0.0
    %v6126 = vand.u32 %v5893, 4294901760
    %v6127 = vsub.f32 %v5893, %v6126
    %6128 = vmatpush1.msra.mxu0 %v6127
    %6129 = vmatprep.subr.mxu0 0.0
    %6130 = vmatpush2.msra.mxu0 0.0
    %6131 = vmatprep.subr.mxu0 0.0
    %6132 = vmatpush2.msra.mxu0 0.0
    %6133 = vmatprep.subr.mxu0 0.0
    %6134 = vmatpush2.msra.mxu0 0.0
    %6135 = vmatprep.subr.mxu0 0.0
    %6136 = vmatpush2.msra.mxu0 0.0
    %6137 = vmatprep.subr.mxu0 0.0
    %6138 = vmatpush2.msra.mxu0 0.0
    %6139 = vmatprep.subr.mxu0 0.0
    %6140 = vmatpush2.msra.mxu0 0.0
    %6141 = vmatprep.subr.mxu0 0.0
    %6142 = vmatpush2.msra.mxu0 0.0
    %6143 = vmatprep.subr.mxu0 0.0
    %6144 = vmatpush2.msra.mxu0 0.0
    %6145 = vmatprep.subr.mxu0 0.0
    %6146 = vmatpush2.msra.mxu0 0.0
    %6147 = vmatprep.subr.mxu0 0.0
    %6148 = vmatpush2.msra.mxu0 0.0
    %6149 = vmatprep.subr.mxu0 0.0
    %6150 = vmatpush2.msra.mxu0 0.0
    %6151 = vmatprep.subr.mxu0 0.0
    %6152 = vmatpush2.msra.mxu0 0.0
    %6153 = vmatprep.subr.mxu0 0.0
    %6154 = vmatpush2.msra.mxu0 0.0
    %6155 = vmatprep.subr.mxu0 0.0
    %6156 = vmatpush2.msra.mxu0 0.0
    %6157 = vmatprep.subr.mxu0 0.0
    %6158 = vmatpush2.msra.mxu0 0.0
    %6159 = vmatprep.subr.mxu0 0.0
    %6160 = vmatpush2.msra.mxu0 0.0
    %6161 = vmatprep.mubr.f32.mxu0 0.0
    %v6162 = vand.u32 %v5898, 4294901760
    %v6163 = vsub.f32 %v5898, %v6162
    %6164 = vmatmul.mubr.f32.gmra.mxu0 %v6163
    %v6165 = vpop.f32.mrf.mxu0
    %v6166 = vadd.f32 %v6080, %v6165
    %v6167 = vpop.f32.mrf.mxu0
    %6168 = vmatprep.mubr.f32.mxu0 0.0
    %v6169 = vand.u32 %v5901, 4294901760
    %v6170 = vsub.f32 %v5901, %v6169
    %6171 = vmatmul.mubr.f32.gmra.mxu0 %v6170
    %v6172 = vpop.f32.mrf.mxu0
    %v6173 = vadd.f32 %v6086, %v6172
    %v6174 = vpop.f32.mrf.mxu0
    %6175 = vdwg.mxu0
    %6176 = vmatprep.subr.mxu0 0.0
    %6177 = vmatpush1.msra.mxu0 0.0
    %6178 = vmatprep.subr.mxu0 0.0
    %6179 = vmatpush1.msra.mxu0 0.0
    %6180 = vmatprep.subr.mxu0 0.0
    %6181 = vmatpush1.msra.mxu0 0.0
    %6182 = vmatprep.subr.mxu0 0.0
    %6183 = vmatpush1.msra.mxu0 0.0
    %6184 = vmatprep.subr.mxu0 0.0
    %6185 = vmatpush1.msra.mxu0 0.0
    %6186 = vmatprep.subr.mxu0 0.0
    %6187 = vmatpush1.msra.mxu0 0.0
    %6188 = vmatprep.subr.mxu0 0.0
    %6189 = vmatpush1.msra.mxu0 0.0
    %6190 = vmatprep.subr.mxu0 0.0
    %6191 = vmatpush1.msra.mxu0 0.0
    %6192 = vmatprep.subr.mxu0 0.0
    %6193 = vmatpush1.msra.mxu0 0.0
    %6194 = vmatprep.subr.mxu0 0.0
    %6195 = vmatpush1.msra.mxu0 0.0
    %6196 = vmatprep.subr.mxu0 0.0
    %6197 = vmatpush1.msra.mxu0 0.0
    %6198 = vmatprep.subr.mxu0 0.0
    %6199 = vmatpush1.msra.mxu0 0.0
    %6200 = vmatprep.subr.mxu0 0.0
    %v6201 = vand.u32 %v5896, 4294901760
    %6202 = vmatpush1.msra.mxu0 %v6201
    %6203 = vmatprep.subr.mxu0 0.0
    %v6204 = vand.u32 %v5895, 4294901760
    %6205 = vmatpush1.msra.mxu0 %v6204
    %6206 = vmatprep.subr.mxu0 0.0
    %v6207 = vand.u32 %v5894, 4294901760
    %6208 = vmatpush1.msra.mxu0 %v6207
    %6209 = vmatprep.subr.mxu0 0.0
    %v6210 = vand.u32 %v5893, 4294901760
    %6211 = vmatpush1.msra.mxu0 %v6210
    %6212 = vmatprep.subr.mxu0 0.0
    %6213 = vmatpush2.msra.mxu0 0.0
    %6214 = vmatprep.subr.mxu0 0.0
    %6215 = vmatpush2.msra.mxu0 0.0
    %6216 = vmatprep.subr.mxu0 0.0
    %6217 = vmatpush2.msra.mxu0 0.0
    %6218 = vmatprep.subr.mxu0 0.0
    %6219 = vmatpush2.msra.mxu0 0.0
    %6220 = vmatprep.subr.mxu0 0.0
    %6221 = vmatpush2.msra.mxu0 0.0
    %6222 = vmatprep.subr.mxu0 0.0
    %6223 = vmatpush2.msra.mxu0 0.0
    %6224 = vmatprep.subr.mxu0 0.0
    %6225 = vmatpush2.msra.mxu0 0.0
    %6226 = vmatprep.subr.mxu0 0.0
    %6227 = vmatpush2.msra.mxu0 0.0
    %6228 = vmatprep.subr.mxu0 0.0
    %6229 = vmatpush2.msra.mxu0 0.0
    %6230 = vmatprep.subr.mxu0 0.0
    %6231 = vmatpush2.msra.mxu0 0.0
    %6232 = vmatprep.subr.mxu0 0.0
    %6233 = vmatpush2.msra.mxu0 0.0
    %6234 = vmatprep.subr.mxu0 0.0
    %6235 = vmatpush2.msra.mxu0 0.0
    %6236 = vmatprep.subr.mxu0 0.0
    %6237 = vmatpush2.msra.mxu0 0.0
    %6238 = vmatprep.subr.mxu0 0.0
    %6239 = vmatpush2.msra.mxu0 0.0
    %6240 = vmatprep.subr.mxu0 0.0
    %6241 = vmatpush2.msra.mxu0 0.0
    %6242 = vmatprep.subr.mxu0 0.0
    %6243 = vmatpush2.msra.mxu0 0.0
    %6244 = vmatprep.mubr.f32.mxu0 0.0
    %v6245 = vand.u32 %v5898, 4294901760
    %v6246 = vsub.f32 %v5898, %v6245
    %v6247 = vand.u32 %v6246, 4294901760
    %6248 = vmatmul.mubr.f32.gmra.mxu0 %v6247
    %v6249 = vpop.f32.mrf.mxu0
    %v6250 = vadd.f32 %v6166, %v6249
    %v6251 = vpop.f32.mrf.mxu0
    %6252 = vmatprep.mubr.f32.mxu0 0.0
    %v6253 = vand.u32 %v5901, 4294901760
    %v6254 = vsub.f32 %v5901, %v6253
    %v6255 = vand.u32 %v6254, 4294901760
    %6256 = vmatmul.mubr.f32.gmra.mxu0 %v6255
    %v6257 = vpop.f32.mrf.mxu0
    %v6258 = vadd.f32 %v6173, %v6257
    %v6259 = vpop.f32.mrf.mxu0
    %6260 = vdwg.mxu0
    %6261 = vmatprep.subr.mxu0 0.0
    %6262 = vmatpush1.msra.mxu0 0.0
    %6263 = vmatprep.subr.mxu0 0.0
    %6264 = vmatpush1.msra.mxu0 0.0
    %6265 = vmatprep.subr.mxu0 0.0
    %6266 = vmatpush1.msra.mxu0 0.0
    %6267 = vmatprep.subr.mxu0 0.0
    %6268 = vmatpush1.msra.mxu0 0.0
    %6269 = vmatprep.subr.mxu0 0.0
    %6270 = vmatpush1.msra.mxu0 0.0
    %6271 = vmatprep.subr.mxu0 0.0
    %6272 = vmatpush1.msra.mxu0 0.0
    %6273 = vmatprep.subr.mxu0 0.0
    %6274 = vmatpush1.msra.mxu0 0.0
    %6275 = vmatprep.subr.mxu0 0.0
    %6276 = vmatpush1.msra.mxu0 0.0
    %6277 = vmatprep.subr.mxu0 0.0
    %6278 = vmatpush1.msra.mxu0 0.0
    %6279 = vmatprep.subr.mxu0 0.0
    %6280 = vmatpush1.msra.mxu0 0.0
    %6281 = vmatprep.subr.mxu0 0.0
    %6282 = vmatpush1.msra.mxu0 0.0
    %6283 = vmatprep.subr.mxu0 0.0
    %6284 = vmatpush1.msra.mxu0 0.0
    %6285 = vmatprep.subr.mxu0 0.0
    %v6286 = vand.u32 %v5896, 4294901760
    %v6287 = vsub.f32 %v5896, %v6286
    %v6288 = vand.u32 %v6287, 4294901760
    %6289 = vmatpush1.msra.mxu0 %v6288
    %6290 = vmatprep.subr.mxu0 0.0
    %v6291 = vand.u32 %v5895, 4294901760
    %v6292 = vsub.f32 %v5895, %v6291
    %v6293 = vand.u32 %v6292, 4294901760
    %6294 = vmatpush1.msra.mxu0 %v6293
    %6295 = vmatprep.subr.mxu0 0.0
    %v6296 = vand.u32 %v5894, 4294901760
    %v6297 = vsub.f32 %v5894, %v6296
    %v6298 = vand.u32 %v6297, 4294901760
    %6299 = vmatpush1.msra.mxu0 %v6298
    %6300 = vmatprep.subr.mxu0 0.0
    %v6301 = vand.u32 %v5893, 4294901760
    %v6302 = vsub.f32 %v5893, %v6301
    %v6303 = vand.u32 %v6302, 4294901760
    %6304 = vmatpush1.msra.mxu0 %v6303
    %6305 = vmatprep.subr.mxu0 0.0
    %6306 = vmatpush2.msra.mxu0 0.0
    %6307 = vmatprep.subr.mxu0 0.0
    %6308 = vmatpush2.msra.mxu0 0.0
    %6309 = vmatprep.subr.mxu0 0.0
    %6310 = vmatpush2.msra.mxu0 0.0
    %6311 = vmatprep.subr.mxu0 0.0
    %6312 = vmatpush2.msra.mxu0 0.0
    %6313 = vmatprep.subr.mxu0 0.0
    %6314 = vmatpush2.msra.mxu0 0.0
    %6315 = vmatprep.subr.mxu0 0.0
    %6316 = vmatpush2.msra.mxu0 0.0
    %6317 = vmatprep.subr.mxu0 0.0
    %6318 = vmatpush2.msra.mxu0 0.0
    %6319 = vmatprep.subr.mxu0 0.0
    %6320 = vmatpush2.msra.mxu0 0.0
    %6321 = vmatprep.subr.mxu0 0.0
    %6322 = vmatpush2.msra.mxu0 0.0
    %6323 = vmatprep.subr.mxu0 0.0
    %6324 = vmatpush2.msra.mxu0 0.0
    %6325 = vmatprep.subr.mxu0 0.0
    %6326 = vmatpush2.msra.mxu0 0.0
    %6327 = vmatprep.subr.mxu0 0.0
    %6328 = vmatpush2.msra.mxu0 0.0
    %6329 = vmatprep.subr.mxu0 0.0
    %6330 = vmatpush2.msra.mxu0 0.0
    %6331 = vmatprep.subr.mxu0 0.0
    %6332 = vmatpush2.msra.mxu0 0.0
    %6333 = vmatprep.subr.mxu0 0.0
    %6334 = vmatpush2.msra.mxu0 0.0
    %6335 = vmatprep.subr.mxu0 0.0
    %6336 = vmatpush2.msra.mxu0 0.0
    %6337 = vmatprep.mubr.f32.mxu0 0.0
    %v6338 = vand.u32 %v5898, 4294901760
    %6339 = vmatmul.mubr.f32.gmra.mxu0 %v6338
    %v6340 = vpop.f32.mrf.mxu0
    %v6341 = vadd.f32 %v6250, %v6340
    %v6342 = vpop.f32.mrf.mxu0
    %6343 = vmatprep.mubr.f32.mxu0 0.0
    %v6344 = vand.u32 %v5901, 4294901760
    %6345 = vmatmul.mubr.f32.gmra.mxu0 %v6344
    %v6346 = vpop.f32.mrf.mxu0
    %v6347 = vadd.f32 %v6258, %v6346
    %v6348 = vpop.f32.mrf.mxu0
    %6349 = vdwg.mxu0
    %6350 = vmatprep.subr.mxu0 0.0
    %6351 = vmatpush1.msra.mxu0 0.0
    %6352 = vmatprep.subr.mxu0 0.0
    %6353 = vmatpush1.msra.mxu0 0.0
    %6354 = vmatprep.subr.mxu0 0.0
    %6355 = vmatpush1.msra.mxu0 0.0
    %6356 = vmatprep.subr.mxu0 0.0
    %6357 = vmatpush1.msra.mxu0 0.0
    %6358 = vmatprep.subr.mxu0 0.0
    %6359 = vmatpush1.msra.mxu0 0.0
    %6360 = vmatprep.subr.mxu0 0.0
    %6361 = vmatpush1.msra.mxu0 0.0
    %6362 = vmatprep.subr.mxu0 0.0
    %6363 = vmatpush1.msra.mxu0 0.0
    %6364 = vmatprep.subr.mxu0 0.0
    %6365 = vmatpush1.msra.mxu0 0.0
    %6366 = vmatprep.subr.mxu0 0.0
    %6367 = vmatpush1.msra.mxu0 0.0
    %6368 = vmatprep.subr.mxu0 0.0
    %6369 = vmatpush1.msra.mxu0 0.0
    %6370 = vmatprep.subr.mxu0 0.0
    %6371 = vmatpush1.msra.mxu0 0.0
    %6372 = vmatprep.subr.mxu0 0.0
    %6373 = vmatpush1.msra.mxu0 0.0
    %6374 = vmatprep.subr.mxu0 0.0
    %v6375 = vand.u32 %v5896, 4294901760
    %6376 = vmatpush1.msra.mxu0 %v6375
    %6377 = vmatprep.subr.mxu0 0.0
    %v6378 = vand.u32 %v5895, 4294901760
    %6379 = vmatpush1.msra.mxu0 %v6378
    %6380 = vmatprep.subr.mxu0 0.0
    %v6381 = vand.u32 %v5894, 4294901760
    %6382 = vmatpush1.msra.mxu0 %v6381
    %6383 = vmatprep.subr.mxu0 0.0
    %v6384 = vand.u32 %v5893, 4294901760
    %6385 = vmatpush1.msra.mxu0 %v6384
    %6386 = vmatprep.subr.mxu0 0.0
    %6387 = vmatpush2.msra.mxu0 0.0
    %6388 = vmatprep.subr.mxu0 0.0
    %6389 = vmatpush2.msra.mxu0 0.0
    %6390 = vmatprep.subr.mxu0 0.0
    %6391 = vmatpush2.msra.mxu0 0.0
    %6392 = vmatprep.subr.mxu0 0.0
    %6393 = vmatpush2.msra.mxu0 0.0
    %6394 = vmatprep.subr.mxu0 0.0
    %6395 = vmatpush2.msra.mxu0 0.0
    %6396 = vmatprep.subr.mxu0 0.0
    %6397 = vmatpush2.msra.mxu0 0.0
    %6398 = vmatprep.subr.mxu0 0.0
    %6399 = vmatpush2.msra.mxu0 0.0
    %6400 = vmatprep.subr.mxu0 0.0
    %6401 = vmatpush2.msra.mxu0 0.0
    %6402 = vmatprep.subr.mxu0 0.0
    %6403 = vmatpush2.msra.mxu0 0.0
    %6404 = vmatprep.subr.mxu0 0.0
    %6405 = vmatpush2.msra.mxu0 0.0
    %6406 = vmatprep.subr.mxu0 0.0
    %6407 = vmatpush2.msra.mxu0 0.0
    %6408 = vmatprep.subr.mxu0 0.0
    %6409 = vmatpush2.msra.mxu0 0.0
    %6410 = vmatprep.subr.mxu0 0.0
    %6411 = vmatpush2.msra.mxu0 0.0
    %6412 = vmatprep.subr.mxu0 0.0
    %6413 = vmatpush2.msra.mxu0 0.0
    %6414 = vmatprep.subr.mxu0 0.0
    %6415 = vmatpush2.msra.mxu0 0.0
    %6416 = vmatprep.subr.mxu0 0.0
    %6417 = vmatpush2.msra.mxu0 0.0
    %6418 = vmatprep.mubr.f32.mxu0 0.0
    %v6419 = vand.u32 %v5898, 4294901760
    %6420 = vmatmul.mubr.f32.gmra.mxu0 %v6419
    %v6421 = vpop.f32.mrf.mxu0
    %v6422 = vadd.f32 %v6341, %v6421
    %v6423 = vpop.f32.mrf.mxu0
    %6424 = vmatprep.mubr.f32.mxu0 0.0
    %v6425 = vand.u32 %v5901, 4294901760
    %6426 = vmatmul.mubr.f32.gmra.mxu0 %v6425
    %v6427 = vpop.f32.mrf.mxu0
    %v6428 = vadd.f32 %v6347, %v6427
    %v6429 = vpop.f32.mrf.mxu0
    %6430 = vdwg.mxu0
    %v6431 = vadd.f32 %v5381, %v6422
    %v6432 = vadd.f32 %v5382, %v6428
    %s6433 = scalar_lea.vmem [#allocation10], 16
    %6434 = vst.msk [vmem:[%s6433] sm:$0xff] %vm83, %v6431
    %6435 = vst.msk [vmem:[%s6433 + $0x8] sm:$0xff] %vm83, %v6432
    // Predicated region
    $region34: #{tpu_custom_call.1} parent=1 // pred_check
      _
    $region35: #{tpu_custom_call.1} parent=1 // pred_check_branch
      %6437 = sbr.rel (0) target = $region37
    $region36: #{tpu_custom_call.1} parent=1 // pred_region
      %s6439 = ssub.s32 512, 512
      %6440 = vsyncadd [#allocation4], %s6439
      %s6441 = sshll.u32 [#allocation10], 4
      %s6442 = int_to_ptr.vmem [resolvable:$true] %s6441
      %6447 = dma.vmem_to_hbm [thread:$0]  %s6442, 512, %s4, [#allocation4], 128, 128, 8
    $region37: #{tpu_custom_call.1} parent=1 // pred_fallthru
      _
    // Predicated region
    $region38: #{tpu_custom_call.1} parent=1 // pred_check
      _
    $region39: #{tpu_custom_call.1} parent=1 // pred_check_branch
      %6449 = sbr.rel (0) target = $region41
    $region40: #{tpu_custom_call.1} parent=1 // pred_region
      %6450 = dma.done [#allocation4], 512
    $region41: #{tpu_custom_call.1} parent=1 // pred_fallthru
      _
    %6451 = vsyncpa [#allocation3], 1
    %6452 = vsyncpa [#allocation6], 1
    %6453 = vsyncpa [#allocation9], 1
    %6454 = vsyncpa [#allocation4], 1

</llo_original>
